<compile_context>
chip_gen: v7x
topology: tpu7x:2x2x1
jax: 0.10.0
libtpu: 0.0.40
codegen_flags: <defaults>
</compile_context>

<pallas_src>
import functools

import numpy as np

import jax
import jax.numpy as jnp
from jax.experimental import pallas as pl
from jax.experimental.pallas import tpu as pltpu

IN_DIM = 32
MEM_DIM = 32
HIDDEN_DIM = 32          # must equal MEM_DIM because of c_body.view(1, hidden_dim)
VOCAB_SIZE = 50
MAX_NUM_PARA = 3
MAX_NUM_SENT = 4
PAD_IDX = 0              # Constants.PAD


class Tree:
    def __init__(self, idx, children=()):
        self.idx = idx
        self.children = list(children)
        self.num_children = len(self.children)


# ----------------------------------------------------------------------------
# Fused ChildSum kernel: ALL trees of the document in one pallas_call.
#   grid = (num_trees,); one grid step processes one whole tree (node loop
#   unrolled inside).  Padding leaves come first, real nodes last (children
#   before parents), so the root is always the last node processed.
#   cidx_ref / ind_ref (SMEM, scalar-prefetched): flattened child table
#     (entries = processing positions; sentinel = max_nodes -> zero state row)
#     and per-tree indicator.
#   h_tab / c_tab (VMEM scratch): per-node state; every row that is read is
#     either the sentinel (zeroed each step) or written earlier in the same
#     step, so grid steps are fully independent (-> "parallel" is safe).
# ----------------------------------------------------------------------------
def _tree_batch_kernel(max_nodes, maxc,
                       cidx_ref, ind_ref, x_ref,
                       wx_ref, wh_ref, bx_ref, bh_ref, wwa_ref, bwa_ref,
                       c_out, h_tab, c_tab):
    f32 = jnp.float32
    M = MEM_DIM
    t = pl.program_id(0)

    zrow = jnp.zeros((1, M), f32)
    h_tab[max_nodes:max_nodes + 1, :] = zrow       # sentinel (zero) state row
    c_tab[max_nodes:max_nodes + 1, :] = zrow

    # Hoisted weight loads (VMEM-resident across the whole grid).
    wx = wx_ref[...]
    wh = wh_ref[...]
    bh = bh_ref[...]
    wwa = wwa_ref[...]
    bwa = bwa_ref[...]

    # Hoisted input projection for every node of this tree, packed lane-dense
    # as [ i | o | u | fx ] -> one (max_nodes, 32) x (32, 128) MXU pass.
    xproj_all = jnp.dot(x_ref[...], wx, preferred_element_type=f32) + bx_ref[...]

    # Attention on/off for this tree (headline = 0, sentences = 1).
    use_wa = jnp.full((1, M), ind_ref[t], jnp.int32) == 1

    base = t * (max_nodes * maxc)
    c = zrow
    for s in range(max_nodes):                     # static, small -> unrolled
        # Gather child state.  NOTE: the reference swaps h and c when building
        # child_c_prev / child_h_prev; reproduced verbatim (child_c rows come
        # from stored h, child_h rows from stored c).
        cc_rows, ch_rows = [], []
        for k in range(maxc):
            ci = cidx_ref[base + s * maxc + k]
            cc_rows.append(h_tab[pl.ds(ci, 1), :])
            ch_rows.append(c_tab[pl.ds(ci, 1), :])
        child_c = jnp.concatenate(cc_rows, axis=0)             # (maxc, M)
        child_h = jnp.concatenate(ch_rows, axis=0)             # (maxc, M)

        chs = jnp.sum(child_h, axis=0, keepdims=True)          # (1, M)
        # Reference attention: softmax over a size-1 axis is identically 1, so
        # attn.T @ child_h == sum(child_h); only the Wa projection survives.
        wa_out = jnp.dot(chs, wwa, preferred_element_type=f32) + bwa
        child_h_sum = jnp.where(use_wa, wa_out, chs)

        xproj = xproj_all[s:s + 1, :]                          # (1, 4M)
        # hproj row 0 : child_h_sum @ [Whi|Who|Whu|Wfh]  (iou part used)
        # hproj rows 1..: child_h   @ [Whi|Who|Whu|Wfh]  (fh  part used)
        stacked = jnp.concatenate([child_h_sum, child_h], axis=0)       # (1+maxc, M)
        hproj = jnp.dot(stacked, wh, preferred_element_type=f32) + bh   # (1+maxc, 4M)

        i = jax.nn.sigmoid(xproj[:, :M] + hproj[0:1, :M])
        o = jax.nn.sigmoid(xproj[:, M:2 * M] + hproj[0:1, M:2 * M])
        u = jnp.tanh(xproj[:, 2 * M:3 * M] + hproj[0:1, 2 * M:3 * M])
        f = jax.nn.sigmoid(hproj[1:, 3 * M:] + xproj[:, 3 * M:])        # (maxc, M)

        c = i * u + jnp.sum(f * child_c, axis=0, keepdims=True)
        h = o * jnp.tanh(c)

        h_tab[s:s + 1, :] = h
        c_tab[s:s + 1, :] = c

    # Root is the last processed node -> its c is the value left in `c`.
    c_out[...] = c


@jax.jit
def _trees_run(child_idx_flat, indicators, x_all, p):
    num_trees, max_nodes, _ = x_all.shape
    maxc = child_idx_flat.shape[0] // (num_trees * max_nodes)
    kern = functools.partial(_tree_batch_kernel, max_nodes, maxc)
    const = lambda t, *_: (0, 0)
    return pl.pallas_call(
        kern,
        out_shape=jax.ShapeDtypeStruct((num_trees, 1, MEM_DIM), jnp.float32),
        grid_spec=pltpu.PrefetchScalarGridSpec(
            num_scalar_prefetch=2,
            grid=(num_trees,),
            in_specs=[
                pl.BlockSpec((None, max_nodes, IN_DIM), lambda t, *_: (t, 0, 0)),
                pl.BlockSpec((IN_DIM, 4 * MEM_DIM), const),     # Wx packed
                pl.BlockSpec((MEM_DIM, 4 * MEM_DIM), const),    # Wh packed
                pl.BlockSpec((1, 4 * MEM_DIM), const),          # bx packed
                pl.BlockSpec((1, 4 * MEM_DIM), const),          # bh packed
                pl.BlockSpec((MEM_DIM, MEM_DIM), const),        # Wa
                pl.BlockSpec((1, MEM_DIM), const),              # bWa
            ],
            out_specs=pl.BlockSpec((None, 1, MEM_DIM), lambda t, *_: (t, 0, 0)),
            scratch_shapes=[pltpu.VMEM((max_nodes + 1, MEM_DIM), jnp.float32),
                            pltpu.VMEM((max_nodes + 1, MEM_DIM), jnp.float32)]),
        compiler_params=pltpu.CompilerParams(dimension_semantics=("parallel",)),
    )(child_idx_flat, indicators, x_all,
      p['wx'], p['wh'], p['bx'], p['bh'], p['wwa'], p['bwa'])


# ----------------------------------------------------------------------------
# Fused post-tree kernel: Para_LSTM (batched over paragraphs) + body_LSTM +
# Similarity MLP in a single pallas_call (whole working set << 1 MiB VMEM).
# ----------------------------------------------------------------------------
def _doc_head_kernel(sent_enc_ref, para_mask_ref, para_pad_ref, rvec_ref,
                     p_wih_ref, p_whh_ref, p_b_ref,
                     b_wih_ref, b_whh_ref, b_b_ref,
                     w_wh_ref, b_wh_ref, w_wp_ref, b_wp_ref, out_ref):
    f32 = jnp.float32
    M = MEM_DIM
    P, S, _ = sent_enc_ref.shape

    def lstm_step(xt, h, c, wih, whh, b):          # PyTorch gate order i,f,g,o
        g = (jnp.dot(xt, wih, preferred_element_type=f32) + b
             + jnp.dot(h, whh, preferred_element_type=f32))
        i = jax.nn.sigmoid(g[:, :M])
        f = jax.nn.sigmoid(g[:, M:2 * M])
        gg = jnp.tanh(g[:, 2 * M:3 * M])
        o = jax.nn.sigmoid(g[:, 3 * M:])
        c = f * c + i * gg
        h = o * jnp.tanh(c)
        return h, c

    # Para_LSTM: paragraphs batched (batch = P), seq over S sentences.
    x = sent_enc_ref[...]                          # (P, S, M)
    pwih = p_wih_ref[...]; pwhh = p_whh_ref[...]; pb = p_b_ref[...]
    h = jnp.zeros((P, M), f32)
    c = jnp.zeros((P, M), f32)
    for t in range(S):                             # static, tiny -> unrolled
        h, c = lstm_step(x[:, t, :], h, c, pwih, pwhh, pb)

    # Missing paragraphs take para_pad directly (the reference never runs the
    # Para_LSTM for them); exact select, no blending.
    para_enc = jnp.where(para_mask_ref[...] > 0.5, h, para_pad_ref[...])   # (P, M)

    # body_LSTM: seq over P paragraphs, batch = 1.
    bwih = b_wih_ref[...]; bwhh = b_whh_ref[...]; bb = b_b_ref[...]
    hb = jnp.zeros((1, M), f32)
    cb = jnp.zeros((1, M), f32)
    for t in range(P):
        hb, cb = lstm_step(para_enc[t:t + 1, :], hb, cb, bwih, bwhh, bb)

    # Similarity MLP on a single lane-dense feature row [mult | abs | l | r].
    l = hb                                         # h_body
    r = rvec_ref[...]                              # rhidden (headline root_c)
    feats = jnp.concatenate([l * r, jnp.abs(l - r), l, r], axis=1)     # (1, 4M)
    hid = jax.nn.sigmoid(jnp.dot(feats, w_wh_ref[...],
                                 preferred_element_type=f32) + b_wh_ref[...])
    out_ref[...] = jnp.dot(hid, w_wp_ref[...],
                           preferred_element_type=f32) + b_wp_ref[...]


@jax.jit
def _doc_head_run(sent_enc, para_mask, para_pad, rvec, para_p, body_p, sim_p):
    return pl.pallas_call(
        _doc_head_kernel,
        out_shape=jax.ShapeDtypeStruct((1, 2), jnp.float32),
    )(sent_enc, para_mask, para_pad, rvec,
      para_p['wih'], para_p['whh'], para_p['b'],
      body_p['wih'], body_p['whh'], body_p['b'],
      sim_p['w_wh'], sim_p['b_wh'], sim_p['w_wp'], sim_p['b_wp'])


# ----------------------------------------------------------------------------
# Parameter initialization (deterministic, PyTorch-shaped weights, stored
# transposed and pre-packed lane-dense).
# ----------------------------------------------------------------------------
def _linear_t(key, in_f, out_f, scale=0.1):
    kw, kb = jax.random.split(key)
    w_t = jax.random.normal(kw, (in_f, out_f), jnp.float32) * scale    # W.T
    b = jax.random.normal(kb, (1, out_f), jnp.float32) * scale
    return w_t, b


def init_params(key):
    ks = jax.random.split(key, 16)
    M = MEM_DIM

    w_ioux, b_ioux = _linear_t(ks[0], IN_DIM, 3 * M)
    w_iouh, b_iouh = _linear_t(ks[1], M, 3 * M)
    wfx, bfx = _linear_t(ks[2], IN_DIM, M)
    wfh, bfh = _linear_t(ks[3], M, M)
    # W / U / small_w of the attention branch and word_pad are mathematically
    # dead (softmax over a size-1 axis == 1), so they are not materialized.
    wWa, bWa = _linear_t(ks[4], M, M)
    tree = dict(
        wx=jnp.concatenate([w_ioux, wfx], axis=1),   # (IN_DIM, 4M) : [i|o|u|fx]
        bx=jnp.concatenate([b_ioux, bfx], axis=1),   # (1, 4M)
        wh=jnp.concatenate([w_iouh, wfh], axis=1),   # (M, 4M)     : [i|o|u|fh]
        bh=jnp.concatenate([b_iouh, bfh], axis=1),   # (1, 4M)
        wwa=wWa, bwa=bWa)

    def lstm_params(k):
        k1, k2, k3, k4 = jax.random.split(k, 4)
        return dict(
            wih=jax.random.normal(k1, (M, 4 * M), jnp.float32) * 0.1,   # W_ih.T
            whh=jax.random.normal(k2, (M, 4 * M), jnp.float32) * 0.1,   # W_hh.T
            b=(jax.random.normal(k3, (1, 4 * M), jnp.float32) * 0.1
               + jax.random.normal(k4, (1, 4 * M), jnp.float32) * 0.1))  # b_ih+b_hh

    para_lstm = lstm_params(ks[8])
    body_lstm = lstm_params(ks[9])

    w_wh, b_wh = _linear_t(ks[10], 4 * M, HIDDEN_DIM)   # feature order [mult|abs|l|r]
    w_wp, b_wp = _linear_t(ks[11], HIDDEN_DIM, 2)
    sim = dict(w_wh=w_wh, b_wh=b_wh, w_wp=w_wp, b_wp=b_wp)

    emb = jax.random.normal(ks[12], (VOCAB_SIZE, IN_DIM), jnp.float32) * 0.1
    emb = emb.at[PAD_IDX].set(0.0)                      # padding_idx
    sent_pad = jax.random.normal(ks[13], (1, MEM_DIM), jnp.float32)
    para_pad = jax.random.normal(ks[14], (1, MEM_DIM), jnp.float32)

    return dict(tree=tree, para_lstm=para_lstm, body_lstm=body_lstm, sim=sim,
                emb=emb, sent_pad=sent_pad, para_pad=para_pad)


# ----------------------------------------------------------------------------
# Host-side glue: BFS + topology tables (data-dependent -> stays in Python).
# ----------------------------------------------------------------------------
def _count_nodes(tree):
    n, stack = 0, [tree]
    while stack:
        nd = stack.pop(); n += 1; stack.extend(nd.children)
    return n


def _max_children(tree):
    m, stack = 0, [tree]
    while stack:
        nd = stack.pop(); m = max(m, nd.num_children); stack.extend(nd.children)
    return m


def _tree_tables(tree, sent_np, max_nodes, maxc):
    # BFS exactly as in the reference, then reversed: children before parents,
    # root last.  Real nodes are packed at the END so the root always sits at
    # position max_nodes-1; leading positions are PAD-token padding leaves.
    node_list = [tree]
    start, end = 0, 1
    while start != end:
        for i in range(start, end):
            if node_list[i].num_children > 0:
                node_list += node_list[i].children
        start, end = end, len(node_list)
    order = node_list[::-1]
    n = len(order)
    off = max_nodes - n
    pos = {id(nd): off + p for p, nd in enumerate(order)}
    sentinel = max_nodes                               # permanently-zero state row
    child_idx = np.full((max_nodes, maxc), sentinel, np.int32)
    tokens = np.full((max_nodes,), PAD_IDX, np.int32)
    for p, nd in enumerate(order):
        q = off + p
        tokens[q] = int(sent_np[nd.idx])
        assert nd.num_children <= maxc
        for k, ch in enumerate(nd.children):
            child_idx[q, k] = pos[id(ch)]
    return child_idx, tokens


def similarity_treelstm_forward(params, body, feature_vec=None):
    # TODO(synk): domain_feature=True branch (concat of a python feature_vec) is
    # not exercised here; only the domain_feature=False path is implemented.
    blist = body['body_list']

    # ---- host: collect headline + sentence trees (structure handling) -------
    trees = [(body['headline']['rtree'], np.asarray(body['headline']['rsent']))]
    slots = []                                         # (paragraph, sentence) per tree 1..
    n_para = 0
    for p_id in blist:
        if n_para >= MAX_NUM_PARA:
            break
        for s_i, (ltree, lsent) in enumerate(blist[p_id]):
            if s_i >= MAX_NUM_SENT:
                break                                  # extra sentences are dead downstream
            trees.append((ltree, np.asarray(lsent)))
            slots.append((n_para, s_i))
        n_para += 1

    num_trees = len(trees)
    max_nodes = max(8, -(-max(_count_nodes(tr) for tr, _ in trees) // 8) * 8)
    maxc = max(1, max(_max_children(tr) for tr, _ in trees))

    cidx = np.empty((num_trees, max_nodes, maxc), np.int32)
    toks = np.empty((num_trees, max_nodes), np.int32)
    for i, (tr, sent_np) in enumerate(trees):
        cidx[i], toks[i] = _tree_tables(tr, sent_np, max_nodes, maxc)
    indicators = np.zeros((num_trees,), np.int32)
    indicators[1:] = 1                                 # headline = 0, sentences = 1

    # ---- device: embedding gather (glue) + one fused tree kernel ------------
    x_all = jnp.take(params['emb'], jnp.asarray(toks), axis=0)   # (T, max_nodes, IN_DIM)
    root_c = _trees_run(jnp.asarray(cidx.reshape(-1)), jnp.asarray(indicators),
                        x_all, params['tree']).reshape(num_trees, MEM_DIM)

    rvec = root_c[0:1, :]                              # rhidden = headline root_c

    # Scatter sentence encodings into the padded (P, S, M) slab (glue).
    sent_enc = jnp.broadcast_to(params['sent_pad'],
                                (MAX_NUM_PARA, MAX_NUM_SENT, MEM_DIM))
    for i, (p, s) in enumerate(slots):
        sent_enc = sent_enc.at[p, s, :].set(root_c[i + 1])
    para_mask = np.zeros((MAX_NUM_PARA, MEM_DIM), np.float32)
    para_mask[:n_para] = 1.0

    # ---- device: fused Para_LSTM + body_LSTM + Similarity MLP ---------------
    return _doc_head_run(sent_enc, jnp.asarray(para_mask), params['para_pad'],
                         rvec, params['para_lstm'], params['body_lstm'],
                         params['sim'])


# ----------------------------------------------------------------------------
if __name__ == "__main__":
    key = jax.random.PRNGKey(0)
    pkey, dkey = jax.random.split(key)
    params = init_params(pkey)
    dks = jax.random.split(dkey, 8)

    # headline: 5 tokens, small tree
    h_root = Tree(0, [Tree(1, [Tree(3), Tree(4)]), Tree(2)])
    rsent = jax.random.randint(dks[0], (5,), 1, VOCAB_SIZE)

    # paragraph 1: two sentences
    treeA = Tree(0, [Tree(1), Tree(2), Tree(3)])
    sentA = jax.random.randint(dks[1], (4,), 1, VOCAB_SIZE)
    treeB = Tree(0, [Tree(1, [Tree(2)])])
    sentB = jax.random.randint(dks[2], (3,), 1, VOCAB_SIZE)

    # paragraph 2: one sentence
    treeC = Tree(0, [Tree(1), Tree(2, [Tree(3), Tree(4), Tree(5)])])
    sentC = jax.random.randint(dks[3], (6,), 1, VOCAB_SIZE)

    body = {
        'headline': {'rtree': h_root, 'rsent': rsent},
        'body_list': {
            'p1': [(treeA, sentA), (treeB, sentB)],
            'p2': [(treeC, sentC)],
        },
    }

    out = similarity_treelstm_forward(params, body)
    out = jax.block_until_ready(out)
    assert out.shape == (1, 2) and out.dtype == jnp.float32
    print("KERNEL_OK")
</pallas_src>

<mosaic_0001>
module attributes {stable_mosaic.version = 11 : i64} {
  func.func @_tree_batch_kernel(%arg0: i32, %arg1: memref<96xi32, #tpu.memory_space<smem>>, %arg2: memref<4xi32, #tpu.memory_space<smem>>, %arg3: memref<1x8x32xf32, #tpu.memory_space<vmem>>, %arg4: memref<32x128xf32, #tpu.memory_space<vmem>>, %arg5: memref<32x128xf32, #tpu.memory_space<vmem>>, %arg6: memref<1x128xf32, #tpu.memory_space<vmem>>, %arg7: memref<1x128xf32, #tpu.memory_space<vmem>>, %arg8: memref<32x32xf32, #tpu.memory_space<vmem>>, %arg9: memref<1x32xf32, #tpu.memory_space<vmem>>, %arg10: memref<1x1x32xf32, #tpu.memory_space<vmem>>, %arg11: memref<9x32xf32, #tpu.memory_space<vmem>>, %arg12: memref<9x32xf32, #tpu.memory_space<vmem>>) attributes {dimension_semantics = [#tpu.dimension_semantics<parallel>], iteration_bounds = array<i64: 4>, scalar_prefetch = 2 : i64, scratch_operands = 2 : i64, tpu.core_type = #tpu.core_type<tc>, window_params = [{transform_indices = @transform_0, window_bounds = array<i64: 1, 8, 32>}, {pipeline_mode = #tpu.pipeline_mode<synchronous>, transform_indices = @transform_1, window_bounds = array<i64: 32, 128>}, {pipeline_mode = #tpu.pipeline_mode<synchronous>, transform_indices = @transform_2, window_bounds = array<i64: 32, 128>}, {pipeline_mode = #tpu.pipeline_mode<synchronous>, transform_indices = @transform_3, window_bounds = array<i64: 1, 128>}, {pipeline_mode = #tpu.pipeline_mode<synchronous>, transform_indices = @transform_4, window_bounds = array<i64: 1, 128>}, {pipeline_mode = #tpu.pipeline_mode<synchronous>, transform_indices = @transform_5, window_bounds = array<i64: 32, 32>}, {pipeline_mode = #tpu.pipeline_mode<synchronous>, transform_indices = @transform_6, window_bounds = array<i64: 1, 32>}, {transform_indices = @transform_7, window_bounds = array<i64: 1, 1, 32>}]} {
    %cst = arith.constant 0.000000e+00 : f32
    %0 = vector.broadcast %cst : f32 to vector<1x32xf32>
    %c8 = arith.constant 8 : index
    %c0 = arith.constant 0 : index
    %1 = vector.load %arg11[%c8, %c0] : memref<9x32xf32, #tpu.memory_space<vmem>>, vector<1x32xf32>
    tpu.vector_store %arg11[%c8, %c0], %0 {strides = array<i32>} : memref<9x32xf32, #tpu.memory_space<vmem>>, vector<1x32xf32>,
    %c8_0 = arith.constant 8 : index
    %c0_1 = arith.constant 0 : index
    %2 = vector.load %arg12[%c8_0, %c0_1] : memref<9x32xf32, #tpu.memory_space<vmem>>, vector<1x32xf32>
    tpu.vector_store %arg12[%c8_0, %c0_1], %0 {strides = array<i32>} : memref<9x32xf32, #tpu.memory_space<vmem>>, vector<1x32xf32>,
    %c0_2 = arith.constant 0 : index
    %c0_3 = arith.constant 0 : index
    %3 = vector.load %arg4[%c0_2, %c0_3] : memref<32x128xf32, #tpu.memory_space<vmem>>, vector<32x128xf32>
    %c0_4 = arith.constant 0 : index
    %c0_5 = arith.constant 0 : index
    %4 = vector.load %arg5[%c0_4, %c0_5] : memref<32x128xf32, #tpu.memory_space<vmem>>, vector<32x128xf32>
    %c0_6 = arith.constant 0 : index
    %c0_7 = arith.constant 0 : index
    %5 = vector.load %arg7[%c0_6, %c0_7] : memref<1x128xf32, #tpu.memory_space<vmem>>, vector<1x128xf32>
    %c0_8 = arith.constant 0 : index
    %c0_9 = arith.constant 0 : index
    %6 = vector.load %arg8[%c0_8, %c0_9] : memref<32x32xf32, #tpu.memory_space<vmem>>, vector<32x32xf32>
    %c0_10 = arith.constant 0 : index
    %c0_11 = arith.constant 0 : index
    %7 = vector.load %arg9[%c0_10, %c0_11] : memref<1x32xf32, #tpu.memory_space<vmem>>, vector<1x32xf32>
    %c0_12 = arith.constant 0 : index
    %c0_13 = arith.constant 0 : index
    %c0_14 = arith.constant 0 : index
    %8 = vector.load %arg3[%c0_12, %c0_13, %c0_14] : memref<1x8x32xf32, #tpu.memory_space<vmem>>, vector<1x8x32xf32>
    %9 = vector.shape_cast %8 : vector<1x8x32xf32> to vector<8x32xf32>
    %cst_15 = arith.constant dense<0.000000e+00> : vector<8x128xf32>
    %10 = tpu.matmul %9, %3, %cst_15 {dimension_numbers = #tpu.dot_dimension_numbers<[1], [0], [0], [1], [0, 0, 1, 1], [], []>} : vector<8x32xf32>, vector<32x128xf32>, vector<8x128xf32> -> vector<8x128xf32>
    %c0_16 = arith.constant 0 : index
    %c0_17 = arith.constant 0 : index
    %11 = vector.load %arg6[%c0_16, %c0_17] : memref<1x128xf32, #tpu.memory_space<vmem>>, vector<1x128xf32>
    %12 = vector.broadcast %11 : vector<1x128xf32> to vector<8x128xf32>
    %13 = arith.addf %10, %12 : vector<8x128xf32>
    %14 = arith.index_cast %arg0 : i32 to index
    %15 = memref.load %arg2[%14] : memref<4xi32, #tpu.memory_space<smem>>
    %16 = vector.broadcast %15 : i32 to vector<1x32xi32>
    %c1_i32 = arith.constant 1 : i32
    %17 = vector.broadcast %c1_i32 : i32 to vector<1x32xi32>
    %18 = arith.cmpi eq, %16, %17 : vector<1x32xi32>
    %c24_i32 = arith.constant 24 : i32
    %19 = arith.muli %arg0, %c24_i32 : i32
    %c0_i32 = arith.constant 0 : i32
    %20 = arith.addi %19, %c0_i32 : i32
    %c0_i32_18 = arith.constant 0 : i32
    %21 = arith.addi %20, %c0_i32_18 : i32
    %22 = arith.index_cast %21 : i32 to index
    %23 = memref.load %arg1[%22] : memref<96xi32, #tpu.memory_space<smem>>
    %24 = arith.index_cast %23 : i32 to index
    %c0_19 = arith.constant 0 : index
    %25 = vector.load %arg11[%24, %c0_19] : memref<9x32xf32, #tpu.memory_space<vmem>>, vector<1x32xf32>
    %26 = arith.index_cast %23 : i32 to index
    %c0_20 = arith.constant 0 : index
    %27 = vector.load %arg12[%26, %c0_20] : memref<9x32xf32, #tpu.memory_space<vmem>>, vector<1x32xf32>
    %c0_i32_21 = arith.constant 0 : i32
    %28 = arith.addi %19, %c0_i32_21 : i32
    %c1_i32_22 = arith.constant 1 : i32
    %29 = arith.addi %28, %c1_i32_22 : i32
    %30 = arith.index_cast %29 : i32 to index
    %31 = memref.load %arg1[%30] : memref<96xi32, #tpu.memory_space<smem>>
    %32 = arith.index_cast %31 : i32 to index
    %c0_23 = arith.constant 0 : index
    %33 = vector.load %arg11[%32, %c0_23] : memref<9x32xf32, #tpu.memory_space<vmem>>, vector<1x32xf32>
    %34 = arith.index_cast %31 : i32 to index
    %c0_24 = arith.constant 0 : index
    %35 = vector.load %arg12[%34, %c0_24] : memref<9x32xf32, #tpu.memory_space<vmem>>, vector<1x32xf32>
    %c0_i32_25 = arith.constant 0 : i32
    %36 = arith.addi %19, %c0_i32_25 : i32
    %c2_i32 = arith.constant 2 : i32
    %37 = arith.addi %36, %c2_i32 : i32
    %38 = arith.index_cast %37 : i32 to index
    %39 = memref.load %arg1[%38] : memref<96xi32, #tpu.memory_space<smem>>
    %40 = arith.index_cast %39 : i32 to index
    %c0_26 = arith.constant 0 : index
    %41 = vector.load %arg11[%40, %c0_26] : memref<9x32xf32, #tpu.memory_space<vmem>>, vector<1x32xf32>
    %42 = arith.index_cast %39 : i32 to index
    %c0_27 = arith.constant 0 : index
    %43 = vector.load %arg12[%42, %c0_27] : memref<9x32xf32, #tpu.memory_space<vmem>>, vector<1x32xf32>
    %44 = tpu.concatenate %25, %33, %41 in 0 : vector<1x32xf32>, vector<1x32xf32>, vector<1x32xf32> -> vector<3x32xf32>
    %45 = tpu.concatenate %27, %35, %43 in 0 : vector<1x32xf32>, vector<1x32xf32>, vector<1x32xf32> -> vector<3x32xf32>
    %cst_28 = arith.constant dense<0.000000e+00> : vector<32xf32>
    %46 = vector.multi_reduction <add>, %45, %cst_28 [0] : vector<3x32xf32> to vector<32xf32>
    %47 = vector.shape_cast %46 : vector<32xf32> to vector<1x32xf32>
    %cst_29 = arith.constant dense<0.000000e+00> : vector<1x32xf32>
    %48 = tpu.matmul %47, %6, %cst_29 {dimension_numbers = #tpu.dot_dimension_numbers<[1], [0], [0], [1], [0, 0, 1, 1], [], []>} : vector<1x32xf32>, vector<32x32xf32>, vector<1x32xf32> -> vector<1x32xf32>
    %49 = arith.addf %48, %7 : vector<1x32xf32>
    %50 = arith.select %18, %49, %47 : vector<1x32xi1>, vector<1x32xf32>
    %51 = vector.extract_strided_slice %13 {offsets = [0, 0], sizes = [1, 128], strides = [1, 1]} : vector<8x128xf32> to vector<1x128xf32>
    %52 = tpu.concatenate %50, %45 in 0 : vector<1x32xf32>, vector<3x32xf32> -> vector<4x32xf32>
    %cst_30 = arith.constant dense<0.000000e+00> : vector<4x128xf32>
    %53 = tpu.matmul %52, %4, %cst_30 {dimension_numbers = #tpu.dot_dimension_numbers<[1], [0], [0], [1], [0, 0, 1, 1], [], []>} : vector<4x32xf32>, vector<32x128xf32>, vector<4x128xf32> -> vector<4x128xf32>
    %54 = vector.broadcast %5 : vector<1x128xf32> to vector<4x128xf32>
    %55 = arith.addf %53, %54 : vector<4x128xf32>
    %56 = vector.extract_strided_slice %51 {offsets = [0, 0], sizes = [1, 32], strides = [1, 1]} : vector<1x128xf32> to vector<1x32xf32>
    %57 = vector.extract_strided_slice %55 {offsets = [0, 0], sizes = [1, 32], strides = [1, 1]} : vector<4x128xf32> to vector<1x32xf32>
    %58 = arith.addf %56, %57 : vector<1x32xf32>
    %59 = arith.negf %58 : vector<1x32xf32>
    %60 = math.exp %59 : vector<1x32xf32>
    %cst_31 = arith.constant 1.000000e+00 : f32
    %61 = vector.broadcast %cst_31 : f32 to vector<1x32xf32>
    %62 = arith.addf %61, %60 : vector<1x32xf32>
    %63 = arith.divf %61, %62 : vector<1x32xf32>
    %64 = vector.extract_strided_slice %51 {offsets = [0, 32], sizes = [1, 32], strides = [1, 1]} : vector<1x128xf32> to vector<1x32xf32>
    %65 = vector.extract_strided_slice %55 {offsets = [0, 32], sizes = [1, 32], strides = [1, 1]} : vector<4x128xf32> to vector<1x32xf32>
    %66 = arith.addf %64, %65 : vector<1x32xf32>
    %67 = arith.negf %66 : vector<1x32xf32>
    %68 = math.exp %67 : vector<1x32xf32>
    %cst_32 = arith.constant 1.000000e+00 : f32
    %69 = vector.broadcast %cst_32 : f32 to vector<1x32xf32>
    %70 = arith.addf %69, %68 : vector<1x32xf32>
    %71 = arith.divf %69, %70 : vector<1x32xf32>
    %72 = vector.extract_strided_slice %51 {offsets = [0, 64], sizes = [1, 32], strides = [1, 1]} : vector<1x128xf32> to vector<1x32xf32>
    %73 = vector.extract_strided_slice %55 {offsets = [0, 64], sizes = [1, 32], strides = [1, 1]} : vector<4x128xf32> to vector<1x32xf32>
    %74 = arith.addf %72, %73 : vector<1x32xf32>
    %75 = math.tanh %74 : vector<1x32xf32>
    %76 = vector.extract_strided_slice %55 {offsets = [1, 96], sizes = [3, 32], strides = [1, 1]} : vector<4x128xf32> to vector<3x32xf32>
    %77 = vector.extract_strided_slice %51 {offsets = [0, 96], sizes = [1, 32], strides = [1, 1]} : vector<1x128xf32> to vector<1x32xf32>
    %78 = vector.broadcast %77 : vector<1x32xf32> to vector<3x32xf32>
    %79 = arith.addf %76, %78 : vector<3x32xf32>
    %80 = arith.negf %79 : vector<3x32xf32>
    %81 = math.exp %80 : vector<3x32xf32>
    %cst_33 = arith.constant 1.000000e+00 : f32
    %82 = vector.broadcast %cst_33 : f32 to vector<3x32xf32>
    %83 = arith.addf %82, %81 : vector<3x32xf32>
    %84 = arith.divf %82, %83 : vector<3x32xf32>
    %85 = arith.mulf %63, %75 : vector<1x32xf32>
    %86 = arith.mulf %84, %44 : vector<3x32xf32>
    %cst_34 = arith.constant dense<0.000000e+00> : vector<32xf32>
    %87 = vector.multi_reduction <add>, %86, %cst_34 [0] : vector<3x32xf32> to vector<32xf32>
    %88 = vector.shape_cast %87 : vector<32xf32> to vector<1x32xf32>
    %89 = arith.addf %85, %88 : vector<1x32xf32>
    %90 = math.tanh %89 : vector<1x32xf32>
    %91 = arith.mulf %71, %90 : vector<1x32xf32>
    %c0_35 = arith.constant 0 : index
    %c0_36 = arith.constant 0 : index
    %92 = vector.load %arg11[%c0_35, %c0_36] : memref<9x32xf32, #tpu.memory_space<vmem>>, vector<1x32xf32>
    tpu.vector_store %arg11[%c0_35, %c0_36], %91 {strides = array<i32>} : memref<9x32xf32, #tpu.memory_space<vmem>>, vector<1x32xf32>,
    %c0_37 = arith.constant 0 : index
    %c0_38 = arith.constant 0 : index
    %93 = vector.load %arg12[%c0_37, %c0_38] : memref<9x32xf32, #tpu.memory_space<vmem>>, vector<1x32xf32>
    tpu.vector_store %arg12[%c0_37, %c0_38], %89 {strides = array<i32>} : memref<9x32xf32, #tpu.memory_space<vmem>>, vector<1x32xf32>,
    %c3_i32 = arith.constant 3 : i32
    %94 = arith.addi %19, %c3_i32 : i32
    %c0_i32_39 = arith.constant 0 : i32
    %95 = arith.addi %94, %c0_i32_39 : i32
    %96 = arith.index_cast %95 : i32 to index
    %97 = memref.load %arg1[%96] : memref<96xi32, #tpu.memory_space<smem>>
    %98 = arith.index_cast %97 : i32 to index
    %c0_40 = arith.constant 0 : index
    %99 = vector.load %arg11[%98, %c0_40] : memref<9x32xf32, #tpu.memory_space<vmem>>, vector<1x32xf32>
    %100 = arith.index_cast %97 : i32 to index
    %c0_41 = arith.constant 0 : index
    %101 = vector.load %arg12[%100, %c0_41] : memref<9x32xf32, #tpu.memory_space<vmem>>, vector<1x32xf32>
    %c3_i32_42 = arith.constant 3 : i32
    %102 = arith.addi %19, %c3_i32_42 : i32
    %c1_i32_43 = arith.constant 1 : i32
    %103 = arith.addi %102, %c1_i32_43 : i32
    %104 = arith.index_cast %103 : i32 to index
    %105 = memref.load %arg1[%104] : memref<96xi32, #tpu.memory_space<smem>>
    %106 = arith.index_cast %105 : i32 to index
    %c0_44 = arith.constant 0 : index
    %107 = vector.load %arg11[%106, %c0_44] : memref<9x32xf32, #tpu.memory_space<vmem>>, vector<1x32xf32>
    %108 = arith.index_cast %105 : i32 to index
    %c0_45 = arith.constant 0 : index
    %109 = vector.load %arg12[%108, %c0_45] : memref<9x32xf32, #tpu.memory_space<vmem>>, vector<1x32xf32>
    %c3_i32_46 = arith.constant 3 : i32
    %110 = arith.addi %19, %c3_i32_46 : i32
    %c2_i32_47 = arith.constant 2 : i32
    %111 = arith.addi %110, %c2_i32_47 : i32
    %112 = arith.index_cast %111 : i32 to index
    %113 = memref.load %arg1[%112] : memref<96xi32, #tpu.memory_space<smem>>
    %114 = arith.index_cast %113 : i32 to index
    %c0_48 = arith.constant 0 : index
    %115 = vector.load %arg11[%114, %c0_48] : memref<9x32xf32, #tpu.memory_space<vmem>>, vector<1x32xf32>
    %116 = arith.index_cast %113 : i32 to index
    %c0_49 = arith.constant 0 : index
    %117 = vector.load %arg12[%116, %c0_49] : memref<9x32xf32, #tpu.memory_space<vmem>>, vector<1x32xf32>
    %118 = tpu.concatenate %99, %107, %115 in 0 : vector<1x32xf32>, vector<1x32xf32>, vector<1x32xf32> -> vector<3x32xf32>
    %119 = tpu.concatenate %101, %109, %117 in 0 : vector<1x32xf32>, vector<1x32xf32>, vector<1x32xf32> -> vector<3x32xf32>
    %cst_50 = arith.constant dense<0.000000e+00> : vector<32xf32>
    %120 = vector.multi_reduction <add>, %119, %cst_50 [0] : vector<3x32xf32> to vector<32xf32>
    %121 = vector.shape_cast %120 : vector<32xf32> to vector<1x32xf32>
    %cst_51 = arith.constant dense<0.000000e+00> : vector<1x32xf32>
    %122 = tpu.matmul %121, %6, %cst_51 {dimension_numbers = #tpu.dot_dimension_numbers<[1], [0], [0], [1], [0, 0, 1, 1], [], []>} : vector<1x32xf32>, vector<32x32xf32>, vector<1x32xf32> -> vector<1x32xf32>
    %123 = arith.addf %122, %7 : vector<1x32xf32>
    %124 = arith.select %18, %123, %121 : vector<1x32xi1>, vector<1x32xf32>
    %125 = vector.extract_strided_slice %13 {offsets = [1, 0], sizes = [1, 128], strides = [1, 1]} : vector<8x128xf32> to vector<1x128xf32>
    %126 = tpu.concatenate %124, %119 in 0 : vector<1x32xf32>, vector<3x32xf32> -> vector<4x32xf32>
    %cst_52 = arith.constant dense<0.000000e+00> : vector<4x128xf32>
    %127 = tpu.matmul %126, %4, %cst_52 {dimension_numbers = #tpu.dot_dimension_numbers<[1], [0], [0], [1], [0, 0, 1, 1], [], []>} : vector<4x32xf32>, vector<32x128xf32>, vector<4x128xf32> -> vector<4x128xf32>
    %128 = vector.broadcast %5 : vector<1x128xf32> to vector<4x128xf32>
    %129 = arith.addf %127, %128 : vector<4x128xf32>
    %130 = vector.extract_strided_slice %125 {offsets = [0, 0], sizes = [1, 32], strides = [1, 1]} : vector<1x128xf32> to vector<1x32xf32>
    %131 = vector.extract_strided_slice %129 {offsets = [0, 0], sizes = [1, 32], strides = [1, 1]} : vector<4x128xf32> to vector<1x32xf32>
    %132 = arith.addf %130, %131 : vector<1x32xf32>
    %133 = arith.negf %132 : vector<1x32xf32>
    %134 = math.exp %133 : vector<1x32xf32>
    %cst_53 = arith.constant 1.000000e+00 : f32
    %135 = vector.broadcast %cst_53 : f32 to vector<1x32xf32>
    %136 = arith.addf %135, %134 : vector<1x32xf32>
    %137 = arith.divf %135, %136 : vector<1x32xf32>
    %138 = vector.extract_strided_slice %125 {offsets = [0, 32], sizes = [1, 32], strides = [1, 1]} : vector<1x128xf32> to vector<1x32xf32>
    %139 = vector.extract_strided_slice %129 {offsets = [0, 32], sizes = [1, 32], strides = [1, 1]} : vector<4x128xf32> to vector<1x32xf32>
    %140 = arith.addf %138, %139 : vector<1x32xf32>
    %141 = arith.negf %140 : vector<1x32xf32>
    %142 = math.exp %141 : vector<1x32xf32>
    %cst_54 = arith.constant 1.000000e+00 : f32
    %143 = vector.broadcast %cst_54 : f32 to vector<1x32xf32>
    %144 = arith.addf %143, %142 : vector<1x32xf32>
    %145 = arith.divf %143, %144 : vector<1x32xf32>
    %146 = vector.extract_strided_slice %125 {offsets = [0, 64], sizes = [1, 32], strides = [1, 1]} : vector<1x128xf32> to vector<1x32xf32>
    %147 = vector.extract_strided_slice %129 {offsets = [0, 64], sizes = [1, 32], strides = [1, 1]} : vector<4x128xf32> to vector<1x32xf32>
    %148 = arith.addf %146, %147 : vector<1x32xf32>
    %149 = math.tanh %148 : vector<1x32xf32>
    %150 = vector.extract_strided_slice %129 {offsets = [1, 96], sizes = [3, 32], strides = [1, 1]} : vector<4x128xf32> to vector<3x32xf32>
    %151 = vector.extract_strided_slice %125 {offsets = [0, 96], sizes = [1, 32], strides = [1, 1]} : vector<1x128xf32> to vector<1x32xf32>
    %152 = vector.broadcast %151 : vector<1x32xf32> to vector<3x32xf32>
    %153 = arith.addf %150, %152 : vector<3x32xf32>
    %154 = arith.negf %153 : vector<3x32xf32>
    %155 = math.exp %154 : vector<3x32xf32>
    %cst_55 = arith.constant 1.000000e+00 : f32
    %156 = vector.broadcast %cst_55 : f32 to vector<3x32xf32>
    %157 = arith.addf %156, %155 : vector<3x32xf32>
    %158 = arith.divf %156, %157 : vector<3x32xf32>
    %159 = arith.mulf %137, %149 : vector<1x32xf32>
    %160 = arith.mulf %158, %118 : vector<3x32xf32>
    %cst_56 = arith.constant dense<0.000000e+00> : vector<32xf32>
    %161 = vector.multi_reduction <add>, %160, %cst_56 [0] : vector<3x32xf32> to vector<32xf32>
    %162 = vector.shape_cast %161 : vector<32xf32> to vector<1x32xf32>
    %163 = arith.addf %159, %162 : vector<1x32xf32>
    %164 = math.tanh %163 : vector<1x32xf32>
    %165 = arith.mulf %145, %164 : vector<1x32xf32>
    %c1 = arith.constant 1 : index
    %c0_57 = arith.constant 0 : index
    %166 = vector.load %arg11[%c1, %c0_57] : memref<9x32xf32, #tpu.memory_space<vmem>>, vector<1x32xf32>
    tpu.vector_store %arg11[%c1, %c0_57], %165 {strides = array<i32>} : memref<9x32xf32, #tpu.memory_space<vmem>>, vector<1x32xf32>,
    %c1_58 = arith.constant 1 : index
    %c0_59 = arith.constant 0 : index
    %167 = vector.load %arg12[%c1_58, %c0_59] : memref<9x32xf32, #tpu.memory_space<vmem>>, vector<1x32xf32>
    tpu.vector_store %arg12[%c1_58, %c0_59], %163 {strides = array<i32>} : memref<9x32xf32, #tpu.memory_space<vmem>>, vector<1x32xf32>,
    %c6_i32 = arith.constant 6 : i32
    %168 = arith.addi %19, %c6_i32 : i32
    %c0_i32_60 = arith.constant 0 : i32
    %169 = arith.addi %168, %c0_i32_60 : i32
    %170 = arith.index_cast %169 : i32 to index
    %171 = memref.load %arg1[%170] : memref<96xi32, #tpu.memory_space<smem>>
    %172 = arith.index_cast %171 : i32 to index
    %c0_61 = arith.constant 0 : index
    %173 = vector.load %arg11[%172, %c0_61] : memref<9x32xf32, #tpu.memory_space<vmem>>, vector<1x32xf32>
    %174 = arith.index_cast %171 : i32 to index
    %c0_62 = arith.constant 0 : index
    %175 = vector.load %arg12[%174, %c0_62] : memref<9x32xf32, #tpu.memory_space<vmem>>, vector<1x32xf32>
    %c6_i32_63 = arith.constant 6 : i32
    %176 = arith.addi %19, %c6_i32_63 : i32
    %c1_i32_64 = arith.constant 1 : i32
    %177 = arith.addi %176, %c1_i32_64 : i32
    %178 = arith.index_cast %177 : i32 to index
    %179 = memref.load %arg1[%178] : memref<96xi32, #tpu.memory_space<smem>>
    %180 = arith.index_cast %179 : i32 to index
    %c0_65 = arith.constant 0 : index
    %181 = vector.load %arg11[%180, %c0_65] : memref<9x32xf32, #tpu.memory_space<vmem>>, vector<1x32xf32>
    %182 = arith.index_cast %179 : i32 to index
    %c0_66 = arith.constant 0 : index
    %183 = vector.load %arg12[%182, %c0_66] : memref<9x32xf32, #tpu.memory_space<vmem>>, vector<1x32xf32>
    %c6_i32_67 = arith.constant 6 : i32
    %184 = arith.addi %19, %c6_i32_67 : i32
    %c2_i32_68 = arith.constant 2 : i32
    %185 = arith.addi %184, %c2_i32_68 : i32
    %186 = arith.index_cast %185 : i32 to index
    %187 = memref.load %arg1[%186] : memref<96xi32, #tpu.memory_space<smem>>
    %188 = arith.index_cast %187 : i32 to index
    %c0_69 = arith.constant 0 : index
    %189 = vector.load %arg11[%188, %c0_69] : memref<9x32xf32, #tpu.memory_space<vmem>>, vector<1x32xf32>
    %190 = arith.index_cast %187 : i32 to index
    %c0_70 = arith.constant 0 : index
    %191 = vector.load %arg12[%190, %c0_70] : memref<9x32xf32, #tpu.memory_space<vmem>>, vector<1x32xf32>
    %192 = tpu.concatenate %173, %181, %189 in 0 : vector<1x32xf32>, vector<1x32xf32>, vector<1x32xf32> -> vector<3x32xf32>
    %193 = tpu.concatenate %175, %183, %191 in 0 : vector<1x32xf32>, vector<1x32xf32>, vector<1x32xf32> -> vector<3x32xf32>
    %cst_71 = arith.constant dense<0.000000e+00> : vector<32xf32>
    %194 = vector.multi_reduction <add>, %193, %cst_71 [0] : vector<3x32xf32> to vector<32xf32>
    %195 = vector.shape_cast %194 : vector<32xf32> to vector<1x32xf32>
    %cst_72 = arith.constant dense<0.000000e+00> : vector<1x32xf32>
    %196 = tpu.matmul %195, %6, %cst_72 {dimension_numbers = #tpu.dot_dimension_numbers<[1], [0], [0], [1], [0, 0, 1, 1], [], []>} : vector<1x32xf32>, vector<32x32xf32>, vector<1x32xf32> -> vector<1x32xf32>
    %197 = arith.addf %196, %7 : vector<1x32xf32>
    %198 = arith.select %18, %197, %195 : vector<1x32xi1>, vector<1x32xf32>
    %199 = vector.extract_strided_slice %13 {offsets = [2, 0], sizes = [1, 128], strides = [1, 1]} : vector<8x128xf32> to vector<1x128xf32>
    %200 = tpu.concatenate %198, %193 in 0 : vector<1x32xf32>, vector<3x32xf32> -> vector<4x32xf32>
    %cst_73 = arith.constant dense<0.000000e+00> : vector<4x128xf32>
    %201 = tpu.matmul %200, %4, %cst_73 {dimension_numbers = #tpu.dot_dimension_numbers<[1], [0], [0], [1], [0, 0, 1, 1], [], []>} : vector<4x32xf32>, vector<32x128xf32>, vector<4x128xf32> -> vector<4x128xf32>
    %202 = vector.broadcast %5 : vector<1x128xf32> to vector<4x128xf32>
    %203 = arith.addf %201, %202 : vector<4x128xf32>
    %204 = vector.extract_strided_slice %199 {offsets = [0, 0], sizes = [1, 32], strides = [1, 1]} : vector<1x128xf32> to vector<1x32xf32>
    %205 = vector.extract_strided_slice %203 {offsets = [0, 0], sizes = [1, 32], strides = [1, 1]} : vector<4x128xf32> to vector<1x32xf32>
    %206 = arith.addf %204, %205 : vector<1x32xf32>
    %207 = arith.negf %206 : vector<1x32xf32>
    %208 = math.exp %207 : vector<1x32xf32>
    %cst_74 = arith.constant 1.000000e+00 : f32
    %209 = vector.broadcast %cst_74 : f32 to vector<1x32xf32>
    %210 = arith.addf %209, %208 : vector<1x32xf32>
    %211 = arith.divf %209, %210 : vector<1x32xf32>
    %212 = vector.extract_strided_slice %199 {offsets = [0, 32], sizes = [1, 32], strides = [1, 1]} : vector<1x128xf32> to vector<1x32xf32>
    %213 = vector.extract_strided_slice %203 {offsets = [0, 32], sizes = [1, 32], strides = [1, 1]} : vector<4x128xf32> to vector<1x32xf32>
    %214 = arith.addf %212, %213 : vector<1x32xf32>
    %215 = arith.negf %214 : vector<1x32xf32>
    %216 = math.exp %215 : vector<1x32xf32>
    %cst_75 = arith.constant 1.000000e+00 : f32
    %217 = vector.broadcast %cst_75 : f32 to vector<1x32xf32>
    %218 = arith.addf %217, %216 : vector<1x32xf32>
    %219 = arith.divf %217, %218 : vector<1x32xf32>
    %220 = vector.extract_strided_slice %199 {offsets = [0, 64], sizes = [1, 32], strides = [1, 1]} : vector<1x128xf32> to vector<1x32xf32>
    %221 = vector.extract_strided_slice %203 {offsets = [0, 64], sizes = [1, 32], strides = [1, 1]} : vector<4x128xf32> to vector<1x32xf32>
    %222 = arith.addf %220, %221 : vector<1x32xf32>
    %223 = math.tanh %222 : vector<1x32xf32>
    %224 = vector.extract_strided_slice %203 {offsets = [1, 96], sizes = [3, 32], strides = [1, 1]} : vector<4x128xf32> to vector<3x32xf32>
    %225 = vector.extract_strided_slice %199 {offsets = [0, 96], sizes = [1, 32], strides = [1, 1]} : vector<1x128xf32> to vector<1x32xf32>
    %226 = vector.broadcast %225 : vector<1x32xf32> to vector<3x32xf32>
    %227 = arith.addf %224, %226 : vector<3x32xf32>
    %228 = arith.negf %227 : vector<3x32xf32>
    %229 = math.exp %228 : vector<3x32xf32>
    %cst_76 = arith.constant 1.000000e+00 : f32
    %230 = vector.broadcast %cst_76 : f32 to vector<3x32xf32>
    %231 = arith.addf %230, %229 : vector<3x32xf32>
    %232 = arith.divf %230, %231 : vector<3x32xf32>
    %233 = arith.mulf %211, %223 : vector<1x32xf32>
    %234 = arith.mulf %232, %192 : vector<3x32xf32>
    %cst_77 = arith.constant dense<0.000000e+00> : vector<32xf32>
    %235 = vector.multi_reduction <add>, %234, %cst_77 [0] : vector<3x32xf32> to vector<32xf32>
    %236 = vector.shape_cast %235 : vector<32xf32> to vector<1x32xf32>
    %237 = arith.addf %233, %236 : vector<1x32xf32>
    %238 = math.tanh %237 : vector<1x32xf32>
    %239 = arith.mulf %219, %238 : vector<1x32xf32>
    %c2 = arith.constant 2 : index
    %c0_78 = arith.constant 0 : index
    %240 = vector.load %arg11[%c2, %c0_78] : memref<9x32xf32, #tpu.memory_space<vmem>>, vector<1x32xf32>
    tpu.vector_store %arg11[%c2, %c0_78], %239 {strides = array<i32>} : memref<9x32xf32, #tpu.memory_space<vmem>>, vector<1x32xf32>,
    %c2_79 = arith.constant 2 : index
    %c0_80 = arith.constant 0 : index
    %241 = vector.load %arg12[%c2_79, %c0_80] : memref<9x32xf32, #tpu.memory_space<vmem>>, vector<1x32xf32>
    tpu.vector_store %arg12[%c2_79, %c0_80], %237 {strides = array<i32>} : memref<9x32xf32, #tpu.memory_space<vmem>>, vector<1x32xf32>,
    %c9_i32 = arith.constant 9 : i32
    %242 = arith.addi %19, %c9_i32 : i32
    %c0_i32_81 = arith.constant 0 : i32
    %243 = arith.addi %242, %c0_i32_81 : i32
    %244 = arith.index_cast %243 : i32 to index
    %245 = memref.load %arg1[%244] : memref<96xi32, #tpu.memory_space<smem>>
    %246 = arith.index_cast %245 : i32 to index
    %c0_82 = arith.constant 0 : index
    %247 = vector.load %arg11[%246, %c0_82] : memref<9x32xf32, #tpu.memory_space<vmem>>, vector<1x32xf32>
    %248 = arith.index_cast %245 : i32 to index
    %c0_83 = arith.constant 0 : index
    %249 = vector.load %arg12[%248, %c0_83] : memref<9x32xf32, #tpu.memory_space<vmem>>, vector<1x32xf32>
    %c9_i32_84 = arith.constant 9 : i32
    %250 = arith.addi %19, %c9_i32_84 : i32
    %c1_i32_85 = arith.constant 1 : i32
    %251 = arith.addi %250, %c1_i32_85 : i32
    %252 = arith.index_cast %251 : i32 to index
    %253 = memref.load %arg1[%252] : memref<96xi32, #tpu.memory_space<smem>>
    %254 = arith.index_cast %253 : i32 to index
    %c0_86 = arith.constant 0 : index
    %255 = vector.load %arg11[%254, %c0_86] : memref<9x32xf32, #tpu.memory_space<vmem>>, vector<1x32xf32>
    %256 = arith.index_cast %253 : i32 to index
    %c0_87 = arith.constant 0 : index
    %257 = vector.load %arg12[%256, %c0_87] : memref<9x32xf32, #tpu.memory_space<vmem>>, vector<1x32xf32>
    %c9_i32_88 = arith.constant 9 : i32
    %258 = arith.addi %19, %c9_i32_88 : i32
    %c2_i32_89 = arith.constant 2 : i32
    %259 = arith.addi %258, %c2_i32_89 : i32
    %260 = arith.index_cast %259 : i32 to index
    %261 = memref.load %arg1[%260] : memref<96xi32, #tpu.memory_space<smem>>
    %262 = arith.index_cast %261 : i32 to index
    %c0_90 = arith.constant 0 : index
    %263 = vector.load %arg11[%262, %c0_90] : memref<9x32xf32, #tpu.memory_space<vmem>>, vector<1x32xf32>
    %264 = arith.index_cast %261 : i32 to index
    %c0_91 = arith.constant 0 : index
    %265 = vector.load %arg12[%264, %c0_91] : memref<9x32xf32, #tpu.memory_space<vmem>>, vector<1x32xf32>
    %266 = tpu.concatenate %247, %255, %263 in 0 : vector<1x32xf32>, vector<1x32xf32>, vector<1x32xf32> -> vector<3x32xf32>
    %267 = tpu.concatenate %249, %257, %265 in 0 : vector<1x32xf32>, vector<1x32xf32>, vector<1x32xf32> -> vector<3x32xf32>
    %cst_92 = arith.constant dense<0.000000e+00> : vector<32xf32>
    %268 = vector.multi_reduction <add>, %267, %cst_92 [0] : vector<3x32xf32> to vector<32xf32>
    %269 = vector.shape_cast %268 : vector<32xf32> to vector<1x32xf32>
    %cst_93 = arith.constant dense<0.000000e+00> : vector<1x32xf32>
    %270 = tpu.matmul %269, %6, %cst_93 {dimension_numbers = #tpu.dot_dimension_numbers<[1], [0], [0], [1], [0, 0, 1, 1], [], []>} : vector<1x32xf32>, vector<32x32xf32>, vector<1x32xf32> -> vector<1x32xf32>
    %271 = arith.addf %270, %7 : vector<1x32xf32>
    %272 = arith.select %18, %271, %269 : vector<1x32xi1>, vector<1x32xf32>
    %273 = vector.extract_strided_slice %13 {offsets = [3, 0], sizes = [1, 128], strides = [1, 1]} : vector<8x128xf32> to vector<1x128xf32>
    %274 = tpu.concatenate %272, %267 in 0 : vector<1x32xf32>, vector<3x32xf32> -> vector<4x32xf32>
    %cst_94 = arith.constant dense<0.000000e+00> : vector<4x128xf32>
    %275 = tpu.matmul %274, %4, %cst_94 {dimension_numbers = #tpu.dot_dimension_numbers<[1], [0], [0], [1], [0, 0, 1, 1], [], []>} : vector<4x32xf32>, vector<32x128xf32>, vector<4x128xf32> -> vector<4x128xf32>
    %276 = vector.broadcast %5 : vector<1x128xf32> to vector<4x128xf32>
    %277 = arith.addf %275, %276 : vector<4x128xf32>
    %278 = vector.extract_strided_slice %273 {offsets = [0, 0], sizes = [1, 32], strides = [1, 1]} : vector<1x128xf32> to vector<1x32xf32>
    %279 = vector.extract_strided_slice %277 {offsets = [0, 0], sizes = [1, 32], strides = [1, 1]} : vector<4x128xf32> to vector<1x32xf32>
    %280 = arith.addf %278, %279 : vector<1x32xf32>
    %281 = arith.negf %280 : vector<1x32xf32>
    %282 = math.exp %281 : vector<1x32xf32>
    %cst_95 = arith.constant 1.000000e+00 : f32
    %283 = vector.broadcast %cst_95 : f32 to vector<1x32xf32>
    %284 = arith.addf %283, %282 : vector<1x32xf32>
    %285 = arith.divf %283, %284 : vector<1x32xf32>
    %286 = vector.extract_strided_slice %273 {offsets = [0, 32], sizes = [1, 32], strides = [1, 1]} : vector<1x128xf32> to vector<1x32xf32>
    %287 = vector.extract_strided_slice %277 {offsets = [0, 32], sizes = [1, 32], strides = [1, 1]} : vector<4x128xf32> to vector<1x32xf32>
    %288 = arith.addf %286, %287 : vector<1x32xf32>
    %289 = arith.negf %288 : vector<1x32xf32>
    %290 = math.exp %289 : vector<1x32xf32>
    %cst_96 = arith.constant 1.000000e+00 : f32
    %291 = vector.broadcast %cst_96 : f32 to vector<1x32xf32>
    %292 = arith.addf %291, %290 : vector<1x32xf32>
    %293 = arith.divf %291, %292 : vector<1x32xf32>
    %294 = vector.extract_strided_slice %273 {offsets = [0, 64], sizes = [1, 32], strides = [1, 1]} : vector<1x128xf32> to vector<1x32xf32>
    %295 = vector.extract_strided_slice %277 {offsets = [0, 64], sizes = [1, 32], strides = [1, 1]} : vector<4x128xf32> to vector<1x32xf32>
    %296 = arith.addf %294, %295 : vector<1x32xf32>
    %297 = math.tanh %296 : vector<1x32xf32>
    %298 = vector.extract_strided_slice %277 {offsets = [1, 96], sizes = [3, 32], strides = [1, 1]} : vector<4x128xf32> to vector<3x32xf32>
    %299 = vector.extract_strided_slice %273 {offsets = [0, 96], sizes = [1, 32], strides = [1, 1]} : vector<1x128xf32> to vector<1x32xf32>
    %300 = vector.broadcast %299 : vector<1x32xf32> to vector<3x32xf32>
    %301 = arith.addf %298, %300 : vector<3x32xf32>
    %302 = arith.negf %301 : vector<3x32xf32>
    %303 = math.exp %302 : vector<3x32xf32>
    %cst_97 = arith.constant 1.000000e+00 : f32
    %304 = vector.broadcast %cst_97 : f32 to vector<3x32xf32>
    %305 = arith.addf %304, %303 : vector<3x32xf32>
    %306 = arith.divf %304, %305 : vector<3x32xf32>
    %307 = arith.mulf %285, %297 : vector<1x32xf32>
    %308 = arith.mulf %306, %266 : vector<3x32xf32>
    %cst_98 = arith.constant dense<0.000000e+00> : vector<32xf32>
    %309 = vector.multi_reduction <add>, %308, %cst_98 [0] : vector<3x32xf32> to vector<32xf32>
    %310 = vector.shape_cast %309 : vector<32xf32> to vector<1x32xf32>
    %311 = arith.addf %307, %310 : vector<1x32xf32>
    %312 = math.tanh %311 : vector<1x32xf32>
    %313 = arith.mulf %293, %312 : vector<1x32xf32>
    %c3 = arith.constant 3 : index
    %c0_99 = arith.constant 0 : index
    %314 = vector.load %arg11[%c3, %c0_99] : memref<9x32xf32, #tpu.memory_space<vmem>>, vector<1x32xf32>
    tpu.vector_store %arg11[%c3, %c0_99], %313 {strides = array<i32>} : memref<9x32xf32, #tpu.memory_space<vmem>>, vector<1x32xf32>,
    %c3_100 = arith.constant 3 : index
    %c0_101 = arith.constant 0 : index
    %315 = vector.load %arg12[%c3_100, %c0_101] : memref<9x32xf32, #tpu.memory_space<vmem>>, vector<1x32xf32>
    tpu.vector_store %arg12[%c3_100, %c0_101], %311 {strides = array<i32>} : memref<9x32xf32, #tpu.memory_space<vmem>>, vector<1x32xf32>,
    %c12_i32 = arith.constant 12 : i32
    %316 = arith.addi %19, %c12_i32 : i32
    %c0_i32_102 = arith.constant 0 : i32
    %317 = arith.addi %316, %c0_i32_102 : i32
    %318 = arith.index_cast %317 : i32 to index
    %319 = memref.load %arg1[%318] : memref<96xi32, #tpu.memory_space<smem>>
    %320 = arith.index_cast %319 : i32 to index
    %c0_103 = arith.constant 0 : index
    %321 = vector.load %arg11[%320, %c0_103] : memref<9x32xf32, #tpu.memory_space<vmem>>, vector<1x32xf32>
    %322 = arith.index_cast %319 : i32 to index
    %c0_104 = arith.constant 0 : index
    %323 = vector.load %arg12[%322, %c0_104] : memref<9x32xf32, #tpu.memory_space<vmem>>, vector<1x32xf32>
    %c12_i32_105 = arith.constant 12 : i32
    %324 = arith.addi %19, %c12_i32_105 : i32
    %c1_i32_106 = arith.constant 1 : i32
    %325 = arith.addi %324, %c1_i32_106 : i32
    %326 = arith.index_cast %325 : i32 to index
    %327 = memref.load %arg1[%326] : memref<96xi32, #tpu.memory_space<smem>>
    %328 = arith.index_cast %327 : i32 to index
    %c0_107 = arith.constant 0 : index
    %329 = vector.load %arg11[%328, %c0_107] : memref<9x32xf32, #tpu.memory_space<vmem>>, vector<1x32xf32>
    %330 = arith.index_cast %327 : i32 to index
    %c0_108 = arith.constant 0 : index
    %331 = vector.load %arg12[%330, %c0_108] : memref<9x32xf32, #tpu.memory_space<vmem>>, vector<1x32xf32>
    %c12_i32_109 = arith.constant 12 : i32
    %332 = arith.addi %19, %c12_i32_109 : i32
    %c2_i32_110 = arith.constant 2 : i32
    %333 = arith.addi %332, %c2_i32_110 : i32
    %334 = arith.index_cast %333 : i32 to index
    %335 = memref.load %arg1[%334] : memref<96xi32, #tpu.memory_space<smem>>
    %336 = arith.index_cast %335 : i32 to index
    %c0_111 = arith.constant 0 : index
    %337 = vector.load %arg11[%336, %c0_111] : memref<9x32xf32, #tpu.memory_space<vmem>>, vector<1x32xf32>
    %338 = arith.index_cast %335 : i32 to index
    %c0_112 = arith.constant 0 : index
    %339 = vector.load %arg12[%338, %c0_112] : memref<9x32xf32, #tpu.memory_space<vmem>>, vector<1x32xf32>
    %340 = tpu.concatenate %321, %329, %337 in 0 : vector<1x32xf32>, vector<1x32xf32>, vector<1x32xf32> -> vector<3x32xf32>
    %341 = tpu.concatenate %323, %331, %339 in 0 : vector<1x32xf32>, vector<1x32xf32>, vector<1x32xf32> -> vector<3x32xf32>
    %cst_113 = arith.constant dense<0.000000e+00> : vector<32xf32>
    %342 = vector.multi_reduction <add>, %341, %cst_113 [0] : vector<3x32xf32> to vector<32xf32>
    %343 = vector.shape_cast %342 : vector<32xf32> to vector<1x32xf32>
    %cst_114 = arith.constant dense<0.000000e+00> : vector<1x32xf32>
    %344 = tpu.matmul %343, %6, %cst_114 {dimension_numbers = #tpu.dot_dimension_numbers<[1], [0], [0], [1], [0, 0, 1, 1], [], []>} : vector<1x32xf32>, vector<32x32xf32>, vector<1x32xf32> -> vector<1x32xf32>
    %345 = arith.addf %344, %7 : vector<1x32xf32>
    %346 = arith.select %18, %345, %343 : vector<1x32xi1>, vector<1x32xf32>
    %347 = vector.extract_strided_slice %13 {offsets = [4, 0], sizes = [1, 128], strides = [1, 1]} : vector<8x128xf32> to vector<1x128xf32>
    %348 = tpu.concatenate %346, %341 in 0 : vector<1x32xf32>, vector<3x32xf32> -> vector<4x32xf32>
    %cst_115 = arith.constant dense<0.000000e+00> : vector<4x128xf32>
    %349 = tpu.matmul %348, %4, %cst_115 {dimension_numbers = #tpu.dot_dimension_numbers<[1], [0], [0], [1], [0, 0, 1, 1], [], []>} : vector<4x32xf32>, vector<32x128xf32>, vector<4x128xf32> -> vector<4x128xf32>
    %350 = vector.broadcast %5 : vector<1x128xf32> to vector<4x128xf32>
    %351 = arith.addf %349, %350 : vector<4x128xf32>
    %352 = vector.extract_strided_slice %347 {offsets = [0, 0], sizes = [1, 32], strides = [1, 1]} : vector<1x128xf32> to vector<1x32xf32>
    %353 = vector.extract_strided_slice %351 {offsets = [0, 0], sizes = [1, 32], strides = [1, 1]} : vector<4x128xf32> to vector<1x32xf32>
    %354 = arith.addf %352, %353 : vector<1x32xf32>
    %355 = arith.negf %354 : vector<1x32xf32>
    %356 = math.exp %355 : vector<1x32xf32>
    %cst_116 = arith.constant 1.000000e+00 : f32
    %357 = vector.broadcast %cst_116 : f32 to vector<1x32xf32>
    %358 = arith.addf %357, %356 : vector<1x32xf32>
    %359 = arith.divf %357, %358 : vector<1x32xf32>
    %360 = vector.extract_strided_slice %347 {offsets = [0, 32], sizes = [1, 32], strides = [1, 1]} : vector<1x128xf32> to vector<1x32xf32>
    %361 = vector.extract_strided_slice %351 {offsets = [0, 32], sizes = [1, 32], strides = [1, 1]} : vector<4x128xf32> to vector<1x32xf32>
    %362 = arith.addf %360, %361 : vector<1x32xf32>
    %363 = arith.negf %362 : vector<1x32xf32>
    %364 = math.exp %363 : vector<1x32xf32>
    %cst_117 = arith.constant 1.000000e+00 : f32
    %365 = vector.broadcast %cst_117 : f32 to vector<1x32xf32>
    %366 = arith.addf %365, %364 : vector<1x32xf32>
    %367 = arith.divf %365, %366 : vector<1x32xf32>
    %368 = vector.extract_strided_slice %347 {offsets = [0, 64], sizes = [1, 32], strides = [1, 1]} : vector<1x128xf32> to vector<1x32xf32>
    %369 = vector.extract_strided_slice %351 {offsets = [0, 64], sizes = [1, 32], strides = [1, 1]} : vector<4x128xf32> to vector<1x32xf32>
    %370 = arith.addf %368, %369 : vector<1x32xf32>
    %371 = math.tanh %370 : vector<1x32xf32>
    %372 = vector.extract_strided_slice %351 {offsets = [1, 96], sizes = [3, 32], strides = [1, 1]} : vector<4x128xf32> to vector<3x32xf32>
    %373 = vector.extract_strided_slice %347 {offsets = [0, 96], sizes = [1, 32], strides = [1, 1]} : vector<1x128xf32> to vector<1x32xf32>
    %374 = vector.broadcast %373 : vector<1x32xf32> to vector<3x32xf32>
    %375 = arith.addf %372, %374 : vector<3x32xf32>
    %376 = arith.negf %375 : vector<3x32xf32>
    %377 = math.exp %376 : vector<3x32xf32>
    %cst_118 = arith.constant 1.000000e+00 : f32
    %378 = vector.broadcast %cst_118 : f32 to vector<3x32xf32>
    %379 = arith.addf %378, %377 : vector<3x32xf32>
    %380 = arith.divf %378, %379 : vector<3x32xf32>
    %381 = arith.mulf %359, %371 : vector<1x32xf32>
    %382 = arith.mulf %380, %340 : vector<3x32xf32>
    %cst_119 = arith.constant dense<0.000000e+00> : vector<32xf32>
    %383 = vector.multi_reduction <add>, %382, %cst_119 [0] : vector<3x32xf32> to vector<32xf32>
    %384 = vector.shape_cast %383 : vector<32xf32> to vector<1x32xf32>
    %385 = arith.addf %381, %384 : vector<1x32xf32>
    %386 = math.tanh %385 : vector<1x32xf32>
    %387 = arith.mulf %367, %386 : vector<1x32xf32>
    %c4 = arith.constant 4 : index
    %c0_120 = arith.constant 0 : index
    %388 = vector.load %arg11[%c4, %c0_120] : memref<9x32xf32, #tpu.memory_space<vmem>>, vector<1x32xf32>
    tpu.vector_store %arg11[%c4, %c0_120], %387 {strides = array<i32>} : memref<9x32xf32, #tpu.memory_space<vmem>>, vector<1x32xf32>,
    %c4_121 = arith.constant 4 : index
    %c0_122 = arith.constant 0 : index
    %389 = vector.load %arg12[%c4_121, %c0_122] : memref<9x32xf32, #tpu.memory_space<vmem>>, vector<1x32xf32>
    tpu.vector_store %arg12[%c4_121, %c0_122], %385 {strides = array<i32>} : memref<9x32xf32, #tpu.memory_space<vmem>>, vector<1x32xf32>,
    %c15_i32 = arith.constant 15 : i32
    %390 = arith.addi %19, %c15_i32 : i32
    %c0_i32_123 = arith.constant 0 : i32
    %391 = arith.addi %390, %c0_i32_123 : i32
    %392 = arith.index_cast %391 : i32 to index
    %393 = memref.load %arg1[%392] : memref<96xi32, #tpu.memory_space<smem>>
    %394 = arith.index_cast %393 : i32 to index
    %c0_124 = arith.constant 0 : index
    %395 = vector.load %arg11[%394, %c0_124] : memref<9x32xf32, #tpu.memory_space<vmem>>, vector<1x32xf32>
    %396 = arith.index_cast %393 : i32 to index
    %c0_125 = arith.constant 0 : index
    %397 = vector.load %arg12[%396, %c0_125] : memref<9x32xf32, #tpu.memory_space<vmem>>, vector<1x32xf32>
    %c15_i32_126 = arith.constant 15 : i32
    %398 = arith.addi %19, %c15_i32_126 : i32
    %c1_i32_127 = arith.constant 1 : i32
    %399 = arith.addi %398, %c1_i32_127 : i32
    %400 = arith.index_cast %399 : i32 to index
    %401 = memref.load %arg1[%400] : memref<96xi32, #tpu.memory_space<smem>>
    %402 = arith.index_cast %401 : i32 to index
    %c0_128 = arith.constant 0 : index
    %403 = vector.load %arg11[%402, %c0_128] : memref<9x32xf32, #tpu.memory_space<vmem>>, vector<1x32xf32>
    %404 = arith.index_cast %401 : i32 to index
    %c0_129 = arith.constant 0 : index
    %405 = vector.load %arg12[%404, %c0_129] : memref<9x32xf32, #tpu.memory_space<vmem>>, vector<1x32xf32>
    %c15_i32_130 = arith.constant 15 : i32
    %406 = arith.addi %19, %c15_i32_130 : i32
    %c2_i32_131 = arith.constant 2 : i32
    %407 = arith.addi %406, %c2_i32_131 : i32
    %408 = arith.index_cast %407 : i32 to index
    %409 = memref.load %arg1[%408] : memref<96xi32, #tpu.memory_space<smem>>
    %410 = arith.index_cast %409 : i32 to index
    %c0_132 = arith.constant 0 : index
    %411 = vector.load %arg11[%410, %c0_132] : memref<9x32xf32, #tpu.memory_space<vmem>>, vector<1x32xf32>
    %412 = arith.index_cast %409 : i32 to index
    %c0_133 = arith.constant 0 : index
    %413 = vector.load %arg12[%412, %c0_133] : memref<9x32xf32, #tpu.memory_space<vmem>>, vector<1x32xf32>
    %414 = tpu.concatenate %395, %403, %411 in 0 : vector<1x32xf32>, vector<1x32xf32>, vector<1x32xf32> -> vector<3x32xf32>
    %415 = tpu.concatenate %397, %405, %413 in 0 : vector<1x32xf32>, vector<1x32xf32>, vector<1x32xf32> -> vector<3x32xf32>
    %cst_134 = arith.constant dense<0.000000e+00> : vector<32xf32>
    %416 = vector.multi_reduction <add>, %415, %cst_134 [0] : vector<3x32xf32> to vector<32xf32>
    %417 = vector.shape_cast %416 : vector<32xf32> to vector<1x32xf32>
    %cst_135 = arith.constant dense<0.000000e+00> : vector<1x32xf32>
    %418 = tpu.matmul %417, %6, %cst_135 {dimension_numbers = #tpu.dot_dimension_numbers<[1], [0], [0], [1], [0, 0, 1, 1], [], []>} : vector<1x32xf32>, vector<32x32xf32>, vector<1x32xf32> -> vector<1x32xf32>
    %419 = arith.addf %418, %7 : vector<1x32xf32>
    %420 = arith.select %18, %419, %417 : vector<1x32xi1>, vector<1x32xf32>
    %421 = vector.extract_strided_slice %13 {offsets = [5, 0], sizes = [1, 128], strides = [1, 1]} : vector<8x128xf32> to vector<1x128xf32>
    %422 = tpu.concatenate %420, %415 in 0 : vector<1x32xf32>, vector<3x32xf32> -> vector<4x32xf32>
    %cst_136 = arith.constant dense<0.000000e+00> : vector<4x128xf32>
    %423 = tpu.matmul %422, %4, %cst_136 {dimension_numbers = #tpu.dot_dimension_numbers<[1], [0], [0], [1], [0, 0, 1, 1], [], []>} : vector<4x32xf32>, vector<32x128xf32>, vector<4x128xf32> -> vector<4x128xf32>
    %424 = vector.broadcast %5 : vector<1x128xf32> to vector<4x128xf32>
    %425 = arith.addf %423, %424 : vector<4x128xf32>
    %426 = vector.extract_strided_slice %421 {offsets = [0, 0], sizes = [1, 32], strides = [1, 1]} : vector<1x128xf32> to vector<1x32xf32>
    %427 = vector.extract_strided_slice %425 {offsets = [0, 0], sizes = [1, 32], strides = [1, 1]} : vector<4x128xf32> to vector<1x32xf32>
    %428 = arith.addf %426, %427 : vector<1x32xf32>
    %429 = arith.negf %428 : vector<1x32xf32>
    %430 = math.exp %429 : vector<1x32xf32>
    %cst_137 = arith.constant 1.000000e+00 : f32
    %431 = vector.broadcast %cst_137 : f32 to vector<1x32xf32>
    %432 = arith.addf %431, %430 : vector<1x32xf32>
    %433 = arith.divf %431, %432 : vector<1x32xf32>
    %434 = vector.extract_strided_slice %421 {offsets = [0, 32], sizes = [1, 32], strides = [1, 1]} : vector<1x128xf32> to vector<1x32xf32>
    %435 = vector.extract_strided_slice %425 {offsets = [0, 32], sizes = [1, 32], strides = [1, 1]} : vector<4x128xf32> to vector<1x32xf32>
    %436 = arith.addf %434, %435 : vector<1x32xf32>
    %437 = arith.negf %436 : vector<1x32xf32>
    %438 = math.exp %437 : vector<1x32xf32>
    %cst_138 = arith.constant 1.000000e+00 : f32
    %439 = vector.broadcast %cst_138 : f32 to vector<1x32xf32>
    %440 = arith.addf %439, %438 : vector<1x32xf32>
    %441 = arith.divf %439, %440 : vector<1x32xf32>
    %442 = vector.extract_strided_slice %421 {offsets = [0, 64], sizes = [1, 32], strides = [1, 1]} : vector<1x128xf32> to vector<1x32xf32>
    %443 = vector.extract_strided_slice %425 {offsets = [0, 64], sizes = [1, 32], strides = [1, 1]} : vector<4x128xf32> to vector<1x32xf32>
    %444 = arith.addf %442, %443 : vector<1x32xf32>
    %445 = math.tanh %444 : vector<1x32xf32>
    %446 = vector.extract_strided_slice %425 {offsets = [1, 96], sizes = [3, 32], strides = [1, 1]} : vector<4x128xf32> to vector<3x32xf32>
    %447 = vector.extract_strided_slice %421 {offsets = [0, 96], sizes = [1, 32], strides = [1, 1]} : vector<1x128xf32> to vector<1x32xf32>
    %448 = vector.broadcast %447 : vector<1x32xf32> to vector<3x32xf32>
    %449 = arith.addf %446, %448 : vector<3x32xf32>
    %450 = arith.negf %449 : vector<3x32xf32>
    %451 = math.exp %450 : vector<3x32xf32>
    %cst_139 = arith.constant 1.000000e+00 : f32
    %452 = vector.broadcast %cst_139 : f32 to vector<3x32xf32>
    %453 = arith.addf %452, %451 : vector<3x32xf32>
    %454 = arith.divf %452, %453 : vector<3x32xf32>
    %455 = arith.mulf %433, %445 : vector<1x32xf32>
    %456 = arith.mulf %454, %414 : vector<3x32xf32>
    %cst_140 = arith.constant dense<0.000000e+00> : vector<32xf32>
    %457 = vector.multi_reduction <add>, %456, %cst_140 [0] : vector<3x32xf32> to vector<32xf32>
    %458 = vector.shape_cast %457 : vector<32xf32> to vector<1x32xf32>
    %459 = arith.addf %455, %458 : vector<1x32xf32>
    %460 = math.tanh %459 : vector<1x32xf32>
    %461 = arith.mulf %441, %460 : vector<1x32xf32>
    %c5 = arith.constant 5 : index
    %c0_141 = arith.constant 0 : index
    %462 = vector.load %arg11[%c5, %c0_141] : memref<9x32xf32, #tpu.memory_space<vmem>>, vector<1x32xf32>
    tpu.vector_store %arg11[%c5, %c0_141], %461 {strides = array<i32>} : memref<9x32xf32, #tpu.memory_space<vmem>>, vector<1x32xf32>,
    %c5_142 = arith.constant 5 : index
    %c0_143 = arith.constant 0 : index
    %463 = vector.load %arg12[%c5_142, %c0_143] : memref<9x32xf32, #tpu.memory_space<vmem>>, vector<1x32xf32>
    tpu.vector_store %arg12[%c5_142, %c0_143], %459 {strides = array<i32>} : memref<9x32xf32, #tpu.memory_space<vmem>>, vector<1x32xf32>,
    %c18_i32 = arith.constant 18 : i32
    %464 = arith.addi %19, %c18_i32 : i32
    %c0_i32_144 = arith.constant 0 : i32
    %465 = arith.addi %464, %c0_i32_144 : i32
    %466 = arith.index_cast %465 : i32 to index
    %467 = memref.load %arg1[%466] : memref<96xi32, #tpu.memory_space<smem>>
    %468 = arith.index_cast %467 : i32 to index
    %c0_145 = arith.constant 0 : index
    %469 = vector.load %arg11[%468, %c0_145] : memref<9x32xf32, #tpu.memory_space<vmem>>, vector<1x32xf32>
    %470 = arith.index_cast %467 : i32 to index
    %c0_146 = arith.constant 0 : index
    %471 = vector.load %arg12[%470, %c0_146] : memref<9x32xf32, #tpu.memory_space<vmem>>, vector<1x32xf32>
    %c18_i32_147 = arith.constant 18 : i32
    %472 = arith.addi %19, %c18_i32_147 : i32
    %c1_i32_148 = arith.constant 1 : i32
    %473 = arith.addi %472, %c1_i32_148 : i32
    %474 = arith.index_cast %473 : i32 to index
    %475 = memref.load %arg1[%474] : memref<96xi32, #tpu.memory_space<smem>>
    %476 = arith.index_cast %475 : i32 to index
    %c0_149 = arith.constant 0 : index
    %477 = vector.load %arg11[%476, %c0_149] : memref<9x32xf32, #tpu.memory_space<vmem>>, vector<1x32xf32>
    %478 = arith.index_cast %475 : i32 to index
    %c0_150 = arith.constant 0 : index
    %479 = vector.load %arg12[%478, %c0_150] : memref<9x32xf32, #tpu.memory_space<vmem>>, vector<1x32xf32>
    %c18_i32_151 = arith.constant 18 : i32
    %480 = arith.addi %19, %c18_i32_151 : i32
    %c2_i32_152 = arith.constant 2 : i32
    %481 = arith.addi %480, %c2_i32_152 : i32
    %482 = arith.index_cast %481 : i32 to index
    %483 = memref.load %arg1[%482] : memref<96xi32, #tpu.memory_space<smem>>
    %484 = arith.index_cast %483 : i32 to index
    %c0_153 = arith.constant 0 : index
    %485 = vector.load %arg11[%484, %c0_153] : memref<9x32xf32, #tpu.memory_space<vmem>>, vector<1x32xf32>
    %486 = arith.index_cast %483 : i32 to index
    %c0_154 = arith.constant 0 : index
    %487 = vector.load %arg12[%486, %c0_154] : memref<9x32xf32, #tpu.memory_space<vmem>>, vector<1x32xf32>
    %488 = tpu.concatenate %469, %477, %485 in 0 : vector<1x32xf32>, vector<1x32xf32>, vector<1x32xf32> -> vector<3x32xf32>
    %489 = tpu.concatenate %471, %479, %487 in 0 : vector<1x32xf32>, vector<1x32xf32>, vector<1x32xf32> -> vector<3x32xf32>
    %cst_155 = arith.constant dense<0.000000e+00> : vector<32xf32>
    %490 = vector.multi_reduction <add>, %489, %cst_155 [0] : vector<3x32xf32> to vector<32xf32>
    %491 = vector.shape_cast %490 : vector<32xf32> to vector<1x32xf32>
    %cst_156 = arith.constant dense<0.000000e+00> : vector<1x32xf32>
    %492 = tpu.matmul %491, %6, %cst_156 {dimension_numbers = #tpu.dot_dimension_numbers<[1], [0], [0], [1], [0, 0, 1, 1], [], []>} : vector<1x32xf32>, vector<32x32xf32>, vector<1x32xf32> -> vector<1x32xf32>
    %493 = arith.addf %492, %7 : vector<1x32xf32>
    %494 = arith.select %18, %493, %491 : vector<1x32xi1>, vector<1x32xf32>
    %495 = vector.extract_strided_slice %13 {offsets = [6, 0], sizes = [1, 128], strides = [1, 1]} : vector<8x128xf32> to vector<1x128xf32>
    %496 = tpu.concatenate %494, %489 in 0 : vector<1x32xf32>, vector<3x32xf32> -> vector<4x32xf32>
    %cst_157 = arith.constant dense<0.000000e+00> : vector<4x128xf32>
    %497 = tpu.matmul %496, %4, %cst_157 {dimension_numbers = #tpu.dot_dimension_numbers<[1], [0], [0], [1], [0, 0, 1, 1], [], []>} : vector<4x32xf32>, vector<32x128xf32>, vector<4x128xf32> -> vector<4x128xf32>
    %498 = vector.broadcast %5 : vector<1x128xf32> to vector<4x128xf32>
    %499 = arith.addf %497, %498 : vector<4x128xf32>
    %500 = vector.extract_strided_slice %495 {offsets = [0, 0], sizes = [1, 32], strides = [1, 1]} : vector<1x128xf32> to vector<1x32xf32>
    %501 = vector.extract_strided_slice %499 {offsets = [0, 0], sizes = [1, 32], strides = [1, 1]} : vector<4x128xf32> to vector<1x32xf32>
    %502 = arith.addf %500, %501 : vector<1x32xf32>
    %503 = arith.negf %502 : vector<1x32xf32>
    %504 = math.exp %503 : vector<1x32xf32>
    %cst_158 = arith.constant 1.000000e+00 : f32
    %505 = vector.broadcast %cst_158 : f32 to vector<1x32xf32>
    %506 = arith.addf %505, %504 : vector<1x32xf32>
    %507 = arith.divf %505, %506 : vector<1x32xf32>
    %508 = vector.extract_strided_slice %495 {offsets = [0, 32], sizes = [1, 32], strides = [1, 1]} : vector<1x128xf32> to vector<1x32xf32>
    %509 = vector.extract_strided_slice %499 {offsets = [0, 32], sizes = [1, 32], strides = [1, 1]} : vector<4x128xf32> to vector<1x32xf32>
    %510 = arith.addf %508, %509 : vector<1x32xf32>
    %511 = arith.negf %510 : vector<1x32xf32>
    %512 = math.exp %511 : vector<1x32xf32>
    %cst_159 = arith.constant 1.000000e+00 : f32
    %513 = vector.broadcast %cst_159 : f32 to vector<1x32xf32>
    %514 = arith.addf %513, %512 : vector<1x32xf32>
    %515 = arith.divf %513, %514 : vector<1x32xf32>
    %516 = vector.extract_strided_slice %495 {offsets = [0, 64], sizes = [1, 32], strides = [1, 1]} : vector<1x128xf32> to vector<1x32xf32>
    %517 = vector.extract_strided_slice %499 {offsets = [0, 64], sizes = [1, 32], strides = [1, 1]} : vector<4x128xf32> to vector<1x32xf32>
    %518 = arith.addf %516, %517 : vector<1x32xf32>
    %519 = math.tanh %518 : vector<1x32xf32>
    %520 = vector.extract_strided_slice %499 {offsets = [1, 96], sizes = [3, 32], strides = [1, 1]} : vector<4x128xf32> to vector<3x32xf32>
    %521 = vector.extract_strided_slice %495 {offsets = [0, 96], sizes = [1, 32], strides = [1, 1]} : vector<1x128xf32> to vector<1x32xf32>
    %522 = vector.broadcast %521 : vector<1x32xf32> to vector<3x32xf32>
    %523 = arith.addf %520, %522 : vector<3x32xf32>
    %524 = arith.negf %523 : vector<3x32xf32>
    %525 = math.exp %524 : vector<3x32xf32>
    %cst_160 = arith.constant 1.000000e+00 : f32
    %526 = vector.broadcast %cst_160 : f32 to vector<3x32xf32>
    %527 = arith.addf %526, %525 : vector<3x32xf32>
    %528 = arith.divf %526, %527 : vector<3x32xf32>
    %529 = arith.mulf %507, %519 : vector<1x32xf32>
    %530 = arith.mulf %528, %488 : vector<3x32xf32>
    %cst_161 = arith.constant dense<0.000000e+00> : vector<32xf32>
    %531 = vector.multi_reduction <add>, %530, %cst_161 [0] : vector<3x32xf32> to vector<32xf32>
    %532 = vector.shape_cast %531 : vector<32xf32> to vector<1x32xf32>
    %533 = arith.addf %529, %532 : vector<1x32xf32>
    %534 = math.tanh %533 : vector<1x32xf32>
    %535 = arith.mulf %515, %534 : vector<1x32xf32>
    %c6 = arith.constant 6 : index
    %c0_162 = arith.constant 0 : index
    %536 = vector.load %arg11[%c6, %c0_162] : memref<9x32xf32, #tpu.memory_space<vmem>>, vector<1x32xf32>
    tpu.vector_store %arg11[%c6, %c0_162], %535 {strides = array<i32>} : memref<9x32xf32, #tpu.memory_space<vmem>>, vector<1x32xf32>,
    %c6_163 = arith.constant 6 : index
    %c0_164 = arith.constant 0 : index
    %537 = vector.load %arg12[%c6_163, %c0_164] : memref<9x32xf32, #tpu.memory_space<vmem>>, vector<1x32xf32>
    tpu.vector_store %arg12[%c6_163, %c0_164], %533 {strides = array<i32>} : memref<9x32xf32, #tpu.memory_space<vmem>>, vector<1x32xf32>,
    %c21_i32 = arith.constant 21 : i32
    %538 = arith.addi %19, %c21_i32 : i32
    %c0_i32_165 = arith.constant 0 : i32
    %539 = arith.addi %538, %c0_i32_165 : i32
    %540 = arith.index_cast %539 : i32 to index
    %541 = memref.load %arg1[%540] : memref<96xi32, #tpu.memory_space<smem>>
    %542 = arith.index_cast %541 : i32 to index
    %c0_166 = arith.constant 0 : index
    %543 = vector.load %arg11[%542, %c0_166] : memref<9x32xf32, #tpu.memory_space<vmem>>, vector<1x32xf32>
    %544 = arith.index_cast %541 : i32 to index
    %c0_167 = arith.constant 0 : index
    %545 = vector.load %arg12[%544, %c0_167] : memref<9x32xf32, #tpu.memory_space<vmem>>, vector<1x32xf32>
    %c21_i32_168 = arith.constant 21 : i32
    %546 = arith.addi %19, %c21_i32_168 : i32
    %c1_i32_169 = arith.constant 1 : i32
    %547 = arith.addi %546, %c1_i32_169 : i32
    %548 = arith.index_cast %547 : i32 to index
    %549 = memref.load %arg1[%548] : memref<96xi32, #tpu.memory_space<smem>>
    %550 = arith.index_cast %549 : i32 to index
    %c0_170 = arith.constant 0 : index
    %551 = vector.load %arg11[%550, %c0_170] : memref<9x32xf32, #tpu.memory_space<vmem>>, vector<1x32xf32>
    %552 = arith.index_cast %549 : i32 to index
    %c0_171 = arith.constant 0 : index
    %553 = vector.load %arg12[%552, %c0_171] : memref<9x32xf32, #tpu.memory_space<vmem>>, vector<1x32xf32>
    %c21_i32_172 = arith.constant 21 : i32
    %554 = arith.addi %19, %c21_i32_172 : i32
    %c2_i32_173 = arith.constant 2 : i32
    %555 = arith.addi %554, %c2_i32_173 : i32
    %556 = arith.index_cast %555 : i32 to index
    %557 = memref.load %arg1[%556] : memref<96xi32, #tpu.memory_space<smem>>
    %558 = arith.index_cast %557 : i32 to index
    %c0_174 = arith.constant 0 : index
    %559 = vector.load %arg11[%558, %c0_174] : memref<9x32xf32, #tpu.memory_space<vmem>>, vector<1x32xf32>
    %560 = arith.index_cast %557 : i32 to index
    %c0_175 = arith.constant 0 : index
    %561 = vector.load %arg12[%560, %c0_175] : memref<9x32xf32, #tpu.memory_space<vmem>>, vector<1x32xf32>
    %562 = tpu.concatenate %543, %551, %559 in 0 : vector<1x32xf32>, vector<1x32xf32>, vector<1x32xf32> -> vector<3x32xf32>
    %563 = tpu.concatenate %545, %553, %561 in 0 : vector<1x32xf32>, vector<1x32xf32>, vector<1x32xf32> -> vector<3x32xf32>
    %cst_176 = arith.constant dense<0.000000e+00> : vector<32xf32>
    %564 = vector.multi_reduction <add>, %563, %cst_176 [0] : vector<3x32xf32> to vector<32xf32>
    %565 = vector.shape_cast %564 : vector<32xf32> to vector<1x32xf32>
    %cst_177 = arith.constant dense<0.000000e+00> : vector<1x32xf32>
    %566 = tpu.matmul %565, %6, %cst_177 {dimension_numbers = #tpu.dot_dimension_numbers<[1], [0], [0], [1], [0, 0, 1, 1], [], []>} : vector<1x32xf32>, vector<32x32xf32>, vector<1x32xf32> -> vector<1x32xf32>
    %567 = arith.addf %566, %7 : vector<1x32xf32>
    %568 = arith.select %18, %567, %565 : vector<1x32xi1>, vector<1x32xf32>
    %569 = vector.extract_strided_slice %13 {offsets = [7, 0], sizes = [1, 128], strides = [1, 1]} : vector<8x128xf32> to vector<1x128xf32>
    %570 = tpu.concatenate %568, %563 in 0 : vector<1x32xf32>, vector<3x32xf32> -> vector<4x32xf32>
    %cst_178 = arith.constant dense<0.000000e+00> : vector<4x128xf32>
    %571 = tpu.matmul %570, %4, %cst_178 {dimension_numbers = #tpu.dot_dimension_numbers<[1], [0], [0], [1], [0, 0, 1, 1], [], []>} : vector<4x32xf32>, vector<32x128xf32>, vector<4x128xf32> -> vector<4x128xf32>
    %572 = vector.broadcast %5 : vector<1x128xf32> to vector<4x128xf32>
    %573 = arith.addf %571, %572 : vector<4x128xf32>
    %574 = vector.extract_strided_slice %569 {offsets = [0, 0], sizes = [1, 32], strides = [1, 1]} : vector<1x128xf32> to vector<1x32xf32>
    %575 = vector.extract_strided_slice %573 {offsets = [0, 0], sizes = [1, 32], strides = [1, 1]} : vector<4x128xf32> to vector<1x32xf32>
    %576 = arith.addf %574, %575 : vector<1x32xf32>
    %577 = arith.negf %576 : vector<1x32xf32>
    %578 = math.exp %577 : vector<1x32xf32>
    %cst_179 = arith.constant 1.000000e+00 : f32
    %579 = vector.broadcast %cst_179 : f32 to vector<1x32xf32>
    %580 = arith.addf %579, %578 : vector<1x32xf32>
    %581 = arith.divf %579, %580 : vector<1x32xf32>
    %582 = vector.extract_strided_slice %569 {offsets = [0, 32], sizes = [1, 32], strides = [1, 1]} : vector<1x128xf32> to vector<1x32xf32>
    %583 = vector.extract_strided_slice %573 {offsets = [0, 32], sizes = [1, 32], strides = [1, 1]} : vector<4x128xf32> to vector<1x32xf32>
    %584 = arith.addf %582, %583 : vector<1x32xf32>
    %585 = arith.negf %584 : vector<1x32xf32>
    %586 = math.exp %585 : vector<1x32xf32>
    %cst_180 = arith.constant 1.000000e+00 : f32
    %587 = vector.broadcast %cst_180 : f32 to vector<1x32xf32>
    %588 = arith.addf %587, %586 : vector<1x32xf32>
    %589 = arith.divf %587, %588 : vector<1x32xf32>
    %590 = vector.extract_strided_slice %569 {offsets = [0, 64], sizes = [1, 32], strides = [1, 1]} : vector<1x128xf32> to vector<1x32xf32>
    %591 = vector.extract_strided_slice %573 {offsets = [0, 64], sizes = [1, 32], strides = [1, 1]} : vector<4x128xf32> to vector<1x32xf32>
    %592 = arith.addf %590, %591 : vector<1x32xf32>
    %593 = math.tanh %592 : vector<1x32xf32>
    %594 = vector.extract_strided_slice %573 {offsets = [1, 96], sizes = [3, 32], strides = [1, 1]} : vector<4x128xf32> to vector<3x32xf32>
    %595 = vector.extract_strided_slice %569 {offsets = [0, 96], sizes = [1, 32], strides = [1, 1]} : vector<1x128xf32> to vector<1x32xf32>
    %596 = vector.broadcast %595 : vector<1x32xf32> to vector<3x32xf32>
    %597 = arith.addf %594, %596 : vector<3x32xf32>
    %598 = arith.negf %597 : vector<3x32xf32>
    %599 = math.exp %598 : vector<3x32xf32>
    %cst_181 = arith.constant 1.000000e+00 : f32
    %600 = vector.broadcast %cst_181 : f32 to vector<3x32xf32>
    %601 = arith.addf %600, %599 : vector<3x32xf32>
    %602 = arith.divf %600, %601 : vector<3x32xf32>
    %603 = arith.mulf %581, %593 : vector<1x32xf32>
    %604 = arith.mulf %602, %562 : vector<3x32xf32>
    %cst_182 = arith.constant dense<0.000000e+00> : vector<32xf32>
    %605 = vector.multi_reduction <add>, %604, %cst_182 [0] : vector<3x32xf32> to vector<32xf32>
    %606 = vector.shape_cast %605 : vector<32xf32> to vector<1x32xf32>
    %607 = arith.addf %603, %606 : vector<1x32xf32>
    %608 = math.tanh %607 : vector<1x32xf32>
    %609 = arith.mulf %589, %608 : vector<1x32xf32>
    %c7 = arith.constant 7 : index
    %c0_183 = arith.constant 0 : index
    %610 = vector.load %arg11[%c7, %c0_183] : memref<9x32xf32, #tpu.memory_space<vmem>>, vector<1x32xf32>
    tpu.vector_store %arg11[%c7, %c0_183], %609 {strides = array<i32>} : memref<9x32xf32, #tpu.memory_space<vmem>>, vector<1x32xf32>,
    %c7_184 = arith.constant 7 : index
    %c0_185 = arith.constant 0 : index
    %611 = vector.load %arg12[%c7_184, %c0_185] : memref<9x32xf32, #tpu.memory_space<vmem>>, vector<1x32xf32>
    tpu.vector_store %arg12[%c7_184, %c0_185], %607 {strides = array<i32>} : memref<9x32xf32, #tpu.memory_space<vmem>>, vector<1x32xf32>,
    %c0_186 = arith.constant 0 : index
    %c0_187 = arith.constant 0 : index
    %c0_188 = arith.constant 0 : index
    %612 = vector.load %arg10[%c0_186, %c0_187, %c0_188] : memref<1x1x32xf32, #tpu.memory_space<vmem>>, vector<1x1x32xf32>
    %613 = vector.shape_cast %612 : vector<1x1x32xf32> to vector<1x32xf32>
    %614 = vector.shape_cast %607 : vector<1x32xf32> to vector<1x1x32xf32>
    tpu.vector_store %arg10[%c0_186, %c0_187, %c0_188], %614 {strides = array<i32>} : memref<1x1x32xf32, #tpu.memory_space<vmem>>, vector<1x1x32xf32>,
    return
  }
  func.func @transform_0(%arg0: i32, %arg1: memref<96xi32, #tpu.memory_space<smem>>, %arg2: memref<4xi32, #tpu.memory_space<smem>>) -> (i32, i32, i32) {
    %c0_i32 = arith.constant 0 : i32
    %c0_i32_0 = arith.constant 0 : i32
    %c0_i32_1 = arith.constant 0 : i32
    return %arg0, %c0_i32, %c0_i32_0 : i32, i32, i32
  }
  func.func @transform_1(%arg0: i32, %arg1: memref<96xi32, #tpu.memory_space<smem>>, %arg2: memref<4xi32, #tpu.memory_space<smem>>) -> (i32, i32) {
    %c0_i32 = arith.constant 0 : i32
    %c0_i32_0 = arith.constant 0 : i32
    %c0_i32_1 = arith.constant 0 : i32
    return %c0_i32, %c0_i32_0 : i32, i32
  }
  func.func @transform_2(%arg0: i32, %arg1: memref<96xi32, #tpu.memory_space<smem>>, %arg2: memref<4xi32, #tpu.memory_space<smem>>) -> (i32, i32) {
    %c0_i32 = arith.constant 0 : i32
    %c0_i32_0 = arith.constant 0 : i32
    %c0_i32_1 = arith.constant 0 : i32
    return %c0_i32, %c0_i32_0 : i32, i32
  }
  func.func @transform_3(%arg0: i32, %arg1: memref<96xi32, #tpu.memory_space<smem>>, %arg2: memref<4xi32, #tpu.memory_space<smem>>) -> (i32, i32) {
    %c0_i32 = arith.constant 0 : i32
    %c0_i32_0 = arith.constant 0 : i32
    %c0_i32_1 = arith.constant 0 : i32
    return %c0_i32, %c0_i32_0 : i32, i32
  }
  func.func @transform_4(%arg0: i32, %arg1: memref<96xi32, #tpu.memory_space<smem>>, %arg2: memref<4xi32, #tpu.memory_space<smem>>) -> (i32, i32) {
    %c0_i32 = arith.constant 0 : i32
    %c0_i32_0 = arith.constant 0 : i32
    %c0_i32_1 = arith.constant 0 : i32
    return %c0_i32, %c0_i32_0 : i32, i32
  }
  func.func @transform_5(%arg0: i32, %arg1: memref<96xi32, #tpu.memory_space<smem>>, %arg2: memref<4xi32, #tpu.memory_space<smem>>) -> (i32, i32) {
    %c0_i32 = arith.constant 0 : i32
    %c0_i32_0 = arith.constant 0 : i32
    %c0_i32_1 = arith.constant 0 : i32
    return %c0_i32, %c0_i32_0 : i32, i32
  }
  func.func @transform_6(%arg0: i32, %arg1: memref<96xi32, #tpu.memory_space<smem>>, %arg2: memref<4xi32, #tpu.memory_space<smem>>) -> (i32, i32) {
    %c0_i32 = arith.constant 0 : i32
    %c0_i32_0 = arith.constant 0 : i32
    %c0_i32_1 = arith.constant 0 : i32
    return %c0_i32, %c0_i32_0 : i32, i32
  }
  func.func @transform_7(%arg0: i32, %arg1: memref<96xi32, #tpu.memory_space<smem>>, %arg2: memref<4xi32, #tpu.memory_space<smem>>) -> (i32, i32, i32) {
    %c0_i32 = arith.constant 0 : i32
    %c0_i32_0 = arith.constant 0 : i32
    %c0_i32_1 = arith.constant 0 : i32
    return %arg0, %c0_i32, %c0_i32_0 : i32, i32, i32
  }
}

</mosaic_0001>

<llo_original>
// kernel: _trees_run.1
$region0: #{_trees_run.1}
  #allocation0 [shape = 'u32[]', space=smem, size = 0x4, offset = 0x4, fixed_abs, tag = 'smem constant byte address 0x4 - core index']
  #allocation1 [shape = 'u32[144,128]{1,0:T(1,128)}', space=vmem, size = 0x12000, scoped, tag = 'internal scratch']
  #allocation2 [shape = 'f32[9,32]{1,0:T(8,128)}', space=vmem, size = 0x2000, scoped, tag = 'scratch operand']
  #allocation3 [shape = 'f32[9,32]{1,0:T(8,128)}', space=vmem, size = 0x2000, scoped, tag = 'scratch operand']
  #allocation4 [shape = 's32[1]{0}', space=sflag, size = 0x4, scoped, tag = 'scoped memory for _trees_run.1']
  #allocation5 [shape = 'u8[512]{0}', space=smem, size = 0x200, scoped, tag = 'prefetched SMEM operand 0']
  #allocation6 [shape = 'u8[512]{0}', space=smem, size = 0x200, scoped, tag = 'prefetched SMEM operand 1']
  %s0 = inlined_call_operand.hbm [shape: s32[96], index: 0, kind: input, shape index: {}]
  %s1 = inlined_call_operand.vmem [shape: s32[4], index: 1, kind: input, shape index: {}]
  %s2 = inlined_call_operand.hbm [shape: f32[4,8,32], index: 2, kind: input, shape index: {}]
  %s3 = inlined_call_operand.hbm [shape: f32[32,128], index: 3, kind: input, shape index: {}]
  %s4 = inlined_call_operand.hbm [shape: f32[32,128], index: 4, kind: input, shape index: {}]
  %s5 = inlined_call_operand.vmem [shape: f32[1,128], index: 5, kind: input, shape index: {}]
  %s6 = inlined_call_operand.vmem [shape: f32[1,128], index: 6, kind: input, shape index: {}]
  %s7 = inlined_call_operand.hbm [shape: f32[32,32], index: 7, kind: input, shape index: {}]
  %s8 = inlined_call_operand.vmem [shape: f32[1,32], index: 8, kind: input, shape index: {}]
  %s9 = inlined_call_operand.hbm [shape: f32[4,1,32], index: 9, kind: output, shape index: {}]
  %s10 = sld [smem:[#allocation0]]
  $region77: #{_trees_run.1} parent=0
    _
  %s12 = ssub.s32 1, %s10
  %s13 = scalar_select 0, %s12, %s10
  %15 = dma.hbm_to_smem %s0, 16, [#allocation5], [#allocation4]
  %s16 = sshll.u32 %s1, 4
  %s17 = int_to_ptr.vmem [resolvable:$true] %s16
  %19 = dma.vmem_to_smem %s17, 16, [#allocation6], [#allocation4]
  %20 = dma.done [#allocation4], 32
  %21 = sfence
  $region1: #{_trees_run.1} parent=0
    #allocation7 [shape = 'u8[8192]{0}', space=vmem, size = 0x2000, scoped, tag = 'input window, operand 2']
    #allocation8 [shape = 's32[2]{0}', space=sflag, size = 0x8, scoped, tag = 'scoped memory for _trees_run.1']
    #allocation9 [shape = 's32[2]{0}', space=sflag, size = 0x8, scoped, tag = 'scoped memory for _trees_run.1']
    #allocation10 [shape = 'u8[16384]{0}', space=vmem, size = 0x4000, scoped, tag = 'input window, operand 3, single buffered']
    #allocation11 [shape = 's32[1]{0}', space=sflag, size = 0x4, scoped, tag = 'scoped memory for _trees_run.1']
    #allocation12 [shape = 'u8[16384]{0}', space=vmem, size = 0x4000, scoped, tag = 'input window, operand 4, single buffered']
    #allocation13 [shape = 'u8[16384]{0}', space=vmem, size = 0x4000, scoped, tag = 'input window, operand 7, single buffered']
    #allocation14 [shape = 's32[1]{0}', space=sflag, size = 0x4, scoped, tag = 'scoped memory for _trees_run.1']
    #allocation15 [shape = 'u8[1024]{0}', space=vmem, size = 0x400, scoped, tag = 'output window, operand 0']
    %22 = vsyncpa [#allocation8], 0
    %s23 = scalar_lea.sflag [#allocation8], 1
    %24 = vsyncpa %s23, 0
    %25 = vsyncpa [#allocation11], 0
    %26 = vsyncpa [#allocation14], 0
    %27 = vsyncpa [#allocation9], 0
    %s28 = scalar_lea.sflag [#allocation9], 1
    %29 = vsyncpa %s28, 0
    loop: start=0, step=1, limit=6
    $region2: #{_trees_run.1} parent=1 // loop_pre_header
      _
    $region3: #{_trees_run.1} parent=1 // loop_header
      %s31 = sphi 0, %s35
      %p32 = scmp.ge.s32.totalorder %s31, 6
      %s41 = sphi 0, %s43
      %s44 = sphi 0, %s41
      %s45 = sphi 0, %s44
      %s61 = sphi 0, %s45
      %s65 = sphi 0, %s65
      %s67 = sphi 0, %s65
      %s68 = sphi 0, %s67
      %s82 = sphi 0, %s68
      %s86 = sphi 0, %s86
      %s88 = sphi 0, %s86
      %s89 = sphi 0, %s88
      %s103 = sphi 0, %s89
      %s107 = sphi 0, %s107
      %s109 = sphi 0, %s107
      %s110 = sphi 0, %s109
      %s124 = sphi 0, %s110
      %s128 = sphi 0, %s128
      %s130 = sphi 0, %s128
      %s131 = sphi 0, %s130
      %s145 = sphi 0, %s131
      %s149 = sphi 0, %s149
      %s151 = sphi 0, %s149
      %s152 = sphi 0, %s151
      %s166 = sphi 0, %s152
      %s170 = sphi 0, %s170
      %s172 = sphi 0, %s170
      %s173 = sphi 0, %s172
      %s187 = sphi 0, %s173
      %s193 = sphi 0, %s195
      %s196 = sphi 0, %s193
      %s197 = sphi 0, %s196
      %s213 = sphi 0, %s197
    $region4: #{_trees_run.1} parent=1 // loop_header_branch
      %34 = sbr.rel (%p32) target = $region8
    $region5: #{_trees_run.1} parent=1 // loop_body
      %s36 = ssub.s32 %s31, 1
      %s37 = ssub.s32 %s31, 2
      %s38 = sadd.s32 %s31, 1
      %s39 = ssub.s32 %s31, %s38
      %p40 = scmp.eq.s32.totalorder %s39, 0
      %s42 = sadd.s32 %s41, 1
      %s43 = scalar_select %p40, %s41, %s42
      %p46 = pneg %p40
      %p47 = scmp.eq.s32.totalorder %s31, 3
      %p48 = por %p46, %p47
      %p49 = scmp.ne.s32.totalorder %s41, %s44
      %p50 = scmp.eq.s32.totalorder %s31, 0
      %p51 = por %p49, %p50
      %p52 = scmp.ne.s32.totalorder %s41, %s44
      %p53 = scmp.eq.s32.totalorder %s36, 3
      %p54 = por %p52, %p53
      %p55 = scmp.ne.s32.totalorder %s44, %s45
      %p56 = scmp.eq.s32.totalorder %s36, 0
      %p57 = por %p55, %p56
      %p58 = scmp.ne.s32.totalorder %s44, %s45
      %p59 = scmp.eq.s32.totalorder %s37, 3
      %p60 = por %p58, %p59
      %p62 = scmp.ne.s32.totalorder %s45, %s61
      %p63 = scmp.eq.s32.totalorder %s37, 0
      %p64 = por %p62, %p63
      %s66 = sadd.s32 %s65, 1
      %p69 = scmp.eq.s32.totalorder %s31, 3
      %p70 = scmp.ne.s32.totalorder %s65, %s67
      %p71 = scmp.eq.s32.totalorder %s31, 0
      %p72 = por %p70, %p71
      %p73 = scmp.ne.s32.totalorder %s65, %s67
      %p74 = scmp.eq.s32.totalorder %s36, 3
      %p75 = por %p73, %p74
      %p76 = scmp.ne.s32.totalorder %s67, %s68
      %p77 = scmp.eq.s32.totalorder %s36, 0
      %p78 = por %p76, %p77
      %p79 = scmp.ne.s32.totalorder %s67, %s68
      %p80 = scmp.eq.s32.totalorder %s37, 3
      %p81 = por %p79, %p80
      %p83 = scmp.ne.s32.totalorder %s68, %s82
      %p84 = scmp.eq.s32.totalorder %s37, 0
      %p85 = por %p83, %p84
      %s87 = sadd.s32 %s86, 1
      %p90 = scmp.eq.s32.totalorder %s31, 3
      %p91 = scmp.ne.s32.totalorder %s86, %s88
      %p92 = scmp.eq.s32.totalorder %s31, 0
      %p93 = por %p91, %p92
      %p94 = scmp.ne.s32.totalorder %s86, %s88
      %p95 = scmp.eq.s32.totalorder %s36, 3
      %p96 = por %p94, %p95
      %p97 = scmp.ne.s32.totalorder %s88, %s89
      %p98 = scmp.eq.s32.totalorder %s36, 0
      %p99 = por %p97, %p98
      %p100 = scmp.ne.s32.totalorder %s88, %s89
      %p101 = scmp.eq.s32.totalorder %s37, 3
      %p102 = por %p100, %p101
      %p104 = scmp.ne.s32.totalorder %s89, %s103
      %p105 = scmp.eq.s32.totalorder %s37, 0
      %p106 = por %p104, %p105
      %s108 = sadd.s32 %s107, 1
      %p111 = scmp.eq.s32.totalorder %s31, 3
      %p112 = scmp.ne.s32.totalorder %s107, %s109
      %p113 = scmp.eq.s32.totalorder %s31, 0
      %p114 = por %p112, %p113
      %p115 = scmp.ne.s32.totalorder %s107, %s109
      %p116 = scmp.eq.s32.totalorder %s36, 3
      %p117 = por %p115, %p116
      %p118 = scmp.ne.s32.totalorder %s109, %s110
      %p119 = scmp.eq.s32.totalorder %s36, 0
      %p120 = por %p118, %p119
      %p121 = scmp.ne.s32.totalorder %s109, %s110
      %p122 = scmp.eq.s32.totalorder %s37, 3
      %p123 = por %p121, %p122
      %p125 = scmp.ne.s32.totalorder %s110, %s124
      %p126 = scmp.eq.s32.totalorder %s37, 0
      %p127 = por %p125, %p126
      %s129 = sadd.s32 %s128, 1
      %p132 = scmp.eq.s32.totalorder %s31, 3
      %p133 = scmp.ne.s32.totalorder %s128, %s130
      %p134 = scmp.eq.s32.totalorder %s31, 0
      %p135 = por %p133, %p134
      %p136 = scmp.ne.s32.totalorder %s128, %s130
      %p137 = scmp.eq.s32.totalorder %s36, 3
      %p138 = por %p136, %p137
      %p139 = scmp.ne.s32.totalorder %s130, %s131
      %p140 = scmp.eq.s32.totalorder %s36, 0
      %p141 = por %p139, %p140
      %p142 = scmp.ne.s32.totalorder %s130, %s131
      %p143 = scmp.eq.s32.totalorder %s37, 3
      %p144 = por %p142, %p143
      %p146 = scmp.ne.s32.totalorder %s131, %s145
      %p147 = scmp.eq.s32.totalorder %s37, 0
      %p148 = por %p146, %p147
      %s150 = sadd.s32 %s149, 1
      %p153 = scmp.eq.s32.totalorder %s31, 3
      %p154 = scmp.ne.s32.totalorder %s149, %s151
      %p155 = scmp.eq.s32.totalorder %s31, 0
      %p156 = por %p154, %p155
      %p157 = scmp.ne.s32.totalorder %s149, %s151
      %p158 = scmp.eq.s32.totalorder %s36, 3
      %p159 = por %p157, %p158
      %p160 = scmp.ne.s32.totalorder %s151, %s152
      %p161 = scmp.eq.s32.totalorder %s36, 0
      %p162 = por %p160, %p161
      %p163 = scmp.ne.s32.totalorder %s151, %s152
      %p164 = scmp.eq.s32.totalorder %s37, 3
      %p165 = por %p163, %p164
      %p167 = scmp.ne.s32.totalorder %s152, %s166
      %p168 = scmp.eq.s32.totalorder %s37, 0
      %p169 = por %p167, %p168
      %s171 = sadd.s32 %s170, 1
      %p174 = scmp.eq.s32.totalorder %s31, 3
      %p175 = scmp.ne.s32.totalorder %s170, %s172
      %p176 = scmp.eq.s32.totalorder %s31, 0
      %p177 = por %p175, %p176
      %p178 = scmp.ne.s32.totalorder %s170, %s172
      %p179 = scmp.eq.s32.totalorder %s36, 3
      %p180 = por %p178, %p179
      %p181 = scmp.ne.s32.totalorder %s172, %s173
      %p182 = scmp.eq.s32.totalorder %s36, 0
      %p183 = por %p181, %p182
      %p184 = scmp.ne.s32.totalorder %s172, %s173
      %p185 = scmp.eq.s32.totalorder %s37, 3
      %p186 = por %p184, %p185
      %p188 = scmp.ne.s32.totalorder %s173, %s187
      %p189 = scmp.eq.s32.totalorder %s37, 0
      %p190 = por %p188, %p189
      %s191 = ssub.s32 %s31, %s38
      %p192 = scmp.eq.s32.totalorder %s191, 0
      %s194 = sadd.s32 %s193, 1
      %s195 = scalar_select %p192, %s193, %s194
      %p198 = pneg %p192
      %p199 = scmp.eq.s32.totalorder %s31, 3
      %p200 = por %p198, %p199
      %p201 = scmp.ne.s32.totalorder %s193, %s196
      %p202 = scmp.eq.s32.totalorder %s31, 0
      %p203 = por %p201, %p202
      %p204 = scmp.ne.s32.totalorder %s193, %s196
      %p205 = scmp.eq.s32.totalorder %s36, 3
      %p206 = por %p204, %p205
      %p207 = scmp.ne.s32.totalorder %s196, %s197
      %p208 = scmp.eq.s32.totalorder %s36, 0
      %p209 = por %p207, %p208
      %p210 = scmp.ne.s32.totalorder %s196, %s197
      %p211 = scmp.eq.s32.totalorder %s37, 3
      %p212 = por %p210, %p211
      %p214 = scmp.ne.s32.totalorder %s197, %s213
      %p215 = scmp.eq.s32.totalorder %s37, 0
      %p216 = por %p214, %p215
      %p217 = scmp.le.s32.totalorder 1, %s31
      %p218 = scmp.lt.s32.totalorder %s31, 5
      %p219 = pnand %p217, %p218
      %p220 = pneg %p219
      // Predicated region
      $region9: #{_trees_run.1} parent=5 // pred_check
        _
      $region10: #{_trees_run.1} parent=5 // pred_check_branch
        %222 = sbr.rel (%p219) target = $region12
      $region11: #{_trees_run.1} parent=5 // pred_region
        %s223 = ssub.s32 %s31, 1
        // Predicated region
        $region13: #{_trees_run.1} parent=11 // pred_check
          %p224 = pneg %p78
        $region14: #{_trees_run.1} parent=11 // pred_check_branch
          %226 = sbr.rel (%p224) target = $region16
        $region15: #{_trees_run.1} parent=11 // pred_region
          %s228 = ssub.s32 512, 512
          %229 = vsyncadd [#allocation11], %s228
          %s230 = sshll.u32 [#allocation10], 4
          %s231 = int_to_ptr.vmem [resolvable:$true] %s230
          %236 = dma.hbm_to_vmem [thread:$0]  %s3, 512, %s231, [#allocation11], 128, 128, 8
        $region16: #{_trees_run.1} parent=11 // pred_fallthru
          _
        // Predicated region
        $region17: #{_trees_run.1} parent=11 // pred_check
          %p237 = pneg %p99
        $region18: #{_trees_run.1} parent=11 // pred_check_branch
          %239 = sbr.rel (%p237) target = $region20
        $region19: #{_trees_run.1} parent=11 // pred_region
          %s241 = ssub.s32 512, 512
          %242 = vsyncadd [#allocation11], %s241
          %s243 = sshll.u32 [#allocation12], 4
          %s244 = int_to_ptr.vmem [resolvable:$true] %s243
          %249 = dma.hbm_to_vmem [thread:$0]  %s4, 512, %s244, [#allocation11], 128, 128, 8
        $region20: #{_trees_run.1} parent=11 // pred_fallthru
          _
        // Predicated region
        $region21: #{_trees_run.1} parent=11 // pred_check
          %p250 = pneg %p120
        $region22: #{_trees_run.1} parent=11 // pred_check_branch
          %252 = sbr.rel (%p250) target = $region24
        $region23: #{_trees_run.1} parent=11 // pred_region
          _
        $region24: #{_trees_run.1} parent=11 // pred_fallthru
          _
        // Predicated region
        $region25: #{_trees_run.1} parent=11 // pred_check
          %p253 = pneg %p141
        $region26: #{_trees_run.1} parent=11 // pred_check_branch
          %255 = sbr.rel (%p253) target = $region28
        $region27: #{_trees_run.1} parent=11 // pred_region
          _
        $region28: #{_trees_run.1} parent=11 // pred_fallthru
          _
        // Predicated region
        $region29: #{_trees_run.1} parent=11 // pred_check
          %p256 = pneg %p162
        $region30: #{_trees_run.1} parent=11 // pred_check_branch
          %258 = sbr.rel (%p256) target = $region32
        $region31: #{_trees_run.1} parent=11 // pred_region
          %s260 = ssub.s32 512, 512
          %261 = vsyncadd [#allocation14], %s260
          %s262 = sshll.u32 [#allocation13], 4
          %s263 = int_to_ptr.vmem [resolvable:$true] %s262
          %268 = dma.hbm_to_vmem [thread:$0]  %s7, 512, %s263, [#allocation14], 128, 128, 8
        $region32: #{_trees_run.1} parent=11 // pred_fallthru
          _
        // Predicated region
        $region33: #{_trees_run.1} parent=11 // pred_check
          %p269 = pneg %p183
        $region34: #{_trees_run.1} parent=11 // pred_check_branch
          %271 = sbr.rel (%p269) target = $region36
        $region35: #{_trees_run.1} parent=11 // pred_region
          _
        $region36: #{_trees_run.1} parent=11 // pred_fallthru
          _
      $region12: #{_trees_run.1} parent=5 // pred_fallthru
        _
      %p272 = scmp.lt.s32.totalorder %s31, 4
      // Predicated region
      $region37: #{_trees_run.1} parent=5 // pred_check
        %p273 = pneg %p272
      $region38: #{_trees_run.1} parent=5 // pred_check_branch
        %275 = sbr.rel (%p273) target = $region40
      $region39: #{_trees_run.1} parent=5 // pred_region
        // Predicated region
        $region41: #{_trees_run.1} parent=39 // pred_check
          %p276 = pneg %p51
        $region42: #{_trees_run.1} parent=39 // pred_check_branch
          %278 = sbr.rel (%p276) target = $region44
        $region43: #{_trees_run.1} parent=39 // pred_region
          %s279 = sand.u32 %s41, 1
          %s280 = scalar_lea.sflag [#allocation8], %s279
          %s281 = sand.u32 %s41, 1
          %s282 = smul.addr %s281, 8
          %s283 = scalar_lea.vmem [#allocation7], %s282
          %s285 = ssub.s32 128, 128
          %286 = vsyncadd %s280, %s285
          %s287 = smul.addr %s31, 128
          %s288 = scalar_lea.hbm %s2, %s287
          %s290 = sshll.u32 %s283, 4
          %s291 = int_to_ptr.vmem [resolvable:$true] %s290
          %293 = dma.hbm_to_vmem [thread:$0]  %s288, 128, %s291, %s280
        $region44: #{_trees_run.1} parent=39 // pred_fallthru
          _
      $region40: #{_trees_run.1} parent=5 // pred_fallthru
        _
      %p294 = scmp.le.s32.totalorder 1, %s31
      %p295 = scmp.lt.s32.totalorder %s31, 5
      %p296 = pnand %p294, %p295
      %p297 = pneg %p296
      // Predicated region
      $region45: #{_trees_run.1} parent=5 // pred_check
        _
      $region46: #{_trees_run.1} parent=5 // pred_check_branch
        %299 = sbr.rel (%p296) target = $region48
      $region47: #{_trees_run.1} parent=5 // pred_region
        %s300 = ssub.s32 %s31, 1
        %s301 = sand.u32 %s44, 1
        %s302 = scalar_lea.sflag [#allocation8], %s301
        %s303 = sand.u32 %s44, 1
        %s304 = smul.addr %s303, 8
        %s305 = scalar_lea.vmem [#allocation7], %s304
        // Predicated region
        $region49: #{_trees_run.1} parent=47 // pred_check
          %p306 = pneg %p57
        $region50: #{_trees_run.1} parent=47 // pred_check_branch
          %308 = sbr.rel (%p306) target = $region52
        $region51: #{_trees_run.1} parent=47 // pred_region
          %309 = dma.done %s302, 128
        $region52: #{_trees_run.1} parent=47 // pred_fallthru
          _
        // Predicated region
        $region53: #{_trees_run.1} parent=47 // pred_check
          %p310 = pneg %p78
        $region54: #{_trees_run.1} parent=47 // pred_check_branch
          %312 = sbr.rel (%p310) target = $region56
        $region55: #{_trees_run.1} parent=47 // pred_region
          %313 = dma.done [#allocation11], 512
        $region56: #{_trees_run.1} parent=47 // pred_fallthru
          _
        // Predicated region
        $region57: #{_trees_run.1} parent=47 // pred_check
          %p314 = pneg %p99
        $region58: #{_trees_run.1} parent=47 // pred_check_branch
          %316 = sbr.rel (%p314) target = $region60
        $region59: #{_trees_run.1} parent=47 // pred_region
          %317 = dma.done [#allocation11], 512
        $region60: #{_trees_run.1} parent=47 // pred_fallthru
          _
        // Predicated region
        $region61: #{_trees_run.1} parent=47 // pred_check
          %p318 = pneg %p162
        $region62: #{_trees_run.1} parent=47 // pred_check_branch
          %320 = sbr.rel (%p318) target = $region64
        $region63: #{_trees_run.1} parent=47 // pred_region
          %321 = dma.done [#allocation14], 512
        $region64: #{_trees_run.1} parent=47 // pred_fallthru
          _
        %s322 = sand.u32 %s44, 1
        %s323 = scalar_lea.sflag [#allocation8], %s322
        %s324 = sand.u32 %s44, 1
        %s325 = smul.addr %s324, 8
        %s326 = scalar_lea.vmem [#allocation7], %s325
        %p327 = pneg %p57
        %p328 = pneg %p54
        %p329 = pneg %p78
        %p330 = pneg %p75
        %p331 = pneg %p99
        %p332 = pneg %p96
        %p333 = pneg %p120
        %p334 = pneg %p117
        %p335 = pneg %p141
        %p336 = pneg %p138
        %p337 = pneg %p162
        %p338 = pneg %p159
        %p339 = pneg %p183
        %p340 = pneg %p180
        %p341 = pneg %p209
        %p342 = pneg %p206
        %s343 = sand.u32 %s196, 1
        %s344 = scalar_lea.sflag [#allocation9], %s343
        %s345 = sand.u32 %s196, 1
        %s346 = scalar_lea.vmem [#allocation15], %s345
        %vm347 = vcmask 253952
        %348 = vst.msk [vmem:[#allocation2 + $0x8] sm:$0x1] %vm347, 0.0
        %349 = vst.msk [vmem:[#allocation3 + $0x8] sm:$0x1] %vm347, 0.0
        %v350 = vld [vmem:[#allocation10] sm:$0xff]
        %v351 = vld [vmem:[#allocation10 + $0x8] sm:$0xff]
        %v352 = vld [vmem:[#allocation10 + $0x10] sm:$0xff]
        %v353 = vld [vmem:[#allocation10 + $0x18] sm:$0xff]
        %v354 = vld [vmem:[#allocation12] sm:$0xff]
        %v355 = vld [vmem:[#allocation12 + $0x8] sm:$0xff]
        %v356 = vld [vmem:[#allocation12 + $0x10] sm:$0xff]
        %v357 = vld [vmem:[#allocation12 + $0x18] sm:$0xff]
        %v358 = vld [vmem:[%s6] sm:$0x1]
        %v359 = vld [vmem:[#allocation13] sm:$0xff]
        %v360 = vld [vmem:[#allocation13 + $0x8] sm:$0xff]
        %v361 = vld [vmem:[#allocation13 + $0x10] sm:$0xff]
        %v362 = vld [vmem:[#allocation13 + $0x18] sm:$0xff]
        %v363 = vld [vmem:[%s8] sm:$0x1]
        %v364 = vld [vmem:[%s305] sm:$0xff]
        %v365 = vld [vmem:[%s5] sm:$0x1]
        %v367 = vlaneseq
        %v368 = vshrl.u32 %v367, 7
        %v369 = vsub.s32 0, %v368
        %v370 = vrot.slane %v365, %v369
        %vm372 = vcmask 261120
        %v374 = vsel %vm372, %v364, 0
        %376 = vmatprep.subr.mxu0 0.0
        %377 = vmatpush1.msra.mxu0 %v350
        %378 = vmatprep.subr.mxu0 0.0
        %379 = vmatpush1.msra.mxu0 %v351
        %380 = vmatprep.subr.mxu0 0.0
        %381 = vmatpush1.msra.mxu0 %v352
        %382 = vmatprep.subr.mxu0 0.0
        %383 = vmatpush1.msra.mxu0 %v353
        %384 = vmatprep.subr.mxu0 0.0
        %385 = vmatpush1.msra.mxu0 0.0
        %386 = vmatprep.subr.mxu0 0.0
        %387 = vmatpush1.msra.mxu0 0.0
        %388 = vmatprep.subr.mxu0 0.0
        %389 = vmatpush1.msra.mxu0 0.0
        %390 = vmatprep.subr.mxu0 0.0
        %391 = vmatpush1.msra.mxu0 0.0
        %392 = vmatprep.subr.mxu0 0.0
        %393 = vmatpush1.msra.mxu0 0.0
        %394 = vmatprep.subr.mxu0 0.0
        %395 = vmatpush1.msra.mxu0 0.0
        %396 = vmatprep.subr.mxu0 0.0
        %397 = vmatpush1.msra.mxu0 0.0
        %398 = vmatprep.subr.mxu0 0.0
        %399 = vmatpush1.msra.mxu0 0.0
        %400 = vmatprep.subr.mxu0 0.0
        %401 = vmatpush1.msra.mxu0 0.0
        %402 = vmatprep.subr.mxu0 0.0
        %403 = vmatpush1.msra.mxu0 0.0
        %404 = vmatprep.subr.mxu0 0.0
        %405 = vmatpush1.msra.mxu0 0.0
        %406 = vmatprep.subr.mxu0 0.0
        %407 = vmatpush1.msra.mxu0 0.0
        %408 = vmatprep.subr.mxu0 0.0
        %409 = vmatpush1.msra.mxu0 0.0
        %410 = vmatprep.subr.mxu0 0.0
        %411 = vmatpush1.msra.mxu0 0.0
        %412 = vmatprep.subr.mxu0 0.0
        %413 = vmatpush1.msra.mxu0 0.0
        %414 = vmatprep.subr.mxu0 0.0
        %415 = vmatpush1.msra.mxu0 0.0
        %416 = vmatprep.subr.mxu0 0.0
        %417 = vmatpush1.msra.mxu0 0.0
        %418 = vmatprep.subr.mxu0 0.0
        %419 = vmatpush1.msra.mxu0 0.0
        %420 = vmatprep.subr.mxu0 0.0
        %421 = vmatpush1.msra.mxu0 0.0
        %422 = vmatprep.subr.mxu0 0.0
        %423 = vmatpush1.msra.mxu0 0.0
        %424 = vmatprep.subr.mxu0 0.0
        %425 = vmatpush1.msra.mxu0 0.0
        %426 = vmatprep.subr.mxu0 0.0
        %427 = vmatpush1.msra.mxu0 0.0
        %428 = vmatprep.subr.mxu0 0.0
        %429 = vmatpush1.msra.mxu0 0.0
        %430 = vmatprep.subr.mxu0 0.0
        %431 = vmatpush1.msra.mxu0 0.0
        %432 = vmatprep.subr.mxu0 0.0
        %433 = vmatpush1.msra.mxu0 0.0
        %434 = vmatprep.subr.mxu0 0.0
        %435 = vmatpush1.msra.mxu0 0.0
        %436 = vmatprep.subr.mxu0 0.0
        %437 = vmatpush1.msra.mxu0 0.0
        %438 = vmatprep.subr.mxu0 0.0
        %439 = vmatpush1.msra.mxu0 0.0
        %440 = vmatprep.mubr.f32.mxu0 0.0
        %441 = vmatmul.mubr.f32.gmra.mrb[0].mxu0 %v374
        %v442 = vpop.f32.mrb[0].mxu0
        %v443 = vadd.f32 %v370, %v442
        %v444 = vpop.f32.mrb[0].mxu0
        %445 = vdwg.mxu0
        %s446 = sld [smem:[#allocation6 + %s36]]
        %v447 = vstv %s446
        %vm448 = vcmp.eq.s32.totalorder %v447, 1
        %s449 = smul.u32 %s36, 24
        %s450 = sld [smem:[#allocation5 + %s449]]
        %s451 = scalar_lea.vmem [#allocation2], %s450
        %v452 = vld [vmem:[%s451] sm:$0x1]
        %s453 = scalar_lea.vmem [#allocation3], %s450
        %v454 = vld [vmem:[%s453] sm:$0x1]
        %s455 = sadd.s32 %s449, 1
        %s456 = sld [smem:[#allocation5 + %s455]]
        %s457 = scalar_lea.vmem [#allocation2], %s456
        %v458 = vld [vmem:[%s457] sm:$0x1]
        %s459 = scalar_lea.vmem [#allocation3], %s456
        %v460 = vld [vmem:[%s459] sm:$0x1]
        %s461 = sadd.s32 %s449, 2
        %s462 = sld [smem:[#allocation5 + %s461]]
        %s463 = scalar_lea.vmem [#allocation2], %s462
        %v464 = vld [vmem:[%s463] sm:$0x1]
        %s465 = scalar_lea.vmem [#allocation3], %s462
        %v466 = vld [vmem:[%s465] sm:$0x1]
        %v468 = vrot.slane %v458, 7
        %v471 = vrot.slane %v464, 6
        %vm473 = vcmask 1040384
        %v474 = vsel %vm473, %v452, %v468
        %vm475 = vcmask 1041408
        %v476 = vsel %vm475, %v474, %v471
        %v478 = vrot.slane %v460, 7
        %v481 = vrot.slane %v466, 6
        %v483 = vsel %vm473, %v454, %v478
        %v484 = vsel %vm475, %v483, %v481
        %vm485 = vcmask 256000
        %v486 = vsel %vm485, %v484, 0.0
        %v487 = vrot.slane %v486, 4
        %v488 = vadd.f32 %v486, %v487
        %v489 = vrot.slane %v488, 2
        %v490 = vadd.f32 %v488, %v489
        %v491 = vrot.slane %v490, 1
        %v492 = vadd.f32 %v490, %v491
        %v494 = vsel %vm372, %v492, 0
        %496 = vmatprep.subr.mxu0 0.0
        %497 = vmatpush1.msra.mxu0 %v359
        %498 = vmatprep.subr.mxu0 0.0
        %499 = vmatpush1.msra.mxu0 %v360
        %500 = vmatprep.subr.mxu0 0.0
        %501 = vmatpush1.msra.mxu0 %v361
        %502 = vmatprep.subr.mxu0 0.0
        %503 = vmatpush1.msra.mxu0 %v362
        %504 = vmatprep.subr.mxu0 0.0
        %505 = vmatpush1.msra.mxu0 0.0
        %506 = vmatprep.subr.mxu0 0.0
        %507 = vmatpush1.msra.mxu0 0.0
        %508 = vmatprep.subr.mxu0 0.0
        %509 = vmatpush1.msra.mxu0 0.0
        %510 = vmatprep.subr.mxu0 0.0
        %511 = vmatpush1.msra.mxu0 0.0
        %512 = vmatprep.subr.mxu0 0.0
        %513 = vmatpush1.msra.mxu0 0.0
        %514 = vmatprep.subr.mxu0 0.0
        %515 = vmatpush1.msra.mxu0 0.0
        %516 = vmatprep.subr.mxu0 0.0
        %517 = vmatpush1.msra.mxu0 0.0
        %518 = vmatprep.subr.mxu0 0.0
        %519 = vmatpush1.msra.mxu0 0.0
        %520 = vmatprep.subr.mxu0 0.0
        %521 = vmatpush1.msra.mxu0 0.0
        %522 = vmatprep.subr.mxu0 0.0
        %523 = vmatpush1.msra.mxu0 0.0
        %524 = vmatprep.subr.mxu0 0.0
        %525 = vmatpush1.msra.mxu0 0.0
        %526 = vmatprep.subr.mxu0 0.0
        %527 = vmatpush1.msra.mxu0 0.0
        %528 = vmatprep.subr.mxu0 0.0
        %529 = vmatpush1.msra.mxu0 0.0
        %530 = vmatprep.subr.mxu0 0.0
        %531 = vmatpush1.msra.mxu0 0.0
        %532 = vmatprep.subr.mxu0 0.0
        %533 = vmatpush1.msra.mxu0 0.0
        %534 = vmatprep.subr.mxu0 0.0
        %535 = vmatpush1.msra.mxu0 0.0
        %536 = vmatprep.subr.mxu0 0.0
        %537 = vmatpush1.msra.mxu0 0.0
        %538 = vmatprep.subr.mxu0 0.0
        %539 = vmatpush1.msra.mxu0 0.0
        %540 = vmatprep.subr.mxu0 0.0
        %541 = vmatpush1.msra.mxu0 0.0
        %542 = vmatprep.subr.mxu0 0.0
        %543 = vmatpush1.msra.mxu0 0.0
        %544 = vmatprep.subr.mxu0 0.0
        %545 = vmatpush1.msra.mxu0 0.0
        %546 = vmatprep.subr.mxu0 0.0
        %547 = vmatpush1.msra.mxu0 0.0
        %548 = vmatprep.subr.mxu0 0.0
        %549 = vmatpush1.msra.mxu0 0.0
        %550 = vmatprep.subr.mxu0 0.0
        %551 = vmatpush1.msra.mxu0 0.0
        %552 = vmatprep.subr.mxu0 0.0
        %553 = vmatpush1.msra.mxu0 0.0
        %554 = vmatprep.subr.mxu0 0.0
        %555 = vmatpush1.msra.mxu0 0.0
        %556 = vmatprep.subr.mxu0 0.0
        %557 = vmatpush1.msra.mxu0 0.0
        %558 = vmatprep.subr.mxu0 0.0
        %559 = vmatpush1.msra.mxu0 0.0
        %560 = vmatprep.mubr.f32.mxu0 0.0
        %561 = vmatmul.mubr.f32.gmra.mrb[0].mxu0 %v494
        %v562 = vpop.f32.mrb[0].mxu0
        %v563 = vadd.f32 %v363, %v562
        %v564 = vpop.f32.mrb[0].mxu0
        %565 = vdwg.mxu0
        %v566 = vsel %vm448, %v563, %v492
        %v568 = vrot.slane %v484, 7
        %v570 = vsel %vm473, %v566, %v568
        %v572 = vlaneseq
        %v573 = vshrl.u32 %v572, 7
        %v574 = vsub.s32 0, %v573
        %v575 = vrot.slane %v358, %v574
        %v578 = vsel %vm372, %v570, 0
        %580 = vmatprep.subr.mxu0 0.0
        %581 = vmatpush1.msra.mxu0 %v354
        %582 = vmatprep.subr.mxu0 0.0
        %583 = vmatpush1.msra.mxu0 %v355
        %584 = vmatprep.subr.mxu0 0.0
        %585 = vmatpush1.msra.mxu0 %v356
        %586 = vmatprep.subr.mxu0 0.0
        %587 = vmatpush1.msra.mxu0 %v357
        %588 = vmatprep.subr.mxu0 0.0
        %589 = vmatpush1.msra.mxu0 0.0
        %590 = vmatprep.subr.mxu0 0.0
        %591 = vmatpush1.msra.mxu0 0.0
        %592 = vmatprep.subr.mxu0 0.0
        %593 = vmatpush1.msra.mxu0 0.0
        %594 = vmatprep.subr.mxu0 0.0
        %595 = vmatpush1.msra.mxu0 0.0
        %596 = vmatprep.subr.mxu0 0.0
        %597 = vmatpush1.msra.mxu0 0.0
        %598 = vmatprep.subr.mxu0 0.0
        %599 = vmatpush1.msra.mxu0 0.0
        %600 = vmatprep.subr.mxu0 0.0
        %601 = vmatpush1.msra.mxu0 0.0
        %602 = vmatprep.subr.mxu0 0.0
        %603 = vmatpush1.msra.mxu0 0.0
        %604 = vmatprep.subr.mxu0 0.0
        %605 = vmatpush1.msra.mxu0 0.0
        %606 = vmatprep.subr.mxu0 0.0
        %607 = vmatpush1.msra.mxu0 0.0
        %608 = vmatprep.subr.mxu0 0.0
        %609 = vmatpush1.msra.mxu0 0.0
        %610 = vmatprep.subr.mxu0 0.0
        %611 = vmatpush1.msra.mxu0 0.0
        %612 = vmatprep.subr.mxu0 0.0
        %613 = vmatpush1.msra.mxu0 0.0
        %614 = vmatprep.subr.mxu0 0.0
        %615 = vmatpush1.msra.mxu0 0.0
        %616 = vmatprep.subr.mxu0 0.0
        %617 = vmatpush1.msra.mxu0 0.0
        %618 = vmatprep.subr.mxu0 0.0
        %619 = vmatpush1.msra.mxu0 0.0
        %620 = vmatprep.subr.mxu0 0.0
        %621 = vmatpush1.msra.mxu0 0.0
        %622 = vmatprep.subr.mxu0 0.0
        %623 = vmatpush1.msra.mxu0 0.0
        %624 = vmatprep.subr.mxu0 0.0
        %625 = vmatpush1.msra.mxu0 0.0
        %626 = vmatprep.subr.mxu0 0.0
        %627 = vmatpush1.msra.mxu0 0.0
        %628 = vmatprep.subr.mxu0 0.0
        %629 = vmatpush1.msra.mxu0 0.0
        %630 = vmatprep.subr.mxu0 0.0
        %631 = vmatpush1.msra.mxu0 0.0
        %632 = vmatprep.subr.mxu0 0.0
        %633 = vmatpush1.msra.mxu0 0.0
        %634 = vmatprep.subr.mxu0 0.0
        %635 = vmatpush1.msra.mxu0 0.0
        %636 = vmatprep.subr.mxu0 0.0
        %637 = vmatpush1.msra.mxu0 0.0
        %638 = vmatprep.subr.mxu0 0.0
        %639 = vmatpush1.msra.mxu0 0.0
        %640 = vmatprep.subr.mxu0 0.0
        %641 = vmatpush1.msra.mxu0 0.0
        %642 = vmatprep.subr.mxu0 0.0
        %643 = vmatpush1.msra.mxu0 0.0
        %644 = vmatprep.mubr.f32.mxu0 0.0
        %645 = vmatmul.mubr.f32.gmra.mrb[0].mxu0 %v578
        %v646 = vpop.f32.mrb[0].mxu0
        %v647 = vadd.f32 %v575, %v646
        %v648 = vpop.f32.mrb[0].mxu0
        %649 = vdwg.mxu0
        %v650 = vadd.f32 %v443, %v647
        %v651 = vxor.u32 %v650, 2147483648
        %v652 = vmul.f32 %v651, 1.442695
        %v653 = vpow.pop %v652
        %v654 = vadd.f32 %v653, 1.0
        %v655 = vrcp.pop %v654
        %v656 = vmul.f32 1.0, %v655
        %v657 = vtanh.pop %v650
        %v658 = vlaneseq
        %v659 = vshrl.u32 %v658, 7
        %v660 = vsub.s32 0, %v659
        %v661 = vrot.slane %v443, %v660
        %v662 = vadd.f32 %v647, %v661
        %v663 = vxor.u32 %v662, 2147483648
        %v664 = vmul.f32 %v663, 1.442695
        %v665 = vpow.pop %v664
        %v666 = vadd.f32 %v665, 1.0
        %v667 = vrcp.pop %v666
        %v668 = vmul.f32 1.0, %v667
        %670 = vrot.lane.b32.xlu0 %v657, 64
        %v671 = vpop.permute.xlu0 %670
        %v673 = vmul.f32 %v656, %v671
        %v675 = vrot.slane %v476, 7
        %676 = vrot.lane.b32.xlu0 %v675, 96
        %v677 = vpop.permute.xlu0 %676
        %v679 = vmul.f32 %v668, %v677
        %v681 = vrot.slane %v679, 1
        %vm683 = vcmask 1043200
        %v684 = vsel %vm683, %v681, 0.0
        %v685 = vrot.slane %v684, 4
        %v686 = vadd.f32 %v684, %v685
        %v687 = vrot.slane %v686, 2
        %v688 = vadd.f32 %v686, %v687
        %v689 = vrot.slane %v688, 1
        %v690 = vadd.f32 %v688, %v689
        %692 = vrot.lane.b32.xlu0 %v690, 32
        %v693 = vpop.permute.xlu0 %692
        %v695 = vadd.f32 %v673, %v693
        %v696 = vtanh.pop %v695
        %698 = vrot.lane.b32.xlu0 %v696, 32
        %v699 = vpop.permute.xlu0 %698
        %v701 = vmul.f32 %v656, %v699
        %703 = vrot.lane.b32.xlu0 %v701, 96
        %v704 = vpop.permute.xlu0 %703
        %706 = vst.msk [vmem:[#allocation2] sm:$0x1] %vm347, %v704
        %707 = vst.msk [vmem:[#allocation3] sm:$0x1] %vm347, %v695
        %s708 = sadd.s32 %s449, 3
        %s709 = sld [smem:[#allocation5 + %s708]]
        %s710 = scalar_lea.vmem [#allocation2], %s709
        %v711 = vld [vmem:[%s710] sm:$0x1]
        %s712 = scalar_lea.vmem [#allocation3], %s709
        %v713 = vld [vmem:[%s712] sm:$0x1]
        %s714 = sadd.s32 %s449, 4
        %s715 = sld [smem:[#allocation5 + %s714]]
        %s716 = scalar_lea.vmem [#allocation2], %s715
        %v717 = vld [vmem:[%s716] sm:$0x1]
        %s718 = scalar_lea.vmem [#allocation3], %s715
        %v719 = vld [vmem:[%s718] sm:$0x1]
        %s720 = sadd.s32 %s449, 5
        %s721 = sld [smem:[#allocation5 + %s720]]
        %s722 = scalar_lea.vmem [#allocation2], %s721
        %v723 = vld [vmem:[%s722] sm:$0x1]
        %s724 = scalar_lea.vmem [#allocation3], %s721
        %v725 = vld [vmem:[%s724] sm:$0x1]
        %v727 = vrot.slane %v717, 7
        %v730 = vrot.slane %v723, 6
        %v732 = vsel %vm473, %v711, %v727
        %v733 = vsel %vm475, %v732, %v730
        %v735 = vrot.slane %v719, 7
        %v738 = vrot.slane %v725, 6
        %v740 = vsel %vm473, %v713, %v735
        %v741 = vsel %vm475, %v740, %v738
        %v742 = vsel %vm485, %v741, 0.0
        %v743 = vrot.slane %v742, 4
        %v744 = vadd.f32 %v742, %v743
        %v745 = vrot.slane %v744, 2
        %v746 = vadd.f32 %v744, %v745
        %v747 = vrot.slane %v746, 1
        %v748 = vadd.f32 %v746, %v747
        %v750 = vsel %vm372, %v748, 0
        %752 = vmatprep.subr.mxu0 0.0
        %753 = vmatpush1.msra.mxu0 %v359
        %754 = vmatprep.subr.mxu0 0.0
        %755 = vmatpush1.msra.mxu0 %v360
        %756 = vmatprep.subr.mxu0 0.0
        %757 = vmatpush1.msra.mxu0 %v361
        %758 = vmatprep.subr.mxu0 0.0
        %759 = vmatpush1.msra.mxu0 %v362
        %760 = vmatprep.subr.mxu0 0.0
        %761 = vmatpush1.msra.mxu0 0.0
        %762 = vmatprep.subr.mxu0 0.0
        %763 = vmatpush1.msra.mxu0 0.0
        %764 = vmatprep.subr.mxu0 0.0
        %765 = vmatpush1.msra.mxu0 0.0
        %766 = vmatprep.subr.mxu0 0.0
        %767 = vmatpush1.msra.mxu0 0.0
        %768 = vmatprep.subr.mxu0 0.0
        %769 = vmatpush1.msra.mxu0 0.0
        %770 = vmatprep.subr.mxu0 0.0
        %771 = vmatpush1.msra.mxu0 0.0
        %772 = vmatprep.subr.mxu0 0.0
        %773 = vmatpush1.msra.mxu0 0.0
        %774 = vmatprep.subr.mxu0 0.0
        %775 = vmatpush1.msra.mxu0 0.0
        %776 = vmatprep.subr.mxu0 0.0
        %777 = vmatpush1.msra.mxu0 0.0
        %778 = vmatprep.subr.mxu0 0.0
        %779 = vmatpush1.msra.mxu0 0.0
        %780 = vmatprep.subr.mxu0 0.0
        %781 = vmatpush1.msra.mxu0 0.0
        %782 = vmatprep.subr.mxu0 0.0
        %783 = vmatpush1.msra.mxu0 0.0
        %784 = vmatprep.subr.mxu0 0.0
        %785 = vmatpush1.msra.mxu0 0.0
        %786 = vmatprep.subr.mxu0 0.0
        %787 = vmatpush1.msra.mxu0 0.0
        %788 = vmatprep.subr.mxu0 0.0
        %789 = vmatpush1.msra.mxu0 0.0
        %790 = vmatprep.subr.mxu0 0.0
        %791 = vmatpush1.msra.mxu0 0.0
        %792 = vmatprep.subr.mxu0 0.0
        %793 = vmatpush1.msra.mxu0 0.0
        %794 = vmatprep.subr.mxu0 0.0
        %795 = vmatpush1.msra.mxu0 0.0
        %796 = vmatprep.subr.mxu0 0.0
        %797 = vmatpush1.msra.mxu0 0.0
        %798 = vmatprep.subr.mxu0 0.0
        %799 = vmatpush1.msra.mxu0 0.0
        %800 = vmatprep.subr.mxu0 0.0
        %801 = vmatpush1.msra.mxu0 0.0
        %802 = vmatprep.subr.mxu0 0.0
        %803 = vmatpush1.msra.mxu0 0.0
        %804 = vmatprep.subr.mxu0 0.0
        %805 = vmatpush1.msra.mxu0 0.0
        %806 = vmatprep.subr.mxu0 0.0
        %807 = vmatpush1.msra.mxu0 0.0
        %808 = vmatprep.subr.mxu0 0.0
        %809 = vmatpush1.msra.mxu0 0.0
        %810 = vmatprep.subr.mxu0 0.0
        %811 = vmatpush1.msra.mxu0 0.0
        %812 = vmatprep.subr.mxu0 0.0
        %813 = vmatpush1.msra.mxu0 0.0
        %814 = vmatprep.subr.mxu0 0.0
        %815 = vmatpush1.msra.mxu0 0.0
        %816 = vmatprep.mubr.f32.mxu0 0.0
        %817 = vmatmul.mubr.f32.gmra.mrb[0].mxu0 %v750
        %v818 = vpop.f32.mrb[0].mxu0
        %v819 = vadd.f32 %v363, %v818
        %v820 = vpop.f32.mrb[0].mxu0
        %821 = vdwg.mxu0
        %v822 = vsel %vm448, %v819, %v748
        %v824 = vrot.slane %v741, 7
        %v826 = vsel %vm473, %v822, %v824
        %v828 = vsel %vm372, %v826, 0
        %830 = vmatprep.subr.mxu0 0.0
        %831 = vmatpush1.msra.mxu0 %v354
        %832 = vmatprep.subr.mxu0 0.0
        %833 = vmatpush1.msra.mxu0 %v355
        %834 = vmatprep.subr.mxu0 0.0
        %835 = vmatpush1.msra.mxu0 %v356
        %836 = vmatprep.subr.mxu0 0.0
        %837 = vmatpush1.msra.mxu0 %v357
        %838 = vmatprep.subr.mxu0 0.0
        %839 = vmatpush1.msra.mxu0 0.0
        %840 = vmatprep.subr.mxu0 0.0
        %841 = vmatpush1.msra.mxu0 0.0
        %842 = vmatprep.subr.mxu0 0.0
        %843 = vmatpush1.msra.mxu0 0.0
        %844 = vmatprep.subr.mxu0 0.0
        %845 = vmatpush1.msra.mxu0 0.0
        %846 = vmatprep.subr.mxu0 0.0
        %847 = vmatpush1.msra.mxu0 0.0
        %848 = vmatprep.subr.mxu0 0.0
        %849 = vmatpush1.msra.mxu0 0.0
        %850 = vmatprep.subr.mxu0 0.0
        %851 = vmatpush1.msra.mxu0 0.0
        %852 = vmatprep.subr.mxu0 0.0
        %853 = vmatpush1.msra.mxu0 0.0
        %854 = vmatprep.subr.mxu0 0.0
        %855 = vmatpush1.msra.mxu0 0.0
        %856 = vmatprep.subr.mxu0 0.0
        %857 = vmatpush1.msra.mxu0 0.0
        %858 = vmatprep.subr.mxu0 0.0
        %859 = vmatpush1.msra.mxu0 0.0
        %860 = vmatprep.subr.mxu0 0.0
        %861 = vmatpush1.msra.mxu0 0.0
        %862 = vmatprep.subr.mxu0 0.0
        %863 = vmatpush1.msra.mxu0 0.0
        %864 = vmatprep.subr.mxu0 0.0
        %865 = vmatpush1.msra.mxu0 0.0
        %866 = vmatprep.subr.mxu0 0.0
        %867 = vmatpush1.msra.mxu0 0.0
        %868 = vmatprep.subr.mxu0 0.0
        %869 = vmatpush1.msra.mxu0 0.0
        %870 = vmatprep.subr.mxu0 0.0
        %871 = vmatpush1.msra.mxu0 0.0
        %872 = vmatprep.subr.mxu0 0.0
        %873 = vmatpush1.msra.mxu0 0.0
        %874 = vmatprep.subr.mxu0 0.0
        %875 = vmatpush1.msra.mxu0 0.0
        %876 = vmatprep.subr.mxu0 0.0
        %877 = vmatpush1.msra.mxu0 0.0
        %878 = vmatprep.subr.mxu0 0.0
        %879 = vmatpush1.msra.mxu0 0.0
        %880 = vmatprep.subr.mxu0 0.0
        %881 = vmatpush1.msra.mxu0 0.0
        %882 = vmatprep.subr.mxu0 0.0
        %883 = vmatpush1.msra.mxu0 0.0
        %884 = vmatprep.subr.mxu0 0.0
        %885 = vmatpush1.msra.mxu0 0.0
        %886 = vmatprep.subr.mxu0 0.0
        %887 = vmatpush1.msra.mxu0 0.0
        %888 = vmatprep.subr.mxu0 0.0
        %889 = vmatpush1.msra.mxu0 0.0
        %890 = vmatprep.subr.mxu0 0.0
        %891 = vmatpush1.msra.mxu0 0.0
        %892 = vmatprep.subr.mxu0 0.0
        %893 = vmatpush1.msra.mxu0 0.0
        %894 = vmatprep.mubr.f32.mxu0 0.0
        %895 = vmatmul.mubr.f32.gmra.mrb[0].mxu0 %v828
        %v896 = vpop.f32.mrb[0].mxu0
        %v897 = vadd.f32 %v575, %v896
        %v898 = vpop.f32.mrb[0].mxu0
        %899 = vdwg.mxu0
        %v901 = vrot.slane %v897, 7
        %v903 = vadd.f32 %v443, %v901
        %v904 = vxor.u32 %v903, 2147483648
        %v905 = vmul.f32 %v904, 1.442695
        %v906 = vpow.pop %v905
        %v907 = vadd.f32 %v906, 1.0
        %v908 = vrcp.pop %v907
        %v909 = vmul.f32 1.0, %v908
        %v910 = vtanh.pop %v903
        %v911 = vlaneseq
        %v912 = vshrl.u32 %v911, 7
        %v913 = vsub.s32 1, %v912
        %v914 = vrot.slane %v443, %v913
        %v915 = vadd.f32 %v897, %v914
        %v916 = vxor.u32 %v915, 2147483648
        %v917 = vmul.f32 %v916, 1.442695
        %v918 = vpow.pop %v917
        %v919 = vadd.f32 %v918, 1.0
        %v920 = vrcp.pop %v919
        %v921 = vmul.f32 1.0, %v920
        %923 = vrot.lane.b32.xlu0 %v910, 64
        %v924 = vpop.permute.xlu0 %923
        %v926 = vmul.f32 %v909, %v924
        %v928 = vrot.slane %v733, 7
        %929 = vrot.lane.b32.xlu0 %v928, 96
        %v930 = vpop.permute.xlu0 %929
        %v932 = vmul.f32 %v921, %v930
        %v934 = vrot.slane %v932, 1
        %v936 = vsel %vm683, %v934, 0.0
        %v937 = vrot.slane %v936, 4
        %v938 = vadd.f32 %v936, %v937
        %v939 = vrot.slane %v938, 2
        %v940 = vadd.f32 %v938, %v939
        %v941 = vrot.slane %v940, 1
        %v942 = vadd.f32 %v940, %v941
        %944 = vrot.lane.b32.xlu0 %v942, 32
        %v945 = vpop.permute.xlu0 %944
        %v947 = vadd.f32 %v926, %v945
        %v948 = vtanh.pop %v947
        %950 = vrot.lane.b32.xlu0 %v948, 32
        %v951 = vpop.permute.xlu0 %950
        %v953 = vmul.f32 %v909, %v951
        %955 = vrot.lane.b32.xlu0 %v953, 96
        %v956 = vpop.permute.xlu0 %955
        %vm958 = vcmask 254977
        %959 = vst.msk [vmem:[#allocation2] sm:$0x2] %vm958, %v956
        %960 = vst.msk [vmem:[#allocation3] sm:$0x2] %vm958, %v947
        %s961 = sadd.s32 %s449, 6
        %s962 = sld [smem:[#allocation5 + %s961]]
        %s963 = scalar_lea.vmem [#allocation2], %s962
        %v964 = vld [vmem:[%s963] sm:$0x1]
        %s965 = scalar_lea.vmem [#allocation3], %s962
        %v966 = vld [vmem:[%s965] sm:$0x1]
        %s967 = sadd.s32 %s449, 7
        %s968 = sld [smem:[#allocation5 + %s967]]
        %s969 = scalar_lea.vmem [#allocation2], %s968
        %v970 = vld [vmem:[%s969] sm:$0x1]
        %s971 = scalar_lea.vmem [#allocation3], %s968
        %v972 = vld [vmem:[%s971] sm:$0x1]
        %s973 = sadd.s32 %s449, 8
        %s974 = sld [smem:[#allocation5 + %s973]]
        %s975 = scalar_lea.vmem [#allocation2], %s974
        %v976 = vld [vmem:[%s975] sm:$0x1]
        %s977 = scalar_lea.vmem [#allocation3], %s974
        %v978 = vld [vmem:[%s977] sm:$0x1]
        %v980 = vrot.slane %v970, 7
        %v983 = vrot.slane %v976, 6
        %v985 = vsel %vm473, %v964, %v980
        %v986 = vsel %vm475, %v985, %v983
        %v988 = vrot.slane %v972, 7
        %v991 = vrot.slane %v978, 6
        %v993 = vsel %vm473, %v966, %v988
        %v994 = vsel %vm475, %v993, %v991
        %v995 = vsel %vm485, %v994, 0.0
        %v996 = vrot.slane %v995, 4
        %v997 = vadd.f32 %v995, %v996
        %v998 = vrot.slane %v997, 2
        %v999 = vadd.f32 %v997, %v998
        %v1000 = vrot.slane %v999, 1
        %v1001 = vadd.f32 %v999, %v1000
        %v1003 = vsel %vm372, %v1001, 0
        %1005 = vmatprep.subr.mxu0 0.0
        %1006 = vmatpush1.msra.mxu0 %v359
        %1007 = vmatprep.subr.mxu0 0.0
        %1008 = vmatpush1.msra.mxu0 %v360
        %1009 = vmatprep.subr.mxu0 0.0
        %1010 = vmatpush1.msra.mxu0 %v361
        %1011 = vmatprep.subr.mxu0 0.0
        %1012 = vmatpush1.msra.mxu0 %v362
        %1013 = vmatprep.subr.mxu0 0.0
        %1014 = vmatpush1.msra.mxu0 0.0
        %1015 = vmatprep.subr.mxu0 0.0
        %1016 = vmatpush1.msra.mxu0 0.0
        %1017 = vmatprep.subr.mxu0 0.0
        %1018 = vmatpush1.msra.mxu0 0.0
        %1019 = vmatprep.subr.mxu0 0.0
        %1020 = vmatpush1.msra.mxu0 0.0
        %1021 = vmatprep.subr.mxu0 0.0
        %1022 = vmatpush1.msra.mxu0 0.0
        %1023 = vmatprep.subr.mxu0 0.0
        %1024 = vmatpush1.msra.mxu0 0.0
        %1025 = vmatprep.subr.mxu0 0.0
        %1026 = vmatpush1.msra.mxu0 0.0
        %1027 = vmatprep.subr.mxu0 0.0
        %1028 = vmatpush1.msra.mxu0 0.0
        %1029 = vmatprep.subr.mxu0 0.0
        %1030 = vmatpush1.msra.mxu0 0.0
        %1031 = vmatprep.subr.mxu0 0.0
        %1032 = vmatpush1.msra.mxu0 0.0
        %1033 = vmatprep.subr.mxu0 0.0
        %1034 = vmatpush1.msra.mxu0 0.0
        %1035 = vmatprep.subr.mxu0 0.0
        %1036 = vmatpush1.msra.mxu0 0.0
        %1037 = vmatprep.subr.mxu0 0.0
        %1038 = vmatpush1.msra.mxu0 0.0
        %1039 = vmatprep.subr.mxu0 0.0
        %1040 = vmatpush1.msra.mxu0 0.0
        %1041 = vmatprep.subr.mxu0 0.0
        %1042 = vmatpush1.msra.mxu0 0.0
        %1043 = vmatprep.subr.mxu0 0.0
        %1044 = vmatpush1.msra.mxu0 0.0
        %1045 = vmatprep.subr.mxu0 0.0
        %1046 = vmatpush1.msra.mxu0 0.0
        %1047 = vmatprep.subr.mxu0 0.0
        %1048 = vmatpush1.msra.mxu0 0.0
        %1049 = vmatprep.subr.mxu0 0.0
        %1050 = vmatpush1.msra.mxu0 0.0
        %1051 = vmatprep.subr.mxu0 0.0
        %1052 = vmatpush1.msra.mxu0 0.0
        %1053 = vmatprep.subr.mxu0 0.0
        %1054 = vmatpush1.msra.mxu0 0.0
        %1055 = vmatprep.subr.mxu0 0.0
        %1056 = vmatpush1.msra.mxu0 0.0
        %1057 = vmatprep.subr.mxu0 0.0
        %1058 = vmatpush1.msra.mxu0 0.0
        %1059 = vmatprep.subr.mxu0 0.0
        %1060 = vmatpush1.msra.mxu0 0.0
        %1061 = vmatprep.subr.mxu0 0.0
        %1062 = vmatpush1.msra.mxu0 0.0
        %1063 = vmatprep.subr.mxu0 0.0
        %1064 = vmatpush1.msra.mxu0 0.0
        %1065 = vmatprep.subr.mxu0 0.0
        %1066 = vmatpush1.msra.mxu0 0.0
        %1067 = vmatprep.subr.mxu0 0.0
        %1068 = vmatpush1.msra.mxu0 0.0
        %1069 = vmatprep.mubr.f32.mxu0 0.0
        %1070 = vmatmul.mubr.f32.gmra.mrb[0].mxu0 %v1003
        %v1071 = vpop.f32.mrb[0].mxu0
        %v1072 = vadd.f32 %v363, %v1071
        %v1073 = vpop.f32.mrb[0].mxu0
        %1074 = vdwg.mxu0
        %v1075 = vsel %vm448, %v1072, %v1001
        %v1077 = vrot.slane %v994, 7
        %v1079 = vsel %vm473, %v1075, %v1077
        %v1081 = vsel %vm372, %v1079, 0
        %1083 = vmatprep.subr.mxu0 0.0
        %1084 = vmatpush1.msra.mxu0 %v354
        %1085 = vmatprep.subr.mxu0 0.0
        %1086 = vmatpush1.msra.mxu0 %v355
        %1087 = vmatprep.subr.mxu0 0.0
        %1088 = vmatpush1.msra.mxu0 %v356
        %1089 = vmatprep.subr.mxu0 0.0
        %1090 = vmatpush1.msra.mxu0 %v357
        %1091 = vmatprep.subr.mxu0 0.0
        %1092 = vmatpush1.msra.mxu0 0.0
        %1093 = vmatprep.subr.mxu0 0.0
        %1094 = vmatpush1.msra.mxu0 0.0
        %1095 = vmatprep.subr.mxu0 0.0
        %1096 = vmatpush1.msra.mxu0 0.0
        %1097 = vmatprep.subr.mxu0 0.0
        %1098 = vmatpush1.msra.mxu0 0.0
        %1099 = vmatprep.subr.mxu0 0.0
        %1100 = vmatpush1.msra.mxu0 0.0
        %1101 = vmatprep.subr.mxu0 0.0
        %1102 = vmatpush1.msra.mxu0 0.0
        %1103 = vmatprep.subr.mxu0 0.0
        %1104 = vmatpush1.msra.mxu0 0.0
        %1105 = vmatprep.subr.mxu0 0.0
        %1106 = vmatpush1.msra.mxu0 0.0
        %1107 = vmatprep.subr.mxu0 0.0
        %1108 = vmatpush1.msra.mxu0 0.0
        %1109 = vmatprep.subr.mxu0 0.0
        %1110 = vmatpush1.msra.mxu0 0.0
        %1111 = vmatprep.subr.mxu0 0.0
        %1112 = vmatpush1.msra.mxu0 0.0
        %1113 = vmatprep.subr.mxu0 0.0
        %1114 = vmatpush1.msra.mxu0 0.0
        %1115 = vmatprep.subr.mxu0 0.0
        %1116 = vmatpush1.msra.mxu0 0.0
        %1117 = vmatprep.subr.mxu0 0.0
        %1118 = vmatpush1.msra.mxu0 0.0
        %1119 = vmatprep.subr.mxu0 0.0
        %1120 = vmatpush1.msra.mxu0 0.0
        %1121 = vmatprep.subr.mxu0 0.0
        %1122 = vmatpush1.msra.mxu0 0.0
        %1123 = vmatprep.subr.mxu0 0.0
        %1124 = vmatpush1.msra.mxu0 0.0
        %1125 = vmatprep.subr.mxu0 0.0
        %1126 = vmatpush1.msra.mxu0 0.0
        %1127 = vmatprep.subr.mxu0 0.0
        %1128 = vmatpush1.msra.mxu0 0.0
        %1129 = vmatprep.subr.mxu0 0.0
        %1130 = vmatpush1.msra.mxu0 0.0
        %1131 = vmatprep.subr.mxu0 0.0
        %1132 = vmatpush1.msra.mxu0 0.0
        %1133 = vmatprep.subr.mxu0 0.0
        %1134 = vmatpush1.msra.mxu0 0.0
        %1135 = vmatprep.subr.mxu0 0.0
        %1136 = vmatpush1.msra.mxu0 0.0
        %1137 = vmatprep.subr.mxu0 0.0
        %1138 = vmatpush1.msra.mxu0 0.0
        %1139 = vmatprep.subr.mxu0 0.0
        %1140 = vmatpush1.msra.mxu0 0.0
        %1141 = vmatprep.subr.mxu0 0.0
        %1142 = vmatpush1.msra.mxu0 0.0
        %1143 = vmatprep.subr.mxu0 0.0
        %1144 = vmatpush1.msra.mxu0 0.0
        %1145 = vmatprep.subr.mxu0 0.0
        %1146 = vmatpush1.msra.mxu0 0.0
        %1147 = vmatprep.mubr.f32.mxu0 0.0
        %1148 = vmatmul.mubr.f32.gmra.mrb[0].mxu0 %v1081
        %v1149 = vpop.f32.mrb[0].mxu0
        %v1150 = vadd.f32 %v575, %v1149
        %v1151 = vpop.f32.mrb[0].mxu0
        %1152 = vdwg.mxu0
        %v1154 = vrot.slane %v1150, 6
        %v1156 = vadd.f32 %v443, %v1154
        %v1157 = vxor.u32 %v1156, 2147483648
        %v1158 = vmul.f32 %v1157, 1.442695
        %v1159 = vpow.pop %v1158
        %v1160 = vadd.f32 %v1159, 1.0
        %v1161 = vrcp.pop %v1160
        %v1162 = vmul.f32 1.0, %v1161
        %v1163 = vtanh.pop %v1156
        %v1164 = vlaneseq
        %v1165 = vshrl.u32 %v1164, 7
        %v1166 = vsub.s32 2, %v1165
        %v1167 = vrot.slane %v443, %v1166
        %v1168 = vadd.f32 %v1150, %v1167
        %v1169 = vxor.u32 %v1168, 2147483648
        %v1170 = vmul.f32 %v1169, 1.442695
        %v1171 = vpow.pop %v1170
        %v1172 = vadd.f32 %v1171, 1.0
        %v1173 = vrcp.pop %v1172
        %v1174 = vmul.f32 1.0, %v1173
        %1176 = vrot.lane.b32.xlu0 %v1163, 64
        %v1177 = vpop.permute.xlu0 %1176
        %v1179 = vmul.f32 %v1162, %v1177
        %v1181 = vrot.slane %v986, 7
        %1182 = vrot.lane.b32.xlu0 %v1181, 96
        %v1183 = vpop.permute.xlu0 %1182
        %v1185 = vmul.f32 %v1174, %v1183
        %v1187 = vrot.slane %v1185, 1
        %v1189 = vsel %vm683, %v1187, 0.0
        %v1190 = vrot.slane %v1189, 4
        %v1191 = vadd.f32 %v1189, %v1190
        %v1192 = vrot.slane %v1191, 2
        %v1193 = vadd.f32 %v1191, %v1192
        %v1194 = vrot.slane %v1193, 1
        %v1195 = vadd.f32 %v1193, %v1194
        %1197 = vrot.lane.b32.xlu0 %v1195, 32
        %v1198 = vpop.permute.xlu0 %1197
        %v1200 = vadd.f32 %v1179, %v1198
        %v1201 = vtanh.pop %v1200
        %1203 = vrot.lane.b32.xlu0 %v1201, 32
        %v1204 = vpop.permute.xlu0 %1203
        %v1206 = vmul.f32 %v1162, %v1204
        %1208 = vrot.lane.b32.xlu0 %v1206, 96
        %v1209 = vpop.permute.xlu0 %1208
        %vm1211 = vcmask 256002
        %1212 = vst.msk [vmem:[#allocation2] sm:$0x4] %vm1211, %v1209
        %1213 = vst.msk [vmem:[#allocation3] sm:$0x4] %vm1211, %v1200
        %s1214 = sadd.s32 %s449, 9
        %s1215 = sld [smem:[#allocation5 + %s1214]]
        %s1216 = scalar_lea.vmem [#allocation2], %s1215
        %v1217 = vld [vmem:[%s1216] sm:$0x1]
        %s1218 = scalar_lea.vmem [#allocation3], %s1215
        %v1219 = vld [vmem:[%s1218] sm:$0x1]
        %s1220 = sadd.s32 %s449, 10
        %s1221 = sld [smem:[#allocation5 + %s1220]]
        %s1222 = scalar_lea.vmem [#allocation2], %s1221
        %v1223 = vld [vmem:[%s1222] sm:$0x1]
        %s1224 = scalar_lea.vmem [#allocation3], %s1221
        %v1225 = vld [vmem:[%s1224] sm:$0x1]
        %s1226 = sadd.s32 %s449, 11
        %s1227 = sld [smem:[#allocation5 + %s1226]]
        %s1228 = scalar_lea.vmem [#allocation2], %s1227
        %v1229 = vld [vmem:[%s1228] sm:$0x1]
        %s1230 = scalar_lea.vmem [#allocation3], %s1227
        %v1231 = vld [vmem:[%s1230] sm:$0x1]
        %v1233 = vrot.slane %v1223, 7
        %v1236 = vrot.slane %v1229, 6
        %v1238 = vsel %vm473, %v1217, %v1233
        %v1239 = vsel %vm475, %v1238, %v1236
        %v1241 = vrot.slane %v1225, 7
        %v1244 = vrot.slane %v1231, 6
        %v1246 = vsel %vm473, %v1219, %v1241
        %v1247 = vsel %vm475, %v1246, %v1244
        %v1248 = vsel %vm485, %v1247, 0.0
        %v1249 = vrot.slane %v1248, 4
        %v1250 = vadd.f32 %v1248, %v1249
        %v1251 = vrot.slane %v1250, 2
        %v1252 = vadd.f32 %v1250, %v1251
        %v1253 = vrot.slane %v1252, 1
        %v1254 = vadd.f32 %v1252, %v1253
        %v1256 = vsel %vm372, %v1254, 0
        %1258 = vmatprep.subr.mxu0 0.0
        %1259 = vmatpush1.msra.mxu0 %v359
        %1260 = vmatprep.subr.mxu0 0.0
        %1261 = vmatpush1.msra.mxu0 %v360
        %1262 = vmatprep.subr.mxu0 0.0
        %1263 = vmatpush1.msra.mxu0 %v361
        %1264 = vmatprep.subr.mxu0 0.0
        %1265 = vmatpush1.msra.mxu0 %v362
        %1266 = vmatprep.subr.mxu0 0.0
        %1267 = vmatpush1.msra.mxu0 0.0
        %1268 = vmatprep.subr.mxu0 0.0
        %1269 = vmatpush1.msra.mxu0 0.0
        %1270 = vmatprep.subr.mxu0 0.0
        %1271 = vmatpush1.msra.mxu0 0.0
        %1272 = vmatprep.subr.mxu0 0.0
        %1273 = vmatpush1.msra.mxu0 0.0
        %1274 = vmatprep.subr.mxu0 0.0
        %1275 = vmatpush1.msra.mxu0 0.0
        %1276 = vmatprep.subr.mxu0 0.0
        %1277 = vmatpush1.msra.mxu0 0.0
        %1278 = vmatprep.subr.mxu0 0.0
        %1279 = vmatpush1.msra.mxu0 0.0
        %1280 = vmatprep.subr.mxu0 0.0
        %1281 = vmatpush1.msra.mxu0 0.0
        %1282 = vmatprep.subr.mxu0 0.0
        %1283 = vmatpush1.msra.mxu0 0.0
        %1284 = vmatprep.subr.mxu0 0.0
        %1285 = vmatpush1.msra.mxu0 0.0
        %1286 = vmatprep.subr.mxu0 0.0
        %1287 = vmatpush1.msra.mxu0 0.0
        %1288 = vmatprep.subr.mxu0 0.0
        %1289 = vmatpush1.msra.mxu0 0.0
        %1290 = vmatprep.subr.mxu0 0.0
        %1291 = vmatpush1.msra.mxu0 0.0
        %1292 = vmatprep.subr.mxu0 0.0
        %1293 = vmatpush1.msra.mxu0 0.0
        %1294 = vmatprep.subr.mxu0 0.0
        %1295 = vmatpush1.msra.mxu0 0.0
        %1296 = vmatprep.subr.mxu0 0.0
        %1297 = vmatpush1.msra.mxu0 0.0
        %1298 = vmatprep.subr.mxu0 0.0
        %1299 = vmatpush1.msra.mxu0 0.0
        %1300 = vmatprep.subr.mxu0 0.0
        %1301 = vmatpush1.msra.mxu0 0.0
        %1302 = vmatprep.subr.mxu0 0.0
        %1303 = vmatpush1.msra.mxu0 0.0
        %1304 = vmatprep.subr.mxu0 0.0
        %1305 = vmatpush1.msra.mxu0 0.0
        %1306 = vmatprep.subr.mxu0 0.0
        %1307 = vmatpush1.msra.mxu0 0.0
        %1308 = vmatprep.subr.mxu0 0.0
        %1309 = vmatpush1.msra.mxu0 0.0
        %1310 = vmatprep.subr.mxu0 0.0
        %1311 = vmatpush1.msra.mxu0 0.0
        %1312 = vmatprep.subr.mxu0 0.0
        %1313 = vmatpush1.msra.mxu0 0.0
        %1314 = vmatprep.subr.mxu0 0.0
        %1315 = vmatpush1.msra.mxu0 0.0
        %1316 = vmatprep.subr.mxu0 0.0
        %1317 = vmatpush1.msra.mxu0 0.0
        %1318 = vmatprep.subr.mxu0 0.0
        %1319 = vmatpush1.msra.mxu0 0.0
        %1320 = vmatprep.subr.mxu0 0.0
        %1321 = vmatpush1.msra.mxu0 0.0
        %1322 = vmatprep.mubr.f32.mxu0 0.0
        %1323 = vmatmul.mubr.f32.gmra.mrb[0].mxu0 %v1256
        %v1324 = vpop.f32.mrb[0].mxu0
        %v1325 = vadd.f32 %v363, %v1324
        %v1326 = vpop.f32.mrb[0].mxu0
        %1327 = vdwg.mxu0
        %v1328 = vsel %vm448, %v1325, %v1254
        %v1330 = vrot.slane %v1247, 7
        %v1332 = vsel %vm473, %v1328, %v1330
        %v1334 = vsel %vm372, %v1332, 0
        %1336 = vmatprep.subr.mxu0 0.0
        %1337 = vmatpush1.msra.mxu0 %v354
        %1338 = vmatprep.subr.mxu0 0.0
        %1339 = vmatpush1.msra.mxu0 %v355
        %1340 = vmatprep.subr.mxu0 0.0
        %1341 = vmatpush1.msra.mxu0 %v356
        %1342 = vmatprep.subr.mxu0 0.0
        %1343 = vmatpush1.msra.mxu0 %v357
        %1344 = vmatprep.subr.mxu0 0.0
        %1345 = vmatpush1.msra.mxu0 0.0
        %1346 = vmatprep.subr.mxu0 0.0
        %1347 = vmatpush1.msra.mxu0 0.0
        %1348 = vmatprep.subr.mxu0 0.0
        %1349 = vmatpush1.msra.mxu0 0.0
        %1350 = vmatprep.subr.mxu0 0.0
        %1351 = vmatpush1.msra.mxu0 0.0
        %1352 = vmatprep.subr.mxu0 0.0
        %1353 = vmatpush1.msra.mxu0 0.0
        %1354 = vmatprep.subr.mxu0 0.0
        %1355 = vmatpush1.msra.mxu0 0.0
        %1356 = vmatprep.subr.mxu0 0.0
        %1357 = vmatpush1.msra.mxu0 0.0
        %1358 = vmatprep.subr.mxu0 0.0
        %1359 = vmatpush1.msra.mxu0 0.0
        %1360 = vmatprep.subr.mxu0 0.0
        %1361 = vmatpush1.msra.mxu0 0.0
        %1362 = vmatprep.subr.mxu0 0.0
        %1363 = vmatpush1.msra.mxu0 0.0
        %1364 = vmatprep.subr.mxu0 0.0
        %1365 = vmatpush1.msra.mxu0 0.0
        %1366 = vmatprep.subr.mxu0 0.0
        %1367 = vmatpush1.msra.mxu0 0.0
        %1368 = vmatprep.subr.mxu0 0.0
        %1369 = vmatpush1.msra.mxu0 0.0
        %1370 = vmatprep.subr.mxu0 0.0
        %1371 = vmatpush1.msra.mxu0 0.0
        %1372 = vmatprep.subr.mxu0 0.0
        %1373 = vmatpush1.msra.mxu0 0.0
        %1374 = vmatprep.subr.mxu0 0.0
        %1375 = vmatpush1.msra.mxu0 0.0
        %1376 = vmatprep.subr.mxu0 0.0
        %1377 = vmatpush1.msra.mxu0 0.0
        %1378 = vmatprep.subr.mxu0 0.0
        %1379 = vmatpush1.msra.mxu0 0.0
        %1380 = vmatprep.subr.mxu0 0.0
        %1381 = vmatpush1.msra.mxu0 0.0
        %1382 = vmatprep.subr.mxu0 0.0
        %1383 = vmatpush1.msra.mxu0 0.0
        %1384 = vmatprep.subr.mxu0 0.0
        %1385 = vmatpush1.msra.mxu0 0.0
        %1386 = vmatprep.subr.mxu0 0.0
        %1387 = vmatpush1.msra.mxu0 0.0
        %1388 = vmatprep.subr.mxu0 0.0
        %1389 = vmatpush1.msra.mxu0 0.0
        %1390 = vmatprep.subr.mxu0 0.0
        %1391 = vmatpush1.msra.mxu0 0.0
        %1392 = vmatprep.subr.mxu0 0.0
        %1393 = vmatpush1.msra.mxu0 0.0
        %1394 = vmatprep.subr.mxu0 0.0
        %1395 = vmatpush1.msra.mxu0 0.0
        %1396 = vmatprep.subr.mxu0 0.0
        %1397 = vmatpush1.msra.mxu0 0.0
        %1398 = vmatprep.subr.mxu0 0.0
        %1399 = vmatpush1.msra.mxu0 0.0
        %1400 = vmatprep.mubr.f32.mxu0 0.0
        %1401 = vmatmul.mubr.f32.gmra.mrb[0].mxu0 %v1334
        %v1402 = vpop.f32.mrb[0].mxu0
        %v1403 = vadd.f32 %v575, %v1402
        %v1404 = vpop.f32.mrb[0].mxu0
        %1405 = vdwg.mxu0
        %v1407 = vrot.slane %v1403, 5
        %v1409 = vadd.f32 %v443, %v1407
        %v1410 = vxor.u32 %v1409, 2147483648
        %v1411 = vmul.f32 %v1410, 1.442695
        %v1412 = vpow.pop %v1411
        %v1413 = vadd.f32 %v1412, 1.0
        %v1414 = vrcp.pop %v1413
        %v1415 = vmul.f32 1.0, %v1414
        %v1416 = vtanh.pop %v1409
        %v1417 = vlaneseq
        %v1418 = vshrl.u32 %v1417, 7
        %v1419 = vsub.s32 3, %v1418
        %v1420 = vrot.slane %v443, %v1419
        %v1421 = vadd.f32 %v1403, %v1420
        %v1422 = vxor.u32 %v1421, 2147483648
        %v1423 = vmul.f32 %v1422, 1.442695
        %v1424 = vpow.pop %v1423
        %v1425 = vadd.f32 %v1424, 1.0
        %v1426 = vrcp.pop %v1425
        %v1427 = vmul.f32 1.0, %v1426
        %1429 = vrot.lane.b32.xlu0 %v1416, 64
        %v1430 = vpop.permute.xlu0 %1429
        %v1432 = vmul.f32 %v1415, %v1430
        %v1434 = vrot.slane %v1239, 7
        %1435 = vrot.lane.b32.xlu0 %v1434, 96
        %v1436 = vpop.permute.xlu0 %1435
        %v1438 = vmul.f32 %v1427, %v1436
        %v1440 = vrot.slane %v1438, 1
        %v1442 = vsel %vm683, %v1440, 0.0
        %v1443 = vrot.slane %v1442, 4
        %v1444 = vadd.f32 %v1442, %v1443
        %v1445 = vrot.slane %v1444, 2
        %v1446 = vadd.f32 %v1444, %v1445
        %v1447 = vrot.slane %v1446, 1
        %v1448 = vadd.f32 %v1446, %v1447
        %1450 = vrot.lane.b32.xlu0 %v1448, 32
        %v1451 = vpop.permute.xlu0 %1450
        %v1453 = vadd.f32 %v1432, %v1451
        %v1454 = vtanh.pop %v1453
        %1456 = vrot.lane.b32.xlu0 %v1454, 32
        %v1457 = vpop.permute.xlu0 %1456
        %v1459 = vmul.f32 %v1415, %v1457
        %1461 = vrot.lane.b32.xlu0 %v1459, 96
        %v1462 = vpop.permute.xlu0 %1461
        %vm1464 = vcmask 257027
        %1465 = vst.msk [vmem:[#allocation2] sm:$0x8] %vm1464, %v1462
        %1466 = vst.msk [vmem:[#allocation3] sm:$0x8] %vm1464, %v1453
        %s1467 = sadd.s32 %s449, 12
        %s1468 = sld [smem:[#allocation5 + %s1467]]
        %s1469 = scalar_lea.vmem [#allocation2], %s1468
        %v1470 = vld [vmem:[%s1469] sm:$0x1]
        %s1471 = scalar_lea.vmem [#allocation3], %s1468
        %v1472 = vld [vmem:[%s1471] sm:$0x1]
        %s1473 = sadd.s32 %s449, 13
        %s1474 = sld [smem:[#allocation5 + %s1473]]
        %s1475 = scalar_lea.vmem [#allocation2], %s1474
        %v1476 = vld [vmem:[%s1475] sm:$0x1]
        %s1477 = scalar_lea.vmem [#allocation3], %s1474
        %v1478 = vld [vmem:[%s1477] sm:$0x1]
        %s1479 = sadd.s32 %s449, 14
        %s1480 = sld [smem:[#allocation5 + %s1479]]
        %s1481 = scalar_lea.vmem [#allocation2], %s1480
        %v1482 = vld [vmem:[%s1481] sm:$0x1]
        %s1483 = scalar_lea.vmem [#allocation3], %s1480
        %v1484 = vld [vmem:[%s1483] sm:$0x1]
        %v1486 = vrot.slane %v1476, 7
        %v1489 = vrot.slane %v1482, 6
        %v1491 = vsel %vm473, %v1470, %v1486
        %v1492 = vsel %vm475, %v1491, %v1489
        %v1494 = vrot.slane %v1478, 7
        %v1497 = vrot.slane %v1484, 6
        %v1499 = vsel %vm473, %v1472, %v1494
        %v1500 = vsel %vm475, %v1499, %v1497
        %v1501 = vsel %vm485, %v1500, 0.0
        %v1502 = vrot.slane %v1501, 4
        %v1503 = vadd.f32 %v1501, %v1502
        %v1504 = vrot.slane %v1503, 2
        %v1505 = vadd.f32 %v1503, %v1504
        %v1506 = vrot.slane %v1505, 1
        %v1507 = vadd.f32 %v1505, %v1506
        %v1509 = vsel %vm372, %v1507, 0
        %1511 = vmatprep.subr.mxu0 0.0
        %1512 = vmatpush1.msra.mxu0 %v359
        %1513 = vmatprep.subr.mxu0 0.0
        %1514 = vmatpush1.msra.mxu0 %v360
        %1515 = vmatprep.subr.mxu0 0.0
        %1516 = vmatpush1.msra.mxu0 %v361
        %1517 = vmatprep.subr.mxu0 0.0
        %1518 = vmatpush1.msra.mxu0 %v362
        %1519 = vmatprep.subr.mxu0 0.0
        %1520 = vmatpush1.msra.mxu0 0.0
        %1521 = vmatprep.subr.mxu0 0.0
        %1522 = vmatpush1.msra.mxu0 0.0
        %1523 = vmatprep.subr.mxu0 0.0
        %1524 = vmatpush1.msra.mxu0 0.0
        %1525 = vmatprep.subr.mxu0 0.0
        %1526 = vmatpush1.msra.mxu0 0.0
        %1527 = vmatprep.subr.mxu0 0.0
        %1528 = vmatpush1.msra.mxu0 0.0
        %1529 = vmatprep.subr.mxu0 0.0
        %1530 = vmatpush1.msra.mxu0 0.0
        %1531 = vmatprep.subr.mxu0 0.0
        %1532 = vmatpush1.msra.mxu0 0.0
        %1533 = vmatprep.subr.mxu0 0.0
        %1534 = vmatpush1.msra.mxu0 0.0
        %1535 = vmatprep.subr.mxu0 0.0
        %1536 = vmatpush1.msra.mxu0 0.0
        %1537 = vmatprep.subr.mxu0 0.0
        %1538 = vmatpush1.msra.mxu0 0.0
        %1539 = vmatprep.subr.mxu0 0.0
        %1540 = vmatpush1.msra.mxu0 0.0
        %1541 = vmatprep.subr.mxu0 0.0
        %1542 = vmatpush1.msra.mxu0 0.0
        %1543 = vmatprep.subr.mxu0 0.0
        %1544 = vmatpush1.msra.mxu0 0.0
        %1545 = vmatprep.subr.mxu0 0.0
        %1546 = vmatpush1.msra.mxu0 0.0
        %1547 = vmatprep.subr.mxu0 0.0
        %1548 = vmatpush1.msra.mxu0 0.0
        %1549 = vmatprep.subr.mxu0 0.0
        %1550 = vmatpush1.msra.mxu0 0.0
        %1551 = vmatprep.subr.mxu0 0.0
        %1552 = vmatpush1.msra.mxu0 0.0
        %1553 = vmatprep.subr.mxu0 0.0
        %1554 = vmatpush1.msra.mxu0 0.0
        %1555 = vmatprep.subr.mxu0 0.0
        %1556 = vmatpush1.msra.mxu0 0.0
        %1557 = vmatprep.subr.mxu0 0.0
        %1558 = vmatpush1.msra.mxu0 0.0
        %1559 = vmatprep.subr.mxu0 0.0
        %1560 = vmatpush1.msra.mxu0 0.0
        %1561 = vmatprep.subr.mxu0 0.0
        %1562 = vmatpush1.msra.mxu0 0.0
        %1563 = vmatprep.subr.mxu0 0.0
        %1564 = vmatpush1.msra.mxu0 0.0
        %1565 = vmatprep.subr.mxu0 0.0
        %1566 = vmatpush1.msra.mxu0 0.0
        %1567 = vmatprep.subr.mxu0 0.0
        %1568 = vmatpush1.msra.mxu0 0.0
        %1569 = vmatprep.subr.mxu0 0.0
        %1570 = vmatpush1.msra.mxu0 0.0
        %1571 = vmatprep.subr.mxu0 0.0
        %1572 = vmatpush1.msra.mxu0 0.0
        %1573 = vmatprep.subr.mxu0 0.0
        %1574 = vmatpush1.msra.mxu0 0.0
        %1575 = vmatprep.mubr.f32.mxu0 0.0
        %1576 = vmatmul.mubr.f32.gmra.mrb[0].mxu0 %v1509
        %v1577 = vpop.f32.mrb[0].mxu0
        %v1578 = vadd.f32 %v363, %v1577
        %v1579 = vpop.f32.mrb[0].mxu0
        %1580 = vdwg.mxu0
        %v1581 = vsel %vm448, %v1578, %v1507
        %v1583 = vrot.slane %v1500, 7
        %v1585 = vsel %vm473, %v1581, %v1583
        %v1587 = vsel %vm372, %v1585, 0
        %1589 = vmatprep.subr.mxu0 0.0
        %1590 = vmatpush1.msra.mxu0 %v354
        %1591 = vmatprep.subr.mxu0 0.0
        %1592 = vmatpush1.msra.mxu0 %v355
        %1593 = vmatprep.subr.mxu0 0.0
        %1594 = vmatpush1.msra.mxu0 %v356
        %1595 = vmatprep.subr.mxu0 0.0
        %1596 = vmatpush1.msra.mxu0 %v357
        %1597 = vmatprep.subr.mxu0 0.0
        %1598 = vmatpush1.msra.mxu0 0.0
        %1599 = vmatprep.subr.mxu0 0.0
        %1600 = vmatpush1.msra.mxu0 0.0
        %1601 = vmatprep.subr.mxu0 0.0
        %1602 = vmatpush1.msra.mxu0 0.0
        %1603 = vmatprep.subr.mxu0 0.0
        %1604 = vmatpush1.msra.mxu0 0.0
        %1605 = vmatprep.subr.mxu0 0.0
        %1606 = vmatpush1.msra.mxu0 0.0
        %1607 = vmatprep.subr.mxu0 0.0
        %1608 = vmatpush1.msra.mxu0 0.0
        %1609 = vmatprep.subr.mxu0 0.0
        %1610 = vmatpush1.msra.mxu0 0.0
        %1611 = vmatprep.subr.mxu0 0.0
        %1612 = vmatpush1.msra.mxu0 0.0
        %1613 = vmatprep.subr.mxu0 0.0
        %1614 = vmatpush1.msra.mxu0 0.0
        %1615 = vmatprep.subr.mxu0 0.0
        %1616 = vmatpush1.msra.mxu0 0.0
        %1617 = vmatprep.subr.mxu0 0.0
        %1618 = vmatpush1.msra.mxu0 0.0
        %1619 = vmatprep.subr.mxu0 0.0
        %1620 = vmatpush1.msra.mxu0 0.0
        %1621 = vmatprep.subr.mxu0 0.0
        %1622 = vmatpush1.msra.mxu0 0.0
        %1623 = vmatprep.subr.mxu0 0.0
        %1624 = vmatpush1.msra.mxu0 0.0
        %1625 = vmatprep.subr.mxu0 0.0
        %1626 = vmatpush1.msra.mxu0 0.0
        %1627 = vmatprep.subr.mxu0 0.0
        %1628 = vmatpush1.msra.mxu0 0.0
        %1629 = vmatprep.subr.mxu0 0.0
        %1630 = vmatpush1.msra.mxu0 0.0
        %1631 = vmatprep.subr.mxu0 0.0
        %1632 = vmatpush1.msra.mxu0 0.0
        %1633 = vmatprep.subr.mxu0 0.0
        %1634 = vmatpush1.msra.mxu0 0.0
        %1635 = vmatprep.subr.mxu0 0.0
        %1636 = vmatpush1.msra.mxu0 0.0
        %1637 = vmatprep.subr.mxu0 0.0
        %1638 = vmatpush1.msra.mxu0 0.0
        %1639 = vmatprep.subr.mxu0 0.0
        %1640 = vmatpush1.msra.mxu0 0.0
        %1641 = vmatprep.subr.mxu0 0.0
        %1642 = vmatpush1.msra.mxu0 0.0
        %1643 = vmatprep.subr.mxu0 0.0
        %1644 = vmatpush1.msra.mxu0 0.0
        %1645 = vmatprep.subr.mxu0 0.0
        %1646 = vmatpush1.msra.mxu0 0.0
        %1647 = vmatprep.subr.mxu0 0.0
        %1648 = vmatpush1.msra.mxu0 0.0
        %1649 = vmatprep.subr.mxu0 0.0
        %1650 = vmatpush1.msra.mxu0 0.0
        %1651 = vmatprep.subr.mxu0 0.0
        %1652 = vmatpush1.msra.mxu0 0.0
        %1653 = vmatprep.mubr.f32.mxu0 0.0
        %1654 = vmatmul.mubr.f32.gmra.mrb[0].mxu0 %v1587
        %v1655 = vpop.f32.mrb[0].mxu0
        %v1656 = vadd.f32 %v575, %v1655
        %v1657 = vpop.f32.mrb[0].mxu0
        %1658 = vdwg.mxu0
        %v1660 = vrot.slane %v1656, 4
        %v1662 = vadd.f32 %v443, %v1660
        %v1663 = vxor.u32 %v1662, 2147483648
        %v1664 = vmul.f32 %v1663, 1.442695
        %v1665 = vpow.pop %v1664
        %v1666 = vadd.f32 %v1665, 1.0
        %v1667 = vrcp.pop %v1666
        %v1668 = vmul.f32 1.0, %v1667
        %v1669 = vtanh.pop %v1662
        %v1670 = vlaneseq
        %v1671 = vshrl.u32 %v1670, 7
        %v1672 = vsub.s32 4, %v1671
        %v1673 = vrot.slane %v443, %v1672
        %v1674 = vadd.f32 %v1656, %v1673
        %v1675 = vxor.u32 %v1674, 2147483648
        %v1676 = vmul.f32 %v1675, 1.442695
        %v1677 = vpow.pop %v1676
        %v1678 = vadd.f32 %v1677, 1.0
        %v1679 = vrcp.pop %v1678
        %v1680 = vmul.f32 1.0, %v1679
        %1682 = vrot.lane.b32.xlu0 %v1669, 64
        %v1683 = vpop.permute.xlu0 %1682
        %v1685 = vmul.f32 %v1668, %v1683
        %v1687 = vrot.slane %v1492, 7
        %1688 = vrot.lane.b32.xlu0 %v1687, 96
        %v1689 = vpop.permute.xlu0 %1688
        %v1691 = vmul.f32 %v1680, %v1689
        %v1693 = vrot.slane %v1691, 1
        %v1695 = vsel %vm683, %v1693, 0.0
        %v1696 = vrot.slane %v1695, 4
        %v1697 = vadd.f32 %v1695, %v1696
        %v1698 = vrot.slane %v1697, 2
        %v1699 = vadd.f32 %v1697, %v1698
        %v1700 = vrot.slane %v1699, 1
        %v1701 = vadd.f32 %v1699, %v1700
        %1703 = vrot.lane.b32.xlu0 %v1701, 32
        %v1704 = vpop.permute.xlu0 %1703
        %v1706 = vadd.f32 %v1685, %v1704
        %v1707 = vtanh.pop %v1706
        %1709 = vrot.lane.b32.xlu0 %v1707, 32
        %v1710 = vpop.permute.xlu0 %1709
        %v1712 = vmul.f32 %v1668, %v1710
        %1714 = vrot.lane.b32.xlu0 %v1712, 96
        %v1715 = vpop.permute.xlu0 %1714
        %vm1717 = vcmask 258052
        %1718 = vst.msk [vmem:[#allocation2] sm:$0x10] %vm1717, %v1715
        %1719 = vst.msk [vmem:[#allocation3] sm:$0x10] %vm1717, %v1706
        %s1720 = sadd.s32 %s449, 15
        %s1721 = sld [smem:[#allocation5 + %s1720]]
        %s1722 = scalar_lea.vmem [#allocation2], %s1721
        %v1723 = vld [vmem:[%s1722] sm:$0x1]
        %s1724 = scalar_lea.vmem [#allocation3], %s1721
        %v1725 = vld [vmem:[%s1724] sm:$0x1]
        %s1726 = sadd.s32 %s449, 16
        %s1727 = sld [smem:[#allocation5 + %s1726]]
        %s1728 = scalar_lea.vmem [#allocation2], %s1727
        %v1729 = vld [vmem:[%s1728] sm:$0x1]
        %s1730 = scalar_lea.vmem [#allocation3], %s1727
        %v1731 = vld [vmem:[%s1730] sm:$0x1]
        %s1732 = sadd.s32 %s449, 17
        %s1733 = sld [smem:[#allocation5 + %s1732]]
        %s1734 = scalar_lea.vmem [#allocation2], %s1733
        %v1735 = vld [vmem:[%s1734] sm:$0x1]
        %s1736 = scalar_lea.vmem [#allocation3], %s1733
        %v1737 = vld [vmem:[%s1736] sm:$0x1]
        %v1739 = vrot.slane %v1729, 7
        %v1742 = vrot.slane %v1735, 6
        %v1744 = vsel %vm473, %v1723, %v1739
        %v1745 = vsel %vm475, %v1744, %v1742
        %v1747 = vrot.slane %v1731, 7
        %v1750 = vrot.slane %v1737, 6
        %v1752 = vsel %vm473, %v1725, %v1747
        %v1753 = vsel %vm475, %v1752, %v1750
        %v1754 = vsel %vm485, %v1753, 0.0
        %v1755 = vrot.slane %v1754, 4
        %v1756 = vadd.f32 %v1754, %v1755
        %v1757 = vrot.slane %v1756, 2
        %v1758 = vadd.f32 %v1756, %v1757
        %v1759 = vrot.slane %v1758, 1
        %v1760 = vadd.f32 %v1758, %v1759
        %v1762 = vsel %vm372, %v1760, 0
        %1764 = vmatprep.subr.mxu0 0.0
        %1765 = vmatpush1.msra.mxu0 %v359
        %1766 = vmatprep.subr.mxu0 0.0
        %1767 = vmatpush1.msra.mxu0 %v360
        %1768 = vmatprep.subr.mxu0 0.0
        %1769 = vmatpush1.msra.mxu0 %v361
        %1770 = vmatprep.subr.mxu0 0.0
        %1771 = vmatpush1.msra.mxu0 %v362
        %1772 = vmatprep.subr.mxu0 0.0
        %1773 = vmatpush1.msra.mxu0 0.0
        %1774 = vmatprep.subr.mxu0 0.0
        %1775 = vmatpush1.msra.mxu0 0.0
        %1776 = vmatprep.subr.mxu0 0.0
        %1777 = vmatpush1.msra.mxu0 0.0
        %1778 = vmatprep.subr.mxu0 0.0
        %1779 = vmatpush1.msra.mxu0 0.0
        %1780 = vmatprep.subr.mxu0 0.0
        %1781 = vmatpush1.msra.mxu0 0.0
        %1782 = vmatprep.subr.mxu0 0.0
        %1783 = vmatpush1.msra.mxu0 0.0
        %1784 = vmatprep.subr.mxu0 0.0
        %1785 = vmatpush1.msra.mxu0 0.0
        %1786 = vmatprep.subr.mxu0 0.0
        %1787 = vmatpush1.msra.mxu0 0.0
        %1788 = vmatprep.subr.mxu0 0.0
        %1789 = vmatpush1.msra.mxu0 0.0
        %1790 = vmatprep.subr.mxu0 0.0
        %1791 = vmatpush1.msra.mxu0 0.0
        %1792 = vmatprep.subr.mxu0 0.0
        %1793 = vmatpush1.msra.mxu0 0.0
        %1794 = vmatprep.subr.mxu0 0.0
        %1795 = vmatpush1.msra.mxu0 0.0
        %1796 = vmatprep.subr.mxu0 0.0
        %1797 = vmatpush1.msra.mxu0 0.0
        %1798 = vmatprep.subr.mxu0 0.0
        %1799 = vmatpush1.msra.mxu0 0.0
        %1800 = vmatprep.subr.mxu0 0.0
        %1801 = vmatpush1.msra.mxu0 0.0
        %1802 = vmatprep.subr.mxu0 0.0
        %1803 = vmatpush1.msra.mxu0 0.0
        %1804 = vmatprep.subr.mxu0 0.0
        %1805 = vmatpush1.msra.mxu0 0.0
        %1806 = vmatprep.subr.mxu0 0.0
        %1807 = vmatpush1.msra.mxu0 0.0
        %1808 = vmatprep.subr.mxu0 0.0
        %1809 = vmatpush1.msra.mxu0 0.0
        %1810 = vmatprep.subr.mxu0 0.0
        %1811 = vmatpush1.msra.mxu0 0.0
        %1812 = vmatprep.subr.mxu0 0.0
        %1813 = vmatpush1.msra.mxu0 0.0
        %1814 = vmatprep.subr.mxu0 0.0
        %1815 = vmatpush1.msra.mxu0 0.0
        %1816 = vmatprep.subr.mxu0 0.0
        %1817 = vmatpush1.msra.mxu0 0.0
        %1818 = vmatprep.subr.mxu0 0.0
        %1819 = vmatpush1.msra.mxu0 0.0
        %1820 = vmatprep.subr.mxu0 0.0
        %1821 = vmatpush1.msra.mxu0 0.0
        %1822 = vmatprep.subr.mxu0 0.0
        %1823 = vmatpush1.msra.mxu0 0.0
        %1824 = vmatprep.subr.mxu0 0.0
        %1825 = vmatpush1.msra.mxu0 0.0
        %1826 = vmatprep.subr.mxu0 0.0
        %1827 = vmatpush1.msra.mxu0 0.0
        %1828 = vmatprep.mubr.f32.mxu0 0.0
        %1829 = vmatmul.mubr.f32.gmra.mrb[0].mxu0 %v1762
        %v1830 = vpop.f32.mrb[0].mxu0
        %v1831 = vadd.f32 %v363, %v1830
        %v1832 = vpop.f32.mrb[0].mxu0
        %1833 = vdwg.mxu0
        %v1834 = vsel %vm448, %v1831, %v1760
        %v1836 = vrot.slane %v1753, 7
        %v1838 = vsel %vm473, %v1834, %v1836
        %v1840 = vsel %vm372, %v1838, 0
        %1842 = vmatprep.subr.mxu0 0.0
        %1843 = vmatpush1.msra.mxu0 %v354
        %1844 = vmatprep.subr.mxu0 0.0
        %1845 = vmatpush1.msra.mxu0 %v355
        %1846 = vmatprep.subr.mxu0 0.0
        %1847 = vmatpush1.msra.mxu0 %v356
        %1848 = vmatprep.subr.mxu0 0.0
        %1849 = vmatpush1.msra.mxu0 %v357
        %1850 = vmatprep.subr.mxu0 0.0
        %1851 = vmatpush1.msra.mxu0 0.0
        %1852 = vmatprep.subr.mxu0 0.0
        %1853 = vmatpush1.msra.mxu0 0.0
        %1854 = vmatprep.subr.mxu0 0.0
        %1855 = vmatpush1.msra.mxu0 0.0
        %1856 = vmatprep.subr.mxu0 0.0
        %1857 = vmatpush1.msra.mxu0 0.0
        %1858 = vmatprep.subr.mxu0 0.0
        %1859 = vmatpush1.msra.mxu0 0.0
        %1860 = vmatprep.subr.mxu0 0.0
        %1861 = vmatpush1.msra.mxu0 0.0
        %1862 = vmatprep.subr.mxu0 0.0
        %1863 = vmatpush1.msra.mxu0 0.0
        %1864 = vmatprep.subr.mxu0 0.0
        %1865 = vmatpush1.msra.mxu0 0.0
        %1866 = vmatprep.subr.mxu0 0.0
        %1867 = vmatpush1.msra.mxu0 0.0
        %1868 = vmatprep.subr.mxu0 0.0
        %1869 = vmatpush1.msra.mxu0 0.0
        %1870 = vmatprep.subr.mxu0 0.0
        %1871 = vmatpush1.msra.mxu0 0.0
        %1872 = vmatprep.subr.mxu0 0.0
        %1873 = vmatpush1.msra.mxu0 0.0
        %1874 = vmatprep.subr.mxu0 0.0
        %1875 = vmatpush1.msra.mxu0 0.0
        %1876 = vmatprep.subr.mxu0 0.0
        %1877 = vmatpush1.msra.mxu0 0.0
        %1878 = vmatprep.subr.mxu0 0.0
        %1879 = vmatpush1.msra.mxu0 0.0
        %1880 = vmatprep.subr.mxu0 0.0
        %1881 = vmatpush1.msra.mxu0 0.0
        %1882 = vmatprep.subr.mxu0 0.0
        %1883 = vmatpush1.msra.mxu0 0.0
        %1884 = vmatprep.subr.mxu0 0.0
        %1885 = vmatpush1.msra.mxu0 0.0
        %1886 = vmatprep.subr.mxu0 0.0
        %1887 = vmatpush1.msra.mxu0 0.0
        %1888 = vmatprep.subr.mxu0 0.0
        %1889 = vmatpush1.msra.mxu0 0.0
        %1890 = vmatprep.subr.mxu0 0.0
        %1891 = vmatpush1.msra.mxu0 0.0
        %1892 = vmatprep.subr.mxu0 0.0
        %1893 = vmatpush1.msra.mxu0 0.0
        %1894 = vmatprep.subr.mxu0 0.0
        %1895 = vmatpush1.msra.mxu0 0.0
        %1896 = vmatprep.subr.mxu0 0.0
        %1897 = vmatpush1.msra.mxu0 0.0
        %1898 = vmatprep.subr.mxu0 0.0
        %1899 = vmatpush1.msra.mxu0 0.0
        %1900 = vmatprep.subr.mxu0 0.0
        %1901 = vmatpush1.msra.mxu0 0.0
        %1902 = vmatprep.subr.mxu0 0.0
        %1903 = vmatpush1.msra.mxu0 0.0
        %1904 = vmatprep.subr.mxu0 0.0
        %1905 = vmatpush1.msra.mxu0 0.0
        %1906 = vmatprep.mubr.f32.mxu0 0.0
        %1907 = vmatmul.mubr.f32.gmra.mrb[0].mxu0 %v1840
        %v1908 = vpop.f32.mrb[0].mxu0
        %v1909 = vadd.f32 %v575, %v1908
        %v1910 = vpop.f32.mrb[0].mxu0
        %1911 = vdwg.mxu0
        %v1913 = vrot.slane %v1909, 3
        %v1915 = vadd.f32 %v443, %v1913
        %v1916 = vxor.u32 %v1915, 2147483648
        %v1917 = vmul.f32 %v1916, 1.442695
        %v1918 = vpow.pop %v1917
        %v1919 = vadd.f32 %v1918, 1.0
        %v1920 = vrcp.pop %v1919
        %v1921 = vmul.f32 1.0, %v1920
        %v1922 = vtanh.pop %v1915
        %v1923 = vlaneseq
        %v1924 = vshrl.u32 %v1923, 7
        %v1925 = vsub.s32 5, %v1924
        %v1926 = vrot.slane %v443, %v1925
        %v1927 = vadd.f32 %v1909, %v1926
        %v1928 = vxor.u32 %v1927, 2147483648
        %v1929 = vmul.f32 %v1928, 1.442695
        %v1930 = vpow.pop %v1929
        %v1931 = vadd.f32 %v1930, 1.0
        %v1932 = vrcp.pop %v1931
        %v1933 = vmul.f32 1.0, %v1932
        %1935 = vrot.lane.b32.xlu0 %v1922, 64
        %v1936 = vpop.permute.xlu0 %1935
        %v1938 = vmul.f32 %v1921, %v1936
        %v1940 = vrot.slane %v1745, 7
        %1941 = vrot.lane.b32.xlu0 %v1940, 96
        %v1942 = vpop.permute.xlu0 %1941
        %v1944 = vmul.f32 %v1933, %v1942
        %v1946 = vrot.slane %v1944, 1
        %v1948 = vsel %vm683, %v1946, 0.0
        %v1949 = vrot.slane %v1948, 4
        %v1950 = vadd.f32 %v1948, %v1949
        %v1951 = vrot.slane %v1950, 2
        %v1952 = vadd.f32 %v1950, %v1951
        %v1953 = vrot.slane %v1952, 1
        %v1954 = vadd.f32 %v1952, %v1953
        %1956 = vrot.lane.b32.xlu0 %v1954, 32
        %v1957 = vpop.permute.xlu0 %1956
        %v1959 = vadd.f32 %v1938, %v1957
        %v1960 = vtanh.pop %v1959
        %1962 = vrot.lane.b32.xlu0 %v1960, 32
        %v1963 = vpop.permute.xlu0 %1962
        %v1965 = vmul.f32 %v1921, %v1963
        %1967 = vrot.lane.b32.xlu0 %v1965, 96
        %v1968 = vpop.permute.xlu0 %1967
        %vm1970 = vcmask 259077
        %1971 = vst.msk [vmem:[#allocation2] sm:$0x20] %vm1970, %v1968
        %1972 = vst.msk [vmem:[#allocation3] sm:$0x20] %vm1970, %v1959
        %s1973 = sadd.s32 %s449, 18
        %s1974 = sld [smem:[#allocation5 + %s1973]]
        %s1975 = scalar_lea.vmem [#allocation2], %s1974
        %v1976 = vld [vmem:[%s1975] sm:$0x1]
        %s1977 = scalar_lea.vmem [#allocation3], %s1974
        %v1978 = vld [vmem:[%s1977] sm:$0x1]
        %s1979 = sadd.s32 %s449, 19
        %s1980 = sld [smem:[#allocation5 + %s1979]]
        %s1981 = scalar_lea.vmem [#allocation2], %s1980
        %v1982 = vld [vmem:[%s1981] sm:$0x1]
        %s1983 = scalar_lea.vmem [#allocation3], %s1980
        %v1984 = vld [vmem:[%s1983] sm:$0x1]
        %s1985 = sadd.s32 %s449, 20
        %s1986 = sld [smem:[#allocation5 + %s1985]]
        %s1987 = scalar_lea.vmem [#allocation2], %s1986
        %v1988 = vld [vmem:[%s1987] sm:$0x1]
        %s1989 = scalar_lea.vmem [#allocation3], %s1986
        %v1990 = vld [vmem:[%s1989] sm:$0x1]
        %v1992 = vrot.slane %v1982, 7
        %v1995 = vrot.slane %v1988, 6
        %v1997 = vsel %vm473, %v1976, %v1992
        %v1998 = vsel %vm475, %v1997, %v1995
        %v2000 = vrot.slane %v1984, 7
        %v2003 = vrot.slane %v1990, 6
        %v2005 = vsel %vm473, %v1978, %v2000
        %v2006 = vsel %vm475, %v2005, %v2003
        %v2007 = vsel %vm485, %v2006, 0.0
        %v2008 = vrot.slane %v2007, 4
        %v2009 = vadd.f32 %v2007, %v2008
        %v2010 = vrot.slane %v2009, 2
        %v2011 = vadd.f32 %v2009, %v2010
        %v2012 = vrot.slane %v2011, 1
        %v2013 = vadd.f32 %v2011, %v2012
        %v2015 = vsel %vm372, %v2013, 0
        %2017 = vmatprep.subr.mxu0 0.0
        %2018 = vmatpush1.msra.mxu0 %v359
        %2019 = vmatprep.subr.mxu0 0.0
        %2020 = vmatpush1.msra.mxu0 %v360
        %2021 = vmatprep.subr.mxu0 0.0
        %2022 = vmatpush1.msra.mxu0 %v361
        %2023 = vmatprep.subr.mxu0 0.0
        %2024 = vmatpush1.msra.mxu0 %v362
        %2025 = vmatprep.subr.mxu0 0.0
        %2026 = vmatpush1.msra.mxu0 0.0
        %2027 = vmatprep.subr.mxu0 0.0
        %2028 = vmatpush1.msra.mxu0 0.0
        %2029 = vmatprep.subr.mxu0 0.0
        %2030 = vmatpush1.msra.mxu0 0.0
        %2031 = vmatprep.subr.mxu0 0.0
        %2032 = vmatpush1.msra.mxu0 0.0
        %2033 = vmatprep.subr.mxu0 0.0
        %2034 = vmatpush1.msra.mxu0 0.0
        %2035 = vmatprep.subr.mxu0 0.0
        %2036 = vmatpush1.msra.mxu0 0.0
        %2037 = vmatprep.subr.mxu0 0.0
        %2038 = vmatpush1.msra.mxu0 0.0
        %2039 = vmatprep.subr.mxu0 0.0
        %2040 = vmatpush1.msra.mxu0 0.0
        %2041 = vmatprep.subr.mxu0 0.0
        %2042 = vmatpush1.msra.mxu0 0.0
        %2043 = vmatprep.subr.mxu0 0.0
        %2044 = vmatpush1.msra.mxu0 0.0
        %2045 = vmatprep.subr.mxu0 0.0
        %2046 = vmatpush1.msra.mxu0 0.0
        %2047 = vmatprep.subr.mxu0 0.0
        %2048 = vmatpush1.msra.mxu0 0.0
        %2049 = vmatprep.subr.mxu0 0.0
        %2050 = vmatpush1.msra.mxu0 0.0
        %2051 = vmatprep.subr.mxu0 0.0
        %2052 = vmatpush1.msra.mxu0 0.0
        %2053 = vmatprep.subr.mxu0 0.0
        %2054 = vmatpush1.msra.mxu0 0.0
        %2055 = vmatprep.subr.mxu0 0.0
        %2056 = vmatpush1.msra.mxu0 0.0
        %2057 = vmatprep.subr.mxu0 0.0
        %2058 = vmatpush1.msra.mxu0 0.0
        %2059 = vmatprep.subr.mxu0 0.0
        %2060 = vmatpush1.msra.mxu0 0.0
        %2061 = vmatprep.subr.mxu0 0.0
        %2062 = vmatpush1.msra.mxu0 0.0
        %2063 = vmatprep.subr.mxu0 0.0
        %2064 = vmatpush1.msra.mxu0 0.0
        %2065 = vmatprep.subr.mxu0 0.0
        %2066 = vmatpush1.msra.mxu0 0.0
        %2067 = vmatprep.subr.mxu0 0.0
        %2068 = vmatpush1.msra.mxu0 0.0
        %2069 = vmatprep.subr.mxu0 0.0
        %2070 = vmatpush1.msra.mxu0 0.0
        %2071 = vmatprep.subr.mxu0 0.0
        %2072 = vmatpush1.msra.mxu0 0.0
        %2073 = vmatprep.subr.mxu0 0.0
        %2074 = vmatpush1.msra.mxu0 0.0
        %2075 = vmatprep.subr.mxu0 0.0
        %2076 = vmatpush1.msra.mxu0 0.0
        %2077 = vmatprep.subr.mxu0 0.0
        %2078 = vmatpush1.msra.mxu0 0.0
        %2079 = vmatprep.subr.mxu0 0.0
        %2080 = vmatpush1.msra.mxu0 0.0
        %2081 = vmatprep.mubr.f32.mxu0 0.0
        %2082 = vmatmul.mubr.f32.gmra.mrb[0].mxu0 %v2015
        %v2083 = vpop.f32.mrb[0].mxu0
        %v2084 = vadd.f32 %v363, %v2083
        %v2085 = vpop.f32.mrb[0].mxu0
        %2086 = vdwg.mxu0
        %v2087 = vsel %vm448, %v2084, %v2013
        %v2089 = vrot.slane %v2006, 7
        %v2091 = vsel %vm473, %v2087, %v2089
        %v2093 = vsel %vm372, %v2091, 0
        %2095 = vmatprep.subr.mxu0 0.0
        %2096 = vmatpush1.msra.mxu0 %v354
        %2097 = vmatprep.subr.mxu0 0.0
        %2098 = vmatpush1.msra.mxu0 %v355
        %2099 = vmatprep.subr.mxu0 0.0
        %2100 = vmatpush1.msra.mxu0 %v356
        %2101 = vmatprep.subr.mxu0 0.0
        %2102 = vmatpush1.msra.mxu0 %v357
        %2103 = vmatprep.subr.mxu0 0.0
        %2104 = vmatpush1.msra.mxu0 0.0
        %2105 = vmatprep.subr.mxu0 0.0
        %2106 = vmatpush1.msra.mxu0 0.0
        %2107 = vmatprep.subr.mxu0 0.0
        %2108 = vmatpush1.msra.mxu0 0.0
        %2109 = vmatprep.subr.mxu0 0.0
        %2110 = vmatpush1.msra.mxu0 0.0
        %2111 = vmatprep.subr.mxu0 0.0
        %2112 = vmatpush1.msra.mxu0 0.0
        %2113 = vmatprep.subr.mxu0 0.0
        %2114 = vmatpush1.msra.mxu0 0.0
        %2115 = vmatprep.subr.mxu0 0.0
        %2116 = vmatpush1.msra.mxu0 0.0
        %2117 = vmatprep.subr.mxu0 0.0
        %2118 = vmatpush1.msra.mxu0 0.0
        %2119 = vmatprep.subr.mxu0 0.0
        %2120 = vmatpush1.msra.mxu0 0.0
        %2121 = vmatprep.subr.mxu0 0.0
        %2122 = vmatpush1.msra.mxu0 0.0
        %2123 = vmatprep.subr.mxu0 0.0
        %2124 = vmatpush1.msra.mxu0 0.0
        %2125 = vmatprep.subr.mxu0 0.0
        %2126 = vmatpush1.msra.mxu0 0.0
        %2127 = vmatprep.subr.mxu0 0.0
        %2128 = vmatpush1.msra.mxu0 0.0
        %2129 = vmatprep.subr.mxu0 0.0
        %2130 = vmatpush1.msra.mxu0 0.0
        %2131 = vmatprep.subr.mxu0 0.0
        %2132 = vmatpush1.msra.mxu0 0.0
        %2133 = vmatprep.subr.mxu0 0.0
        %2134 = vmatpush1.msra.mxu0 0.0
        %2135 = vmatprep.subr.mxu0 0.0
        %2136 = vmatpush1.msra.mxu0 0.0
        %2137 = vmatprep.subr.mxu0 0.0
        %2138 = vmatpush1.msra.mxu0 0.0
        %2139 = vmatprep.subr.mxu0 0.0
        %2140 = vmatpush1.msra.mxu0 0.0
        %2141 = vmatprep.subr.mxu0 0.0
        %2142 = vmatpush1.msra.mxu0 0.0
        %2143 = vmatprep.subr.mxu0 0.0
        %2144 = vmatpush1.msra.mxu0 0.0
        %2145 = vmatprep.subr.mxu0 0.0
        %2146 = vmatpush1.msra.mxu0 0.0
        %2147 = vmatprep.subr.mxu0 0.0
        %2148 = vmatpush1.msra.mxu0 0.0
        %2149 = vmatprep.subr.mxu0 0.0
        %2150 = vmatpush1.msra.mxu0 0.0
        %2151 = vmatprep.subr.mxu0 0.0
        %2152 = vmatpush1.msra.mxu0 0.0
        %2153 = vmatprep.subr.mxu0 0.0
        %2154 = vmatpush1.msra.mxu0 0.0
        %2155 = vmatprep.subr.mxu0 0.0
        %2156 = vmatpush1.msra.mxu0 0.0
        %2157 = vmatprep.subr.mxu0 0.0
        %2158 = vmatpush1.msra.mxu0 0.0
        %2159 = vmatprep.mubr.f32.mxu0 0.0
        %2160 = vmatmul.mubr.f32.gmra.mrb[0].mxu0 %v2093
        %v2161 = vpop.f32.mrb[0].mxu0
        %v2162 = vadd.f32 %v575, %v2161
        %v2163 = vpop.f32.mrb[0].mxu0
        %2164 = vdwg.mxu0
        %v2166 = vrot.slane %v2162, 2
        %v2168 = vadd.f32 %v443, %v2166
        %v2169 = vxor.u32 %v2168, 2147483648
        %v2170 = vmul.f32 %v2169, 1.442695
        %v2171 = vpow.pop %v2170
        %v2172 = vadd.f32 %v2171, 1.0
        %v2173 = vrcp.pop %v2172
        %v2174 = vmul.f32 1.0, %v2173
        %v2175 = vtanh.pop %v2168
        %v2176 = vlaneseq
        %v2177 = vshrl.u32 %v2176, 7
        %v2178 = vsub.s32 6, %v2177
        %v2179 = vrot.slane %v443, %v2178
        %v2180 = vadd.f32 %v2162, %v2179
        %v2181 = vxor.u32 %v2180, 2147483648
        %v2182 = vmul.f32 %v2181, 1.442695
        %v2183 = vpow.pop %v2182
        %v2184 = vadd.f32 %v2183, 1.0
        %v2185 = vrcp.pop %v2184
        %v2186 = vmul.f32 1.0, %v2185
        %2188 = vrot.lane.b32.xlu0 %v2175, 64
        %v2189 = vpop.permute.xlu0 %2188
        %v2191 = vmul.f32 %v2174, %v2189
        %v2193 = vrot.slane %v1998, 7
        %2194 = vrot.lane.b32.xlu0 %v2193, 96
        %v2195 = vpop.permute.xlu0 %2194
        %v2197 = vmul.f32 %v2186, %v2195
        %v2199 = vrot.slane %v2197, 1
        %v2201 = vsel %vm683, %v2199, 0.0
        %v2202 = vrot.slane %v2201, 4
        %v2203 = vadd.f32 %v2201, %v2202
        %v2204 = vrot.slane %v2203, 2
        %v2205 = vadd.f32 %v2203, %v2204
        %v2206 = vrot.slane %v2205, 1
        %v2207 = vadd.f32 %v2205, %v2206
        %2209 = vrot.lane.b32.xlu0 %v2207, 32
        %v2210 = vpop.permute.xlu0 %2209
        %v2212 = vadd.f32 %v2191, %v2210
        %v2213 = vtanh.pop %v2212
        %2215 = vrot.lane.b32.xlu0 %v2213, 32
        %v2216 = vpop.permute.xlu0 %2215
        %v2218 = vmul.f32 %v2174, %v2216
        %2220 = vrot.lane.b32.xlu0 %v2218, 96
        %v2221 = vpop.permute.xlu0 %2220
        %vm2223 = vcmask 260102
        %2224 = vst.msk [vmem:[#allocation2] sm:$0x40] %vm2223, %v2221
        %2225 = vst.msk [vmem:[#allocation3] sm:$0x40] %vm2223, %v2212
        %s2226 = sadd.s32 %s449, 21
        %s2227 = sld [smem:[#allocation5 + %s2226]]
        %s2228 = scalar_lea.vmem [#allocation2], %s2227
        %v2229 = vld [vmem:[%s2228] sm:$0x1]
        %s2230 = scalar_lea.vmem [#allocation3], %s2227
        %v2231 = vld [vmem:[%s2230] sm:$0x1]
        %s2232 = sadd.s32 %s449, 22
        %s2233 = sld [smem:[#allocation5 + %s2232]]
        %s2234 = scalar_lea.vmem [#allocation2], %s2233
        %v2235 = vld [vmem:[%s2234] sm:$0x1]
        %s2236 = scalar_lea.vmem [#allocation3], %s2233
        %v2237 = vld [vmem:[%s2236] sm:$0x1]
        %s2238 = sadd.s32 %s449, 23
        %s2239 = sld [smem:[#allocation5 + %s2238]]
        %s2240 = scalar_lea.vmem [#allocation2], %s2239
        %v2241 = vld [vmem:[%s2240] sm:$0x1]
        %s2242 = scalar_lea.vmem [#allocation3], %s2239
        %v2243 = vld [vmem:[%s2242] sm:$0x1]
        %v2245 = vrot.slane %v2235, 7
        %v2248 = vrot.slane %v2241, 6
        %v2250 = vsel %vm473, %v2229, %v2245
        %v2251 = vsel %vm475, %v2250, %v2248
        %v2253 = vrot.slane %v2237, 7
        %v2256 = vrot.slane %v2243, 6
        %v2258 = vsel %vm473, %v2231, %v2253
        %v2259 = vsel %vm475, %v2258, %v2256
        %v2260 = vsel %vm485, %v2259, 0.0
        %v2261 = vrot.slane %v2260, 4
        %v2262 = vadd.f32 %v2260, %v2261
        %v2263 = vrot.slane %v2262, 2
        %v2264 = vadd.f32 %v2262, %v2263
        %v2265 = vrot.slane %v2264, 1
        %v2266 = vadd.f32 %v2264, %v2265
        %v2268 = vsel %vm372, %v2266, 0
        %2270 = vmatprep.subr.mxu0 0.0
        %2271 = vmatpush1.msra.mxu0 %v359
        %2272 = vmatprep.subr.mxu0 0.0
        %2273 = vmatpush1.msra.mxu0 %v360
        %2274 = vmatprep.subr.mxu0 0.0
        %2275 = vmatpush1.msra.mxu0 %v361
        %2276 = vmatprep.subr.mxu0 0.0
        %2277 = vmatpush1.msra.mxu0 %v362
        %2278 = vmatprep.subr.mxu0 0.0
        %2279 = vmatpush1.msra.mxu0 0.0
        %2280 = vmatprep.subr.mxu0 0.0
        %2281 = vmatpush1.msra.mxu0 0.0
        %2282 = vmatprep.subr.mxu0 0.0
        %2283 = vmatpush1.msra.mxu0 0.0
        %2284 = vmatprep.subr.mxu0 0.0
        %2285 = vmatpush1.msra.mxu0 0.0
        %2286 = vmatprep.subr.mxu0 0.0
        %2287 = vmatpush1.msra.mxu0 0.0
        %2288 = vmatprep.subr.mxu0 0.0
        %2289 = vmatpush1.msra.mxu0 0.0
        %2290 = vmatprep.subr.mxu0 0.0
        %2291 = vmatpush1.msra.mxu0 0.0
        %2292 = vmatprep.subr.mxu0 0.0
        %2293 = vmatpush1.msra.mxu0 0.0
        %2294 = vmatprep.subr.mxu0 0.0
        %2295 = vmatpush1.msra.mxu0 0.0
        %2296 = vmatprep.subr.mxu0 0.0
        %2297 = vmatpush1.msra.mxu0 0.0
        %2298 = vmatprep.subr.mxu0 0.0
        %2299 = vmatpush1.msra.mxu0 0.0
        %2300 = vmatprep.subr.mxu0 0.0
        %2301 = vmatpush1.msra.mxu0 0.0
        %2302 = vmatprep.subr.mxu0 0.0
        %2303 = vmatpush1.msra.mxu0 0.0
        %2304 = vmatprep.subr.mxu0 0.0
        %2305 = vmatpush1.msra.mxu0 0.0
        %2306 = vmatprep.subr.mxu0 0.0
        %2307 = vmatpush1.msra.mxu0 0.0
        %2308 = vmatprep.subr.mxu0 0.0
        %2309 = vmatpush1.msra.mxu0 0.0
        %2310 = vmatprep.subr.mxu0 0.0
        %2311 = vmatpush1.msra.mxu0 0.0
        %2312 = vmatprep.subr.mxu0 0.0
        %2313 = vmatpush1.msra.mxu0 0.0
        %2314 = vmatprep.subr.mxu0 0.0
        %2315 = vmatpush1.msra.mxu0 0.0
        %2316 = vmatprep.subr.mxu0 0.0
        %2317 = vmatpush1.msra.mxu0 0.0
        %2318 = vmatprep.subr.mxu0 0.0
        %2319 = vmatpush1.msra.mxu0 0.0
        %2320 = vmatprep.subr.mxu0 0.0
        %2321 = vmatpush1.msra.mxu0 0.0
        %2322 = vmatprep.subr.mxu0 0.0
        %2323 = vmatpush1.msra.mxu0 0.0
        %2324 = vmatprep.subr.mxu0 0.0
        %2325 = vmatpush1.msra.mxu0 0.0
        %2326 = vmatprep.subr.mxu0 0.0
        %2327 = vmatpush1.msra.mxu0 0.0
        %2328 = vmatprep.subr.mxu0 0.0
        %2329 = vmatpush1.msra.mxu0 0.0
        %2330 = vmatprep.subr.mxu0 0.0
        %2331 = vmatpush1.msra.mxu0 0.0
        %2332 = vmatprep.subr.mxu0 0.0
        %2333 = vmatpush1.msra.mxu0 0.0
        %2334 = vmatprep.mubr.f32.mxu0 0.0
        %2335 = vmatmul.mubr.f32.gmra.mrb[0].mxu0 %v2268
        %v2336 = vpop.f32.mrb[0].mxu0
        %v2337 = vadd.f32 %v363, %v2336
        %v2338 = vpop.f32.mrb[0].mxu0
        %2339 = vdwg.mxu0
        %v2340 = vsel %vm448, %v2337, %v2266
        %v2342 = vrot.slane %v2259, 7
        %v2344 = vsel %vm473, %v2340, %v2342
        %v2346 = vsel %vm372, %v2344, 0
        %2348 = vmatprep.subr.mxu0 0.0
        %2349 = vmatpush1.msra.mxu0 %v354
        %2350 = vmatprep.subr.mxu0 0.0
        %2351 = vmatpush1.msra.mxu0 %v355
        %2352 = vmatprep.subr.mxu0 0.0
        %2353 = vmatpush1.msra.mxu0 %v356
        %2354 = vmatprep.subr.mxu0 0.0
        %2355 = vmatpush1.msra.mxu0 %v357
        %2356 = vmatprep.subr.mxu0 0.0
        %2357 = vmatpush1.msra.mxu0 0.0
        %2358 = vmatprep.subr.mxu0 0.0
        %2359 = vmatpush1.msra.mxu0 0.0
        %2360 = vmatprep.subr.mxu0 0.0
        %2361 = vmatpush1.msra.mxu0 0.0
        %2362 = vmatprep.subr.mxu0 0.0
        %2363 = vmatpush1.msra.mxu0 0.0
        %2364 = vmatprep.subr.mxu0 0.0
        %2365 = vmatpush1.msra.mxu0 0.0
        %2366 = vmatprep.subr.mxu0 0.0
        %2367 = vmatpush1.msra.mxu0 0.0
        %2368 = vmatprep.subr.mxu0 0.0
        %2369 = vmatpush1.msra.mxu0 0.0
        %2370 = vmatprep.subr.mxu0 0.0
        %2371 = vmatpush1.msra.mxu0 0.0
        %2372 = vmatprep.subr.mxu0 0.0
        %2373 = vmatpush1.msra.mxu0 0.0
        %2374 = vmatprep.subr.mxu0 0.0
        %2375 = vmatpush1.msra.mxu0 0.0
        %2376 = vmatprep.subr.mxu0 0.0
        %2377 = vmatpush1.msra.mxu0 0.0
        %2378 = vmatprep.subr.mxu0 0.0
        %2379 = vmatpush1.msra.mxu0 0.0
        %2380 = vmatprep.subr.mxu0 0.0
        %2381 = vmatpush1.msra.mxu0 0.0
        %2382 = vmatprep.subr.mxu0 0.0
        %2383 = vmatpush1.msra.mxu0 0.0
        %2384 = vmatprep.subr.mxu0 0.0
        %2385 = vmatpush1.msra.mxu0 0.0
        %2386 = vmatprep.subr.mxu0 0.0
        %2387 = vmatpush1.msra.mxu0 0.0
        %2388 = vmatprep.subr.mxu0 0.0
        %2389 = vmatpush1.msra.mxu0 0.0
        %2390 = vmatprep.subr.mxu0 0.0
        %2391 = vmatpush1.msra.mxu0 0.0
        %2392 = vmatprep.subr.mxu0 0.0
        %2393 = vmatpush1.msra.mxu0 0.0
        %2394 = vmatprep.subr.mxu0 0.0
        %2395 = vmatpush1.msra.mxu0 0.0
        %2396 = vmatprep.subr.mxu0 0.0
        %2397 = vmatpush1.msra.mxu0 0.0
        %2398 = vmatprep.subr.mxu0 0.0
        %2399 = vmatpush1.msra.mxu0 0.0
        %2400 = vmatprep.subr.mxu0 0.0
        %2401 = vmatpush1.msra.mxu0 0.0
        %2402 = vmatprep.subr.mxu0 0.0
        %2403 = vmatpush1.msra.mxu0 0.0
        %2404 = vmatprep.subr.mxu0 0.0
        %2405 = vmatpush1.msra.mxu0 0.0
        %2406 = vmatprep.subr.mxu0 0.0
        %2407 = vmatpush1.msra.mxu0 0.0
        %2408 = vmatprep.subr.mxu0 0.0
        %2409 = vmatpush1.msra.mxu0 0.0
        %2410 = vmatprep.subr.mxu0 0.0
        %2411 = vmatpush1.msra.mxu0 0.0
        %2412 = vmatprep.mubr.f32.mxu0 0.0
        %2413 = vmatmul.mubr.f32.gmra.mrb[0].mxu0 %v2346
        %v2414 = vpop.f32.mrb[0].mxu0
        %v2415 = vadd.f32 %v575, %v2414
        %v2416 = vpop.f32.mrb[0].mxu0
        %2417 = vdwg.mxu0
        %v2419 = vrot.slane %v2415, 1
        %v2421 = vadd.f32 %v443, %v2419
        %v2422 = vxor.u32 %v2421, 2147483648
        %v2423 = vmul.f32 %v2422, 1.442695
        %v2424 = vpow.pop %v2423
        %v2425 = vadd.f32 %v2424, 1.0
        %v2426 = vrcp.pop %v2425
        %v2427 = vmul.f32 1.0, %v2426
        %v2428 = vtanh.pop %v2421
        %v2429 = vlaneseq
        %v2430 = vshrl.u32 %v2429, 7
        %v2431 = vsub.s32 7, %v2430
        %v2432 = vrot.slane %v443, %v2431
        %v2433 = vadd.f32 %v2415, %v2432
        %v2434 = vxor.u32 %v2433, 2147483648
        %v2435 = vmul.f32 %v2434, 1.442695
        %v2436 = vpow.pop %v2435
        %v2437 = vadd.f32 %v2436, 1.0
        %v2438 = vrcp.pop %v2437
        %v2439 = vmul.f32 1.0, %v2438
        %2441 = vrot.lane.b32.xlu0 %v2428, 64
        %v2442 = vpop.permute.xlu0 %2441
        %v2444 = vmul.f32 %v2427, %v2442
        %v2446 = vrot.slane %v2251, 7
        %2447 = vrot.lane.b32.xlu0 %v2446, 96
        %v2448 = vpop.permute.xlu0 %2447
        %v2450 = vmul.f32 %v2439, %v2448
        %v2452 = vrot.slane %v2450, 1
        %v2454 = vsel %vm683, %v2452, 0.0
        %v2455 = vrot.slane %v2454, 4
        %v2456 = vadd.f32 %v2454, %v2455
        %v2457 = vrot.slane %v2456, 2
        %v2458 = vadd.f32 %v2456, %v2457
        %v2459 = vrot.slane %v2458, 1
        %v2460 = vadd.f32 %v2458, %v2459
        %2462 = vrot.lane.b32.xlu0 %v2460, 32
        %v2463 = vpop.permute.xlu0 %2462
        %v2465 = vadd.f32 %v2444, %v2463
        %v2466 = vtanh.pop %v2465
        %2468 = vrot.lane.b32.xlu0 %v2466, 32
        %v2469 = vpop.permute.xlu0 %2468
        %v2471 = vmul.f32 %v2427, %v2469
        %2473 = vrot.lane.b32.xlu0 %v2471, 96
        %v2474 = vpop.permute.xlu0 %2473
        %vm2476 = vcmask 261127
        %2477 = vst.msk [vmem:[#allocation2] sm:$0x80] %vm2476, %v2474
        %2478 = vst.msk [vmem:[#allocation3] sm:$0x80] %vm2476, %v2465
        %2479 = vst.msk [vmem:[%s346 - $0x7] sm:$0x80] %vm2476, %v2465
        %s2480 = sand.u32 %s196, 1
        %s2481 = scalar_lea.sflag [#allocation9], %s2480
        %s2482 = sand.u32 %s196, 1
        %s2483 = scalar_lea.vmem [#allocation15], %s2482
        // Predicated region
        $region65: #{_trees_run.1} parent=47 // pred_check
          %p2484 = pneg %p206
        $region66: #{_trees_run.1} parent=47 // pred_check_branch
          %2486 = sbr.rel (%p2484) target = $region68
        $region67: #{_trees_run.1} parent=47 // pred_region
          %s2488 = ssub.s32 16, 16
          %2489 = vsyncadd %s2481, %s2488
          %s2490 = smul.addr %s36, 16
          %s2491 = scalar_lea.hbm %s9, %s2490
          %s2493 = sshll.u32 %s2483, 4
          %s2494 = int_to_ptr.vmem [resolvable:$true] %s2493
          %2496 = dma.vmem_to_hbm [thread:$0]  %s2494, 16, %s2491, %s2481
        $region68: #{_trees_run.1} parent=47 // pred_fallthru
          _
      $region48: #{_trees_run.1} parent=5 // pred_fallthru
        _
      %p2497 = scmp.le.s32.totalorder 2, %s31
      // Predicated region
      $region69: #{_trees_run.1} parent=5 // pred_check
        %p2498 = pneg %p2497
      $region70: #{_trees_run.1} parent=5 // pred_check_branch
        %2500 = sbr.rel (%p2498) target = $region72
      $region71: #{_trees_run.1} parent=5 // pred_region
        %s2501 = ssub.s32 %s31, 2
        // Predicated region
        $region73: #{_trees_run.1} parent=71 // pred_check
          %p2502 = pneg %p212
        $region74: #{_trees_run.1} parent=71 // pred_check_branch
          %2504 = sbr.rel (%p2502) target = $region76
        $region75: #{_trees_run.1} parent=71 // pred_region
          %s2505 = sand.u32 %s197, 1
          %s2506 = scalar_lea.sflag [#allocation9], %s2505
          %s2507 = sand.u32 %s197, 1
          %s2508 = scalar_lea.vmem [#allocation15], %s2507
          %2509 = dma.done %s2506, 16
        $region76: #{_trees_run.1} parent=71 // pred_fallthru
          _
      $region72: #{_trees_run.1} parent=5 // pred_fallthru
        _
    $region6: #{_trees_run.1} parent=1 // loop_footer
      %s35 = sadd.s32 1, %s31
    $region7: #{_trees_run.1} parent=1 // loop_footer_branch
      %30 = sbr.rel target = $region3
    $region8: #{_trees_run.1} parent=1 // loop_exit
      _
    %2510 = vsyncpa [#allocation8], 1
    %s2511 = scalar_lea.sflag [#allocation8], 1
    %2512 = vsyncpa %s2511, 1
    %2513 = vsyncpa [#allocation11], 1
    %2514 = vsyncpa [#allocation14], 1
    %2515 = vsyncpa [#allocation9], 1
    %s2516 = scalar_lea.sflag [#allocation9], 1
    %2517 = vsyncpa %s2516, 1

</llo_original>
